<compile_context>
chip_gen: v5e
topology: v5e:2x2
jax: 0.10.0
libtpu: 0.0.40
codegen_flags: <defaults>
</compile_context>

<pallas_src>
import functools
import math

import jax
import jax.numpy as jnp
from jax.experimental import pallas as pl
from jax.experimental.pallas import tpu as pltpu


def _gru_kernel(x_ref, *refs, n_layers: int, hidden: int, seq_len: int):
    """Multi-layer unidirectional GRU over a block of Mb independent sequences.

    Batch-on-lanes layout (lane-dense for H < 128):
      x_ref : (T, D, Mb)   time-major input block
      per layer refs: w_ih (3H, d_in), w_hh (3H, H), b_gi (3H, 1), b_hn (H, 1)
      o_ref : (H, Mb)      final hidden state of the LAST layer
    """
    w_refs = refs[: 4 * n_layers]
    o_ref = refs[4 * n_layers]
    H = hidden
    T = seq_len
    Mb = x_ref.shape[-1]

    w_ih, w_hh, b_gi, b_hn = [], [], [], []
    for l in range(n_layers):
        w_ih.append(w_refs[4 * l][...])
        w_hh.append(w_refs[4 * l + 1][...])
        # Hoist the bias broadcasts out of the unrolled loops (JAX does not CSE them).
        b_gi.append(jnp.broadcast_to(w_refs[4 * l + 2][...], (3 * H, Mb)))
        b_hn.append(jnp.broadcast_to(w_refs[4 * l + 3][...], (H, Mb)))

    hs = [jnp.zeros((H, Mb), jnp.float32) for _ in range(n_layers)]

    # Time-outer / layer-inner static unroll: (layer l, t) depends only on
    # (layer l, t-1) and (layer l-1, t), so the scheduler can wavefront the
    # per-layer dependence chains.  No full-sequence scratch barrier.
    for t in range(T):
        inp = x_ref[t]                                     # (D, Mb) for layer 0
        for l in range(n_layers):
            gi = jnp.dot(w_ih[l], inp, preferred_element_type=jnp.float32) + b_gi[l]
            gh = jnp.dot(w_hh[l], hs[l], preferred_element_type=jnp.float32)
            r = jax.nn.sigmoid(gi[0:H] + gh[0:H])
            z = jax.nn.sigmoid(gi[H:2 * H] + gh[H:2 * H])
            n = jnp.tanh(gi[2 * H:3 * H] + r * (gh[2 * H:3 * H] + b_hn[l]))
            h_new = n + z * (hs[l] - n)                    # == (1-z)*n + z*h
            hs[l] = h_new
            inp = h_new                                    # next layer's input at t
    o_ref[...] = hs[n_layers - 1].astype(o_ref.dtype)


def pointer_offer_embedder_forward(x_words_embedded, params, *, n_layers: int,
                                   hidden: int, block_m: int = 128):
    """x_words_embedded: (B, n_offers, T, word_dim).  Returns (B, n_offers, hidden).

    block_m: sequences per grid step; must be a multiple of 128 (lane-dense tiles).
             128 fills v5e's MXU M-dim; 256 is a good choice on v6e/v7x.
    """
    assert block_m % 128 == 0, "block_m must be a multiple of 128"
    x = x_words_embedded.astype(jnp.float32)               # catalog.float()
    B, n_offers, T, D = x.shape
    H = hidden
    M = B * n_offers

    # Pad the flattened batch to a multiple of block_m (never fall back to one giant
    # block): stable tiling/pipelining, and grid>1 can be split across v7x's two TCs.
    Mb = block_m
    M_pad = pl.cdiv(M, Mb) * Mb
    grid = (M_pad // Mb,)

    xm = x.reshape(M, T, D)
    if M_pad != M:
        xm = jnp.pad(xm, ((0, M_pad - M), (0, 0), (0, 0)))
    # Batch-on-lanes layout for the kernel: (T, D, M_pad).  One small wrapper-side
    # transpose of x buys lane-dense tiles for every matmul/VPU/EUP op and an
    # unmasked (H, Mb) output store (an in-kernel relayout of a lane-sparse
    # (Mb, T, D) tile would be costlier and riskier to lower).
    x_tm = jnp.transpose(xm, (1, 2, 0))

    weight_args, weight_specs = [], []
    for layer in range(n_layers):
        d_in = D if layer == 0 else H
        w_ih = params[f"w_ih_{layer}"]                     # (3H, d_in) PyTorch-native
        w_hh = params[f"w_hh_{layer}"]                     # (3H, H)
        b_ih = params[f"b_ih_{layer}"]                     # (3H,)
        b_hh = params[f"b_hh_{layer}"]                     # (3H,)
        # Fold b_hh's r/z rows into the input-side bias outside the kernel; only the
        # n-row of b_hh stays separate (it is multiplied by the reset gate).
        b_gi = (b_ih + jnp.concatenate([b_hh[:2 * H], jnp.zeros((H,), jnp.float32)])
                ).reshape(3 * H, 1)
        b_hn = b_hh[2 * H:].reshape(H, 1)
        weight_args += [w_ih, w_hh, b_gi, b_hn]
        weight_specs += [
            pl.BlockSpec((3 * H, d_in), lambda m: (0, 0)),
            pl.BlockSpec((3 * H, H), lambda m: (0, 0)),
            pl.BlockSpec((3 * H, 1), lambda m: (0, 0)),
            pl.BlockSpec((H, 1), lambda m: (0, 0)),
        ]

    kernel = functools.partial(_gru_kernel, n_layers=n_layers, hidden=hidden, seq_len=T)

    out = pl.pallas_call(
        kernel,
        out_shape=jax.ShapeDtypeStruct((H, M_pad), jnp.float32),
        grid=grid,
        in_specs=[pl.BlockSpec((T, D, Mb), lambda m: (0, 0, m))] + weight_specs,
        out_specs=pl.BlockSpec((H, Mb), lambda m: (0, m)),
        compiler_params=pltpu.CompilerParams(
            dimension_semantics=("parallel",),
            # Explicit scoped-VMEM budget: fine on v5e/v6e (128 MiB physical) and
            # within v7x's 64 MiB physical VMEM.  Weights + x block are double-
            # buffered by the BlockSpec pipeline; re-derive Mb against this budget
            # at production hidden sizes.
            vmem_limit_bytes=48 * 1024 * 1024,
        ),
    )(x_tm, *weight_args)

    out = out[:, :M]                                       # drop padded sequences
    return jnp.transpose(out).reshape(B, n_offers, H)


def _reference(x, params, n_layers, hidden):
    """Pure-JAX replica of the PyTorch GRU forward (eval mode, unidirectional)."""
    x = x.astype(jnp.float32)
    B, n_offers, T, D = x.shape
    H = hidden
    hp = jax.lax.Precision.HIGHEST
    seq = x.reshape(B * n_offers, T, D)
    h = jnp.zeros((seq.shape[0], H), jnp.float32)
    for layer in range(n_layers):
        w_ih, b_ih = params[f"w_ih_{layer}"], params[f"b_ih_{layer}"]
        w_hh, b_hh = params[f"w_hh_{layer}"], params[f"b_hh_{layer}"]
        h = jnp.zeros((seq.shape[0], H), jnp.float32)
        outs = []
        for t in range(T):
            gi = jnp.dot(seq[:, t, :], w_ih.T, precision=hp) + b_ih
            gh = jnp.dot(h, w_hh.T, precision=hp) + b_hh
            r = jax.nn.sigmoid(gi[:, :H] + gh[:, :H])
            z = jax.nn.sigmoid(gi[:, H:2 * H] + gh[:, H:2 * H])
            n = jnp.tanh(gi[:, 2 * H:] + r * gh[:, 2 * H:])
            h = (1.0 - z) * n + z * h
            outs.append(h)
        seq = jnp.stack(outs, axis=1)
    return h.reshape(B, n_offers, H)


def init_params(key, word_dim, hidden, n_layers):
    """nn.GRU-style init: U(-1/sqrt(hidden), 1/sqrt(hidden)).
    PyTorch-native shapes: w_ih (3H, d_in), w_hh (3H, H), biases (3H,); gate order r|z|n."""
    bound = 1.0 / math.sqrt(hidden)
    params = {}
    keys = jax.random.split(key, 4 * n_layers)
    for layer in range(n_layers):
        d_in = word_dim if layer == 0 else hidden
        k0, k1, k2, k3 = keys[4 * layer: 4 * layer + 4]
        params[f"w_ih_{layer}"] = jax.random.uniform(
            k0, (3 * hidden, d_in), jnp.float32, -bound, bound)
        params[f"w_hh_{layer}"] = jax.random.uniform(
            k1, (3 * hidden, hidden), jnp.float32, -bound, bound)
        params[f"b_ih_{layer}"] = jax.random.uniform(
            k2, (3 * hidden,), jnp.float32, -bound, bound)
        params[f"b_hh_{layer}"] = jax.random.uniform(
            k3, (3 * hidden,), jnp.float32, -bound, bound)
    return params


if __name__ == "__main__":
    # PointerOfferEmbedder(word_embedding_dim=16, offer_embedding_dim=32,
    #                      n_layers=2, dropout=0.0, bidir=False)
    B, n_offers, seq_len = 2, 8, 8
    word_dim, offer_dim, n_layers = 16, 32, 2

    key = jax.random.PRNGKey(0)
    kx, kp = jax.random.split(key)
    x = jax.random.normal(kx, (B, n_offers, seq_len, word_dim), jnp.float32)
    params = init_params(kp, word_dim, offer_dim, n_layers)

    out = pointer_offer_embedder_forward(x, params, n_layers=n_layers, hidden=offer_dim)
    out = jax.block_until_ready(out)

    ref = _reference(x, params, n_layers, offer_dim)
    assert out.shape == (B, n_offers, offer_dim)
    assert jnp.allclose(out, ref, atol=2e-4, rtol=2e-4), "mismatch vs JAX reference"

    print("KERNEL_OK")
</pallas_src>

<mosaic_0001>
module attributes {stable_mosaic.version = 11 : i64} {
  func.func @_gru_kernel(%arg0: i32, %arg1: memref<8x16x128xf32, #tpu.memory_space<vmem>>, %arg2: memref<96x16xf32, #tpu.memory_space<vmem>>, %arg3: memref<96x32xf32, #tpu.memory_space<vmem>>, %arg4: memref<96x1xf32, #tpu.memory_space<vmem>>, %arg5: memref<32x1xf32, #tpu.memory_space<vmem>>, %arg6: memref<96x32xf32, #tpu.memory_space<vmem>>, %arg7: memref<96x32xf32, #tpu.memory_space<vmem>>, %arg8: memref<96x1xf32, #tpu.memory_space<vmem>>, %arg9: memref<32x1xf32, #tpu.memory_space<vmem>>, %arg10: memref<32x128xf32, #tpu.memory_space<vmem>>) attributes {dimension_semantics = [#tpu.dimension_semantics<parallel>], iteration_bounds = array<i64: 1>, scalar_prefetch = 0 : i64, scratch_operands = 0 : i64, tpu.core_type = #tpu.core_type<tc>, window_params = [{transform_indices = @transform_0, window_bounds = array<i64: 8, 16, 128>}, {pipeline_mode = #tpu.pipeline_mode<synchronous>, transform_indices = @transform_1, window_bounds = array<i64: 96, 16>}, {pipeline_mode = #tpu.pipeline_mode<synchronous>, transform_indices = @transform_2, window_bounds = array<i64: 96, 32>}, {pipeline_mode = #tpu.pipeline_mode<synchronous>, transform_indices = @transform_3, window_bounds = array<i64: 96, 1>}, {pipeline_mode = #tpu.pipeline_mode<synchronous>, transform_indices = @transform_4, window_bounds = array<i64: 32, 1>}, {pipeline_mode = #tpu.pipeline_mode<synchronous>, transform_indices = @transform_5, window_bounds = array<i64: 96, 32>}, {pipeline_mode = #tpu.pipeline_mode<synchronous>, transform_indices = @transform_6, window_bounds = array<i64: 96, 32>}, {pipeline_mode = #tpu.pipeline_mode<synchronous>, transform_indices = @transform_7, window_bounds = array<i64: 96, 1>}, {pipeline_mode = #tpu.pipeline_mode<synchronous>, transform_indices = @transform_8, window_bounds = array<i64: 32, 1>}, {transform_indices = @transform_9, window_bounds = array<i64: 32, 128>}]} {
    %c0 = arith.constant 0 : index
    %c0_0 = arith.constant 0 : index
    %0 = vector.load %arg2[%c0, %c0_0] : memref<96x16xf32, #tpu.memory_space<vmem>>, vector<96x16xf32>
    %c0_1 = arith.constant 0 : index
    %c0_2 = arith.constant 0 : index
    %1 = vector.load %arg3[%c0_1, %c0_2] : memref<96x32xf32, #tpu.memory_space<vmem>>, vector<96x32xf32>
    %c0_3 = arith.constant 0 : index
    %c0_4 = arith.constant 0 : index
    %2 = vector.load %arg4[%c0_3, %c0_4] : memref<96x1xf32, #tpu.memory_space<vmem>>, vector<96x1xf32>
    %3 = vector.shape_cast %2 : vector<96x1xf32> to vector<96x1xf32>
    %4 = vector.broadcast %3 : vector<96x1xf32> to vector<96x128xf32>
    %c0_5 = arith.constant 0 : index
    %c0_6 = arith.constant 0 : index
    %5 = vector.load %arg5[%c0_5, %c0_6] : memref<32x1xf32, #tpu.memory_space<vmem>>, vector<32x1xf32>
    %6 = vector.shape_cast %5 : vector<32x1xf32> to vector<32x1xf32>
    %7 = vector.broadcast %6 : vector<32x1xf32> to vector<32x128xf32>
    %c0_7 = arith.constant 0 : index
    %c0_8 = arith.constant 0 : index
    %8 = vector.load %arg6[%c0_7, %c0_8] : memref<96x32xf32, #tpu.memory_space<vmem>>, vector<96x32xf32>
    %c0_9 = arith.constant 0 : index
    %c0_10 = arith.constant 0 : index
    %9 = vector.load %arg7[%c0_9, %c0_10] : memref<96x32xf32, #tpu.memory_space<vmem>>, vector<96x32xf32>
    %c0_11 = arith.constant 0 : index
    %c0_12 = arith.constant 0 : index
    %10 = vector.load %arg8[%c0_11, %c0_12] : memref<96x1xf32, #tpu.memory_space<vmem>>, vector<96x1xf32>
    %11 = vector.shape_cast %10 : vector<96x1xf32> to vector<96x1xf32>
    %12 = vector.broadcast %11 : vector<96x1xf32> to vector<96x128xf32>
    %c0_13 = arith.constant 0 : index
    %c0_14 = arith.constant 0 : index
    %13 = vector.load %arg9[%c0_13, %c0_14] : memref<32x1xf32, #tpu.memory_space<vmem>>, vector<32x1xf32>
    %14 = vector.shape_cast %13 : vector<32x1xf32> to vector<32x1xf32>
    %15 = vector.broadcast %14 : vector<32x1xf32> to vector<32x128xf32>
    %cst = arith.constant 0.000000e+00 : f32
    %16 = vector.broadcast %cst : f32 to vector<32x128xf32>
    %cst_15 = arith.constant 0.000000e+00 : f32
    %17 = vector.broadcast %cst_15 : f32 to vector<32x128xf32>
    %c0_16 = arith.constant 0 : index
    %c0_17 = arith.constant 0 : index
    %c0_18 = arith.constant 0 : index
    %18 = vector.load %arg1[%c0_16, %c0_17, %c0_18] : memref<8x16x128xf32, #tpu.memory_space<vmem>>, vector<1x16x128xf32>
    %19 = vector.shape_cast %18 : vector<1x16x128xf32> to vector<16x128xf32>
    %cst_19 = arith.constant dense<0.000000e+00> : vector<96x128xf32>
    %20 = tpu.matmul %0, %19, %cst_19 {dimension_numbers = #tpu.dot_dimension_numbers<[1], [0], [0], [1], [0, 0, 1, 1], [], []>} : vector<96x16xf32>, vector<16x128xf32>, vector<96x128xf32> -> vector<96x128xf32>
    %21 = arith.addf %20, %4 : vector<96x128xf32>
    %cst_20 = arith.constant dense<0.000000e+00> : vector<96x128xf32>
    %22 = tpu.matmul %1, %16, %cst_20 {dimension_numbers = #tpu.dot_dimension_numbers<[1], [0], [0], [1], [0, 0, 1, 1], [], []>} : vector<96x32xf32>, vector<32x128xf32>, vector<96x128xf32> -> vector<96x128xf32>
    %23 = vector.extract_strided_slice %21 {offsets = [0, 0], sizes = [32, 128], strides = [1, 1]} : vector<96x128xf32> to vector<32x128xf32>
    %24 = vector.extract_strided_slice %22 {offsets = [0, 0], sizes = [32, 128], strides = [1, 1]} : vector<96x128xf32> to vector<32x128xf32>
    %25 = arith.addf %23, %24 : vector<32x128xf32>
    %26 = arith.negf %25 : vector<32x128xf32>
    %27 = math.exp %26 : vector<32x128xf32>
    %cst_21 = arith.constant 1.000000e+00 : f32
    %28 = vector.broadcast %cst_21 : f32 to vector<32x128xf32>
    %29 = arith.addf %28, %27 : vector<32x128xf32>
    %30 = arith.divf %28, %29 : vector<32x128xf32>
    %31 = vector.extract_strided_slice %21 {offsets = [32, 0], sizes = [32, 128], strides = [1, 1]} : vector<96x128xf32> to vector<32x128xf32>
    %32 = vector.extract_strided_slice %22 {offsets = [32, 0], sizes = [32, 128], strides = [1, 1]} : vector<96x128xf32> to vector<32x128xf32>
    %33 = arith.addf %31, %32 : vector<32x128xf32>
    %34 = arith.negf %33 : vector<32x128xf32>
    %35 = math.exp %34 : vector<32x128xf32>
    %cst_22 = arith.constant 1.000000e+00 : f32
    %36 = vector.broadcast %cst_22 : f32 to vector<32x128xf32>
    %37 = arith.addf %36, %35 : vector<32x128xf32>
    %38 = arith.divf %36, %37 : vector<32x128xf32>
    %39 = vector.extract_strided_slice %21 {offsets = [64, 0], sizes = [32, 128], strides = [1, 1]} : vector<96x128xf32> to vector<32x128xf32>
    %40 = vector.extract_strided_slice %22 {offsets = [64, 0], sizes = [32, 128], strides = [1, 1]} : vector<96x128xf32> to vector<32x128xf32>
    %41 = arith.addf %40, %7 : vector<32x128xf32>
    %42 = arith.mulf %30, %41 : vector<32x128xf32>
    %43 = arith.addf %39, %42 : vector<32x128xf32>
    %44 = math.tanh %43 : vector<32x128xf32>
    %45 = arith.subf %16, %44 : vector<32x128xf32>
    %46 = arith.mulf %38, %45 : vector<32x128xf32>
    %47 = arith.addf %44, %46 : vector<32x128xf32>
    %cst_23 = arith.constant dense<0.000000e+00> : vector<96x128xf32>
    %48 = tpu.matmul %8, %47, %cst_23 {dimension_numbers = #tpu.dot_dimension_numbers<[1], [0], [0], [1], [0, 0, 1, 1], [], []>} : vector<96x32xf32>, vector<32x128xf32>, vector<96x128xf32> -> vector<96x128xf32>
    %49 = arith.addf %48, %12 : vector<96x128xf32>
    %cst_24 = arith.constant dense<0.000000e+00> : vector<96x128xf32>
    %50 = tpu.matmul %9, %17, %cst_24 {dimension_numbers = #tpu.dot_dimension_numbers<[1], [0], [0], [1], [0, 0, 1, 1], [], []>} : vector<96x32xf32>, vector<32x128xf32>, vector<96x128xf32> -> vector<96x128xf32>
    %51 = vector.extract_strided_slice %49 {offsets = [0, 0], sizes = [32, 128], strides = [1, 1]} : vector<96x128xf32> to vector<32x128xf32>
    %52 = vector.extract_strided_slice %50 {offsets = [0, 0], sizes = [32, 128], strides = [1, 1]} : vector<96x128xf32> to vector<32x128xf32>
    %53 = arith.addf %51, %52 : vector<32x128xf32>
    %54 = arith.negf %53 : vector<32x128xf32>
    %55 = math.exp %54 : vector<32x128xf32>
    %cst_25 = arith.constant 1.000000e+00 : f32
    %56 = vector.broadcast %cst_25 : f32 to vector<32x128xf32>
    %57 = arith.addf %56, %55 : vector<32x128xf32>
    %58 = arith.divf %56, %57 : vector<32x128xf32>
    %59 = vector.extract_strided_slice %49 {offsets = [32, 0], sizes = [32, 128], strides = [1, 1]} : vector<96x128xf32> to vector<32x128xf32>
    %60 = vector.extract_strided_slice %50 {offsets = [32, 0], sizes = [32, 128], strides = [1, 1]} : vector<96x128xf32> to vector<32x128xf32>
    %61 = arith.addf %59, %60 : vector<32x128xf32>
    %62 = arith.negf %61 : vector<32x128xf32>
    %63 = math.exp %62 : vector<32x128xf32>
    %cst_26 = arith.constant 1.000000e+00 : f32
    %64 = vector.broadcast %cst_26 : f32 to vector<32x128xf32>
    %65 = arith.addf %64, %63 : vector<32x128xf32>
    %66 = arith.divf %64, %65 : vector<32x128xf32>
    %67 = vector.extract_strided_slice %49 {offsets = [64, 0], sizes = [32, 128], strides = [1, 1]} : vector<96x128xf32> to vector<32x128xf32>
    %68 = vector.extract_strided_slice %50 {offsets = [64, 0], sizes = [32, 128], strides = [1, 1]} : vector<96x128xf32> to vector<32x128xf32>
    %69 = arith.addf %68, %15 : vector<32x128xf32>
    %70 = arith.mulf %58, %69 : vector<32x128xf32>
    %71 = arith.addf %67, %70 : vector<32x128xf32>
    %72 = math.tanh %71 : vector<32x128xf32>
    %73 = arith.subf %17, %72 : vector<32x128xf32>
    %74 = arith.mulf %66, %73 : vector<32x128xf32>
    %75 = arith.addf %72, %74 : vector<32x128xf32>
    %c1 = arith.constant 1 : index
    %c0_27 = arith.constant 0 : index
    %c0_28 = arith.constant 0 : index
    %76 = vector.load %arg1[%c1, %c0_27, %c0_28] : memref<8x16x128xf32, #tpu.memory_space<vmem>>, vector<1x16x128xf32>
    %77 = vector.shape_cast %76 : vector<1x16x128xf32> to vector<16x128xf32>
    %cst_29 = arith.constant dense<0.000000e+00> : vector<96x128xf32>
    %78 = tpu.matmul %0, %77, %cst_29 {dimension_numbers = #tpu.dot_dimension_numbers<[1], [0], [0], [1], [0, 0, 1, 1], [], []>} : vector<96x16xf32>, vector<16x128xf32>, vector<96x128xf32> -> vector<96x128xf32>
    %79 = arith.addf %78, %4 : vector<96x128xf32>
    %cst_30 = arith.constant dense<0.000000e+00> : vector<96x128xf32>
    %80 = tpu.matmul %1, %47, %cst_30 {dimension_numbers = #tpu.dot_dimension_numbers<[1], [0], [0], [1], [0, 0, 1, 1], [], []>} : vector<96x32xf32>, vector<32x128xf32>, vector<96x128xf32> -> vector<96x128xf32>
    %81 = vector.extract_strided_slice %79 {offsets = [0, 0], sizes = [32, 128], strides = [1, 1]} : vector<96x128xf32> to vector<32x128xf32>
    %82 = vector.extract_strided_slice %80 {offsets = [0, 0], sizes = [32, 128], strides = [1, 1]} : vector<96x128xf32> to vector<32x128xf32>
    %83 = arith.addf %81, %82 : vector<32x128xf32>
    %84 = arith.negf %83 : vector<32x128xf32>
    %85 = math.exp %84 : vector<32x128xf32>
    %cst_31 = arith.constant 1.000000e+00 : f32
    %86 = vector.broadcast %cst_31 : f32 to vector<32x128xf32>
    %87 = arith.addf %86, %85 : vector<32x128xf32>
    %88 = arith.divf %86, %87 : vector<32x128xf32>
    %89 = vector.extract_strided_slice %79 {offsets = [32, 0], sizes = [32, 128], strides = [1, 1]} : vector<96x128xf32> to vector<32x128xf32>
    %90 = vector.extract_strided_slice %80 {offsets = [32, 0], sizes = [32, 128], strides = [1, 1]} : vector<96x128xf32> to vector<32x128xf32>
    %91 = arith.addf %89, %90 : vector<32x128xf32>
    %92 = arith.negf %91 : vector<32x128xf32>
    %93 = math.exp %92 : vector<32x128xf32>
    %cst_32 = arith.constant 1.000000e+00 : f32
    %94 = vector.broadcast %cst_32 : f32 to vector<32x128xf32>
    %95 = arith.addf %94, %93 : vector<32x128xf32>
    %96 = arith.divf %94, %95 : vector<32x128xf32>
    %97 = vector.extract_strided_slice %79 {offsets = [64, 0], sizes = [32, 128], strides = [1, 1]} : vector<96x128xf32> to vector<32x128xf32>
    %98 = vector.extract_strided_slice %80 {offsets = [64, 0], sizes = [32, 128], strides = [1, 1]} : vector<96x128xf32> to vector<32x128xf32>
    %99 = arith.addf %98, %7 : vector<32x128xf32>
    %100 = arith.mulf %88, %99 : vector<32x128xf32>
    %101 = arith.addf %97, %100 : vector<32x128xf32>
    %102 = math.tanh %101 : vector<32x128xf32>
    %103 = arith.subf %47, %102 : vector<32x128xf32>
    %104 = arith.mulf %96, %103 : vector<32x128xf32>
    %105 = arith.addf %102, %104 : vector<32x128xf32>
    %cst_33 = arith.constant dense<0.000000e+00> : vector<96x128xf32>
    %106 = tpu.matmul %8, %105, %cst_33 {dimension_numbers = #tpu.dot_dimension_numbers<[1], [0], [0], [1], [0, 0, 1, 1], [], []>} : vector<96x32xf32>, vector<32x128xf32>, vector<96x128xf32> -> vector<96x128xf32>
    %107 = arith.addf %106, %12 : vector<96x128xf32>
    %cst_34 = arith.constant dense<0.000000e+00> : vector<96x128xf32>
    %108 = tpu.matmul %9, %75, %cst_34 {dimension_numbers = #tpu.dot_dimension_numbers<[1], [0], [0], [1], [0, 0, 1, 1], [], []>} : vector<96x32xf32>, vector<32x128xf32>, vector<96x128xf32> -> vector<96x128xf32>
    %109 = vector.extract_strided_slice %107 {offsets = [0, 0], sizes = [32, 128], strides = [1, 1]} : vector<96x128xf32> to vector<32x128xf32>
    %110 = vector.extract_strided_slice %108 {offsets = [0, 0], sizes = [32, 128], strides = [1, 1]} : vector<96x128xf32> to vector<32x128xf32>
    %111 = arith.addf %109, %110 : vector<32x128xf32>
    %112 = arith.negf %111 : vector<32x128xf32>
    %113 = math.exp %112 : vector<32x128xf32>
    %cst_35 = arith.constant 1.000000e+00 : f32
    %114 = vector.broadcast %cst_35 : f32 to vector<32x128xf32>
    %115 = arith.addf %114, %113 : vector<32x128xf32>
    %116 = arith.divf %114, %115 : vector<32x128xf32>
    %117 = vector.extract_strided_slice %107 {offsets = [32, 0], sizes = [32, 128], strides = [1, 1]} : vector<96x128xf32> to vector<32x128xf32>
    %118 = vector.extract_strided_slice %108 {offsets = [32, 0], sizes = [32, 128], strides = [1, 1]} : vector<96x128xf32> to vector<32x128xf32>
    %119 = arith.addf %117, %118 : vector<32x128xf32>
    %120 = arith.negf %119 : vector<32x128xf32>
    %121 = math.exp %120 : vector<32x128xf32>
    %cst_36 = arith.constant 1.000000e+00 : f32
    %122 = vector.broadcast %cst_36 : f32 to vector<32x128xf32>
    %123 = arith.addf %122, %121 : vector<32x128xf32>
    %124 = arith.divf %122, %123 : vector<32x128xf32>
    %125 = vector.extract_strided_slice %107 {offsets = [64, 0], sizes = [32, 128], strides = [1, 1]} : vector<96x128xf32> to vector<32x128xf32>
    %126 = vector.extract_strided_slice %108 {offsets = [64, 0], sizes = [32, 128], strides = [1, 1]} : vector<96x128xf32> to vector<32x128xf32>
    %127 = arith.addf %126, %15 : vector<32x128xf32>
    %128 = arith.mulf %116, %127 : vector<32x128xf32>
    %129 = arith.addf %125, %128 : vector<32x128xf32>
    %130 = math.tanh %129 : vector<32x128xf32>
    %131 = arith.subf %75, %130 : vector<32x128xf32>
    %132 = arith.mulf %124, %131 : vector<32x128xf32>
    %133 = arith.addf %130, %132 : vector<32x128xf32>
    %c2 = arith.constant 2 : index
    %c0_37 = arith.constant 0 : index
    %c0_38 = arith.constant 0 : index
    %134 = vector.load %arg1[%c2, %c0_37, %c0_38] : memref<8x16x128xf32, #tpu.memory_space<vmem>>, vector<1x16x128xf32>
    %135 = vector.shape_cast %134 : vector<1x16x128xf32> to vector<16x128xf32>
    %cst_39 = arith.constant dense<0.000000e+00> : vector<96x128xf32>
    %136 = tpu.matmul %0, %135, %cst_39 {dimension_numbers = #tpu.dot_dimension_numbers<[1], [0], [0], [1], [0, 0, 1, 1], [], []>} : vector<96x16xf32>, vector<16x128xf32>, vector<96x128xf32> -> vector<96x128xf32>
    %137 = arith.addf %136, %4 : vector<96x128xf32>
    %cst_40 = arith.constant dense<0.000000e+00> : vector<96x128xf32>
    %138 = tpu.matmul %1, %105, %cst_40 {dimension_numbers = #tpu.dot_dimension_numbers<[1], [0], [0], [1], [0, 0, 1, 1], [], []>} : vector<96x32xf32>, vector<32x128xf32>, vector<96x128xf32> -> vector<96x128xf32>
    %139 = vector.extract_strided_slice %137 {offsets = [0, 0], sizes = [32, 128], strides = [1, 1]} : vector<96x128xf32> to vector<32x128xf32>
    %140 = vector.extract_strided_slice %138 {offsets = [0, 0], sizes = [32, 128], strides = [1, 1]} : vector<96x128xf32> to vector<32x128xf32>
    %141 = arith.addf %139, %140 : vector<32x128xf32>
    %142 = arith.negf %141 : vector<32x128xf32>
    %143 = math.exp %142 : vector<32x128xf32>
    %cst_41 = arith.constant 1.000000e+00 : f32
    %144 = vector.broadcast %cst_41 : f32 to vector<32x128xf32>
    %145 = arith.addf %144, %143 : vector<32x128xf32>
    %146 = arith.divf %144, %145 : vector<32x128xf32>
    %147 = vector.extract_strided_slice %137 {offsets = [32, 0], sizes = [32, 128], strides = [1, 1]} : vector<96x128xf32> to vector<32x128xf32>
    %148 = vector.extract_strided_slice %138 {offsets = [32, 0], sizes = [32, 128], strides = [1, 1]} : vector<96x128xf32> to vector<32x128xf32>
    %149 = arith.addf %147, %148 : vector<32x128xf32>
    %150 = arith.negf %149 : vector<32x128xf32>
    %151 = math.exp %150 : vector<32x128xf32>
    %cst_42 = arith.constant 1.000000e+00 : f32
    %152 = vector.broadcast %cst_42 : f32 to vector<32x128xf32>
    %153 = arith.addf %152, %151 : vector<32x128xf32>
    %154 = arith.divf %152, %153 : vector<32x128xf32>
    %155 = vector.extract_strided_slice %137 {offsets = [64, 0], sizes = [32, 128], strides = [1, 1]} : vector<96x128xf32> to vector<32x128xf32>
    %156 = vector.extract_strided_slice %138 {offsets = [64, 0], sizes = [32, 128], strides = [1, 1]} : vector<96x128xf32> to vector<32x128xf32>
    %157 = arith.addf %156, %7 : vector<32x128xf32>
    %158 = arith.mulf %146, %157 : vector<32x128xf32>
    %159 = arith.addf %155, %158 : vector<32x128xf32>
    %160 = math.tanh %159 : vector<32x128xf32>
    %161 = arith.subf %105, %160 : vector<32x128xf32>
    %162 = arith.mulf %154, %161 : vector<32x128xf32>
    %163 = arith.addf %160, %162 : vector<32x128xf32>
    %cst_43 = arith.constant dense<0.000000e+00> : vector<96x128xf32>
    %164 = tpu.matmul %8, %163, %cst_43 {dimension_numbers = #tpu.dot_dimension_numbers<[1], [0], [0], [1], [0, 0, 1, 1], [], []>} : vector<96x32xf32>, vector<32x128xf32>, vector<96x128xf32> -> vector<96x128xf32>
    %165 = arith.addf %164, %12 : vector<96x128xf32>
    %cst_44 = arith.constant dense<0.000000e+00> : vector<96x128xf32>
    %166 = tpu.matmul %9, %133, %cst_44 {dimension_numbers = #tpu.dot_dimension_numbers<[1], [0], [0], [1], [0, 0, 1, 1], [], []>} : vector<96x32xf32>, vector<32x128xf32>, vector<96x128xf32> -> vector<96x128xf32>
    %167 = vector.extract_strided_slice %165 {offsets = [0, 0], sizes = [32, 128], strides = [1, 1]} : vector<96x128xf32> to vector<32x128xf32>
    %168 = vector.extract_strided_slice %166 {offsets = [0, 0], sizes = [32, 128], strides = [1, 1]} : vector<96x128xf32> to vector<32x128xf32>
    %169 = arith.addf %167, %168 : vector<32x128xf32>
    %170 = arith.negf %169 : vector<32x128xf32>
    %171 = math.exp %170 : vector<32x128xf32>
    %cst_45 = arith.constant 1.000000e+00 : f32
    %172 = vector.broadcast %cst_45 : f32 to vector<32x128xf32>
    %173 = arith.addf %172, %171 : vector<32x128xf32>
    %174 = arith.divf %172, %173 : vector<32x128xf32>
    %175 = vector.extract_strided_slice %165 {offsets = [32, 0], sizes = [32, 128], strides = [1, 1]} : vector<96x128xf32> to vector<32x128xf32>
    %176 = vector.extract_strided_slice %166 {offsets = [32, 0], sizes = [32, 128], strides = [1, 1]} : vector<96x128xf32> to vector<32x128xf32>
    %177 = arith.addf %175, %176 : vector<32x128xf32>
    %178 = arith.negf %177 : vector<32x128xf32>
    %179 = math.exp %178 : vector<32x128xf32>
    %cst_46 = arith.constant 1.000000e+00 : f32
    %180 = vector.broadcast %cst_46 : f32 to vector<32x128xf32>
    %181 = arith.addf %180, %179 : vector<32x128xf32>
    %182 = arith.divf %180, %181 : vector<32x128xf32>
    %183 = vector.extract_strided_slice %165 {offsets = [64, 0], sizes = [32, 128], strides = [1, 1]} : vector<96x128xf32> to vector<32x128xf32>
    %184 = vector.extract_strided_slice %166 {offsets = [64, 0], sizes = [32, 128], strides = [1, 1]} : vector<96x128xf32> to vector<32x128xf32>
    %185 = arith.addf %184, %15 : vector<32x128xf32>
    %186 = arith.mulf %174, %185 : vector<32x128xf32>
    %187 = arith.addf %183, %186 : vector<32x128xf32>
    %188 = math.tanh %187 : vector<32x128xf32>
    %189 = arith.subf %133, %188 : vector<32x128xf32>
    %190 = arith.mulf %182, %189 : vector<32x128xf32>
    %191 = arith.addf %188, %190 : vector<32x128xf32>
    %c3 = arith.constant 3 : index
    %c0_47 = arith.constant 0 : index
    %c0_48 = arith.constant 0 : index
    %192 = vector.load %arg1[%c3, %c0_47, %c0_48] : memref<8x16x128xf32, #tpu.memory_space<vmem>>, vector<1x16x128xf32>
    %193 = vector.shape_cast %192 : vector<1x16x128xf32> to vector<16x128xf32>
    %cst_49 = arith.constant dense<0.000000e+00> : vector<96x128xf32>
    %194 = tpu.matmul %0, %193, %cst_49 {dimension_numbers = #tpu.dot_dimension_numbers<[1], [0], [0], [1], [0, 0, 1, 1], [], []>} : vector<96x16xf32>, vector<16x128xf32>, vector<96x128xf32> -> vector<96x128xf32>
    %195 = arith.addf %194, %4 : vector<96x128xf32>
    %cst_50 = arith.constant dense<0.000000e+00> : vector<96x128xf32>
    %196 = tpu.matmul %1, %163, %cst_50 {dimension_numbers = #tpu.dot_dimension_numbers<[1], [0], [0], [1], [0, 0, 1, 1], [], []>} : vector<96x32xf32>, vector<32x128xf32>, vector<96x128xf32> -> vector<96x128xf32>
    %197 = vector.extract_strided_slice %195 {offsets = [0, 0], sizes = [32, 128], strides = [1, 1]} : vector<96x128xf32> to vector<32x128xf32>
    %198 = vector.extract_strided_slice %196 {offsets = [0, 0], sizes = [32, 128], strides = [1, 1]} : vector<96x128xf32> to vector<32x128xf32>
    %199 = arith.addf %197, %198 : vector<32x128xf32>
    %200 = arith.negf %199 : vector<32x128xf32>
    %201 = math.exp %200 : vector<32x128xf32>
    %cst_51 = arith.constant 1.000000e+00 : f32
    %202 = vector.broadcast %cst_51 : f32 to vector<32x128xf32>
    %203 = arith.addf %202, %201 : vector<32x128xf32>
    %204 = arith.divf %202, %203 : vector<32x128xf32>
    %205 = vector.extract_strided_slice %195 {offsets = [32, 0], sizes = [32, 128], strides = [1, 1]} : vector<96x128xf32> to vector<32x128xf32>
    %206 = vector.extract_strided_slice %196 {offsets = [32, 0], sizes = [32, 128], strides = [1, 1]} : vector<96x128xf32> to vector<32x128xf32>
    %207 = arith.addf %205, %206 : vector<32x128xf32>
    %208 = arith.negf %207 : vector<32x128xf32>
    %209 = math.exp %208 : vector<32x128xf32>
    %cst_52 = arith.constant 1.000000e+00 : f32
    %210 = vector.broadcast %cst_52 : f32 to vector<32x128xf32>
    %211 = arith.addf %210, %209 : vector<32x128xf32>
    %212 = arith.divf %210, %211 : vector<32x128xf32>
    %213 = vector.extract_strided_slice %195 {offsets = [64, 0], sizes = [32, 128], strides = [1, 1]} : vector<96x128xf32> to vector<32x128xf32>
    %214 = vector.extract_strided_slice %196 {offsets = [64, 0], sizes = [32, 128], strides = [1, 1]} : vector<96x128xf32> to vector<32x128xf32>
    %215 = arith.addf %214, %7 : vector<32x128xf32>
    %216 = arith.mulf %204, %215 : vector<32x128xf32>
    %217 = arith.addf %213, %216 : vector<32x128xf32>
    %218 = math.tanh %217 : vector<32x128xf32>
    %219 = arith.subf %163, %218 : vector<32x128xf32>
    %220 = arith.mulf %212, %219 : vector<32x128xf32>
    %221 = arith.addf %218, %220 : vector<32x128xf32>
    %cst_53 = arith.constant dense<0.000000e+00> : vector<96x128xf32>
    %222 = tpu.matmul %8, %221, %cst_53 {dimension_numbers = #tpu.dot_dimension_numbers<[1], [0], [0], [1], [0, 0, 1, 1], [], []>} : vector<96x32xf32>, vector<32x128xf32>, vector<96x128xf32> -> vector<96x128xf32>
    %223 = arith.addf %222, %12 : vector<96x128xf32>
    %cst_54 = arith.constant dense<0.000000e+00> : vector<96x128xf32>
    %224 = tpu.matmul %9, %191, %cst_54 {dimension_numbers = #tpu.dot_dimension_numbers<[1], [0], [0], [1], [0, 0, 1, 1], [], []>} : vector<96x32xf32>, vector<32x128xf32>, vector<96x128xf32> -> vector<96x128xf32>
    %225 = vector.extract_strided_slice %223 {offsets = [0, 0], sizes = [32, 128], strides = [1, 1]} : vector<96x128xf32> to vector<32x128xf32>
    %226 = vector.extract_strided_slice %224 {offsets = [0, 0], sizes = [32, 128], strides = [1, 1]} : vector<96x128xf32> to vector<32x128xf32>
    %227 = arith.addf %225, %226 : vector<32x128xf32>
    %228 = arith.negf %227 : vector<32x128xf32>
    %229 = math.exp %228 : vector<32x128xf32>
    %cst_55 = arith.constant 1.000000e+00 : f32
    %230 = vector.broadcast %cst_55 : f32 to vector<32x128xf32>
    %231 = arith.addf %230, %229 : vector<32x128xf32>
    %232 = arith.divf %230, %231 : vector<32x128xf32>
    %233 = vector.extract_strided_slice %223 {offsets = [32, 0], sizes = [32, 128], strides = [1, 1]} : vector<96x128xf32> to vector<32x128xf32>
    %234 = vector.extract_strided_slice %224 {offsets = [32, 0], sizes = [32, 128], strides = [1, 1]} : vector<96x128xf32> to vector<32x128xf32>
    %235 = arith.addf %233, %234 : vector<32x128xf32>
    %236 = arith.negf %235 : vector<32x128xf32>
    %237 = math.exp %236 : vector<32x128xf32>
    %cst_56 = arith.constant 1.000000e+00 : f32
    %238 = vector.broadcast %cst_56 : f32 to vector<32x128xf32>
    %239 = arith.addf %238, %237 : vector<32x128xf32>
    %240 = arith.divf %238, %239 : vector<32x128xf32>
    %241 = vector.extract_strided_slice %223 {offsets = [64, 0], sizes = [32, 128], strides = [1, 1]} : vector<96x128xf32> to vector<32x128xf32>
    %242 = vector.extract_strided_slice %224 {offsets = [64, 0], sizes = [32, 128], strides = [1, 1]} : vector<96x128xf32> to vector<32x128xf32>
    %243 = arith.addf %242, %15 : vector<32x128xf32>
    %244 = arith.mulf %232, %243 : vector<32x128xf32>
    %245 = arith.addf %241, %244 : vector<32x128xf32>
    %246 = math.tanh %245 : vector<32x128xf32>
    %247 = arith.subf %191, %246 : vector<32x128xf32>
    %248 = arith.mulf %240, %247 : vector<32x128xf32>
    %249 = arith.addf %246, %248 : vector<32x128xf32>
    %c4 = arith.constant 4 : index
    %c0_57 = arith.constant 0 : index
    %c0_58 = arith.constant 0 : index
    %250 = vector.load %arg1[%c4, %c0_57, %c0_58] : memref<8x16x128xf32, #tpu.memory_space<vmem>>, vector<1x16x128xf32>
    %251 = vector.shape_cast %250 : vector<1x16x128xf32> to vector<16x128xf32>
    %cst_59 = arith.constant dense<0.000000e+00> : vector<96x128xf32>
    %252 = tpu.matmul %0, %251, %cst_59 {dimension_numbers = #tpu.dot_dimension_numbers<[1], [0], [0], [1], [0, 0, 1, 1], [], []>} : vector<96x16xf32>, vector<16x128xf32>, vector<96x128xf32> -> vector<96x128xf32>
    %253 = arith.addf %252, %4 : vector<96x128xf32>
    %cst_60 = arith.constant dense<0.000000e+00> : vector<96x128xf32>
    %254 = tpu.matmul %1, %221, %cst_60 {dimension_numbers = #tpu.dot_dimension_numbers<[1], [0], [0], [1], [0, 0, 1, 1], [], []>} : vector<96x32xf32>, vector<32x128xf32>, vector<96x128xf32> -> vector<96x128xf32>
    %255 = vector.extract_strided_slice %253 {offsets = [0, 0], sizes = [32, 128], strides = [1, 1]} : vector<96x128xf32> to vector<32x128xf32>
    %256 = vector.extract_strided_slice %254 {offsets = [0, 0], sizes = [32, 128], strides = [1, 1]} : vector<96x128xf32> to vector<32x128xf32>
    %257 = arith.addf %255, %256 : vector<32x128xf32>
    %258 = arith.negf %257 : vector<32x128xf32>
    %259 = math.exp %258 : vector<32x128xf32>
    %cst_61 = arith.constant 1.000000e+00 : f32
    %260 = vector.broadcast %cst_61 : f32 to vector<32x128xf32>
    %261 = arith.addf %260, %259 : vector<32x128xf32>
    %262 = arith.divf %260, %261 : vector<32x128xf32>
    %263 = vector.extract_strided_slice %253 {offsets = [32, 0], sizes = [32, 128], strides = [1, 1]} : vector<96x128xf32> to vector<32x128xf32>
    %264 = vector.extract_strided_slice %254 {offsets = [32, 0], sizes = [32, 128], strides = [1, 1]} : vector<96x128xf32> to vector<32x128xf32>
    %265 = arith.addf %263, %264 : vector<32x128xf32>
    %266 = arith.negf %265 : vector<32x128xf32>
    %267 = math.exp %266 : vector<32x128xf32>
    %cst_62 = arith.constant 1.000000e+00 : f32
    %268 = vector.broadcast %cst_62 : f32 to vector<32x128xf32>
    %269 = arith.addf %268, %267 : vector<32x128xf32>
    %270 = arith.divf %268, %269 : vector<32x128xf32>
    %271 = vector.extract_strided_slice %253 {offsets = [64, 0], sizes = [32, 128], strides = [1, 1]} : vector<96x128xf32> to vector<32x128xf32>
    %272 = vector.extract_strided_slice %254 {offsets = [64, 0], sizes = [32, 128], strides = [1, 1]} : vector<96x128xf32> to vector<32x128xf32>
    %273 = arith.addf %272, %7 : vector<32x128xf32>
    %274 = arith.mulf %262, %273 : vector<32x128xf32>
    %275 = arith.addf %271, %274 : vector<32x128xf32>
    %276 = math.tanh %275 : vector<32x128xf32>
    %277 = arith.subf %221, %276 : vector<32x128xf32>
    %278 = arith.mulf %270, %277 : vector<32x128xf32>
    %279 = arith.addf %276, %278 : vector<32x128xf32>
    %cst_63 = arith.constant dense<0.000000e+00> : vector<96x128xf32>
    %280 = tpu.matmul %8, %279, %cst_63 {dimension_numbers = #tpu.dot_dimension_numbers<[1], [0], [0], [1], [0, 0, 1, 1], [], []>} : vector<96x32xf32>, vector<32x128xf32>, vector<96x128xf32> -> vector<96x128xf32>
    %281 = arith.addf %280, %12 : vector<96x128xf32>
    %cst_64 = arith.constant dense<0.000000e+00> : vector<96x128xf32>
    %282 = tpu.matmul %9, %249, %cst_64 {dimension_numbers = #tpu.dot_dimension_numbers<[1], [0], [0], [1], [0, 0, 1, 1], [], []>} : vector<96x32xf32>, vector<32x128xf32>, vector<96x128xf32> -> vector<96x128xf32>
    %283 = vector.extract_strided_slice %281 {offsets = [0, 0], sizes = [32, 128], strides = [1, 1]} : vector<96x128xf32> to vector<32x128xf32>
    %284 = vector.extract_strided_slice %282 {offsets = [0, 0], sizes = [32, 128], strides = [1, 1]} : vector<96x128xf32> to vector<32x128xf32>
    %285 = arith.addf %283, %284 : vector<32x128xf32>
    %286 = arith.negf %285 : vector<32x128xf32>
    %287 = math.exp %286 : vector<32x128xf32>
    %cst_65 = arith.constant 1.000000e+00 : f32
    %288 = vector.broadcast %cst_65 : f32 to vector<32x128xf32>
    %289 = arith.addf %288, %287 : vector<32x128xf32>
    %290 = arith.divf %288, %289 : vector<32x128xf32>
    %291 = vector.extract_strided_slice %281 {offsets = [32, 0], sizes = [32, 128], strides = [1, 1]} : vector<96x128xf32> to vector<32x128xf32>
    %292 = vector.extract_strided_slice %282 {offsets = [32, 0], sizes = [32, 128], strides = [1, 1]} : vector<96x128xf32> to vector<32x128xf32>
    %293 = arith.addf %291, %292 : vector<32x128xf32>
    %294 = arith.negf %293 : vector<32x128xf32>
    %295 = math.exp %294 : vector<32x128xf32>
    %cst_66 = arith.constant 1.000000e+00 : f32
    %296 = vector.broadcast %cst_66 : f32 to vector<32x128xf32>
    %297 = arith.addf %296, %295 : vector<32x128xf32>
    %298 = arith.divf %296, %297 : vector<32x128xf32>
    %299 = vector.extract_strided_slice %281 {offsets = [64, 0], sizes = [32, 128], strides = [1, 1]} : vector<96x128xf32> to vector<32x128xf32>
    %300 = vector.extract_strided_slice %282 {offsets = [64, 0], sizes = [32, 128], strides = [1, 1]} : vector<96x128xf32> to vector<32x128xf32>
    %301 = arith.addf %300, %15 : vector<32x128xf32>
    %302 = arith.mulf %290, %301 : vector<32x128xf32>
    %303 = arith.addf %299, %302 : vector<32x128xf32>
    %304 = math.tanh %303 : vector<32x128xf32>
    %305 = arith.subf %249, %304 : vector<32x128xf32>
    %306 = arith.mulf %298, %305 : vector<32x128xf32>
    %307 = arith.addf %304, %306 : vector<32x128xf32>
    %c5 = arith.constant 5 : index
    %c0_67 = arith.constant 0 : index
    %c0_68 = arith.constant 0 : index
    %308 = vector.load %arg1[%c5, %c0_67, %c0_68] : memref<8x16x128xf32, #tpu.memory_space<vmem>>, vector<1x16x128xf32>
    %309 = vector.shape_cast %308 : vector<1x16x128xf32> to vector<16x128xf32>
    %cst_69 = arith.constant dense<0.000000e+00> : vector<96x128xf32>
    %310 = tpu.matmul %0, %309, %cst_69 {dimension_numbers = #tpu.dot_dimension_numbers<[1], [0], [0], [1], [0, 0, 1, 1], [], []>} : vector<96x16xf32>, vector<16x128xf32>, vector<96x128xf32> -> vector<96x128xf32>
    %311 = arith.addf %310, %4 : vector<96x128xf32>
    %cst_70 = arith.constant dense<0.000000e+00> : vector<96x128xf32>
    %312 = tpu.matmul %1, %279, %cst_70 {dimension_numbers = #tpu.dot_dimension_numbers<[1], [0], [0], [1], [0, 0, 1, 1], [], []>} : vector<96x32xf32>, vector<32x128xf32>, vector<96x128xf32> -> vector<96x128xf32>
    %313 = vector.extract_strided_slice %311 {offsets = [0, 0], sizes = [32, 128], strides = [1, 1]} : vector<96x128xf32> to vector<32x128xf32>
    %314 = vector.extract_strided_slice %312 {offsets = [0, 0], sizes = [32, 128], strides = [1, 1]} : vector<96x128xf32> to vector<32x128xf32>
    %315 = arith.addf %313, %314 : vector<32x128xf32>
    %316 = arith.negf %315 : vector<32x128xf32>
    %317 = math.exp %316 : vector<32x128xf32>
    %cst_71 = arith.constant 1.000000e+00 : f32
    %318 = vector.broadcast %cst_71 : f32 to vector<32x128xf32>
    %319 = arith.addf %318, %317 : vector<32x128xf32>
    %320 = arith.divf %318, %319 : vector<32x128xf32>
    %321 = vector.extract_strided_slice %311 {offsets = [32, 0], sizes = [32, 128], strides = [1, 1]} : vector<96x128xf32> to vector<32x128xf32>
    %322 = vector.extract_strided_slice %312 {offsets = [32, 0], sizes = [32, 128], strides = [1, 1]} : vector<96x128xf32> to vector<32x128xf32>
    %323 = arith.addf %321, %322 : vector<32x128xf32>
    %324 = arith.negf %323 : vector<32x128xf32>
    %325 = math.exp %324 : vector<32x128xf32>
    %cst_72 = arith.constant 1.000000e+00 : f32
    %326 = vector.broadcast %cst_72 : f32 to vector<32x128xf32>
    %327 = arith.addf %326, %325 : vector<32x128xf32>
    %328 = arith.divf %326, %327 : vector<32x128xf32>
    %329 = vector.extract_strided_slice %311 {offsets = [64, 0], sizes = [32, 128], strides = [1, 1]} : vector<96x128xf32> to vector<32x128xf32>
    %330 = vector.extract_strided_slice %312 {offsets = [64, 0], sizes = [32, 128], strides = [1, 1]} : vector<96x128xf32> to vector<32x128xf32>
    %331 = arith.addf %330, %7 : vector<32x128xf32>
    %332 = arith.mulf %320, %331 : vector<32x128xf32>
    %333 = arith.addf %329, %332 : vector<32x128xf32>
    %334 = math.tanh %333 : vector<32x128xf32>
    %335 = arith.subf %279, %334 : vector<32x128xf32>
    %336 = arith.mulf %328, %335 : vector<32x128xf32>
    %337 = arith.addf %334, %336 : vector<32x128xf32>
    %cst_73 = arith.constant dense<0.000000e+00> : vector<96x128xf32>
    %338 = tpu.matmul %8, %337, %cst_73 {dimension_numbers = #tpu.dot_dimension_numbers<[1], [0], [0], [1], [0, 0, 1, 1], [], []>} : vector<96x32xf32>, vector<32x128xf32>, vector<96x128xf32> -> vector<96x128xf32>
    %339 = arith.addf %338, %12 : vector<96x128xf32>
    %cst_74 = arith.constant dense<0.000000e+00> : vector<96x128xf32>
    %340 = tpu.matmul %9, %307, %cst_74 {dimension_numbers = #tpu.dot_dimension_numbers<[1], [0], [0], [1], [0, 0, 1, 1], [], []>} : vector<96x32xf32>, vector<32x128xf32>, vector<96x128xf32> -> vector<96x128xf32>
    %341 = vector.extract_strided_slice %339 {offsets = [0, 0], sizes = [32, 128], strides = [1, 1]} : vector<96x128xf32> to vector<32x128xf32>
    %342 = vector.extract_strided_slice %340 {offsets = [0, 0], sizes = [32, 128], strides = [1, 1]} : vector<96x128xf32> to vector<32x128xf32>
    %343 = arith.addf %341, %342 : vector<32x128xf32>
    %344 = arith.negf %343 : vector<32x128xf32>
    %345 = math.exp %344 : vector<32x128xf32>
    %cst_75 = arith.constant 1.000000e+00 : f32
    %346 = vector.broadcast %cst_75 : f32 to vector<32x128xf32>
    %347 = arith.addf %346, %345 : vector<32x128xf32>
    %348 = arith.divf %346, %347 : vector<32x128xf32>
    %349 = vector.extract_strided_slice %339 {offsets = [32, 0], sizes = [32, 128], strides = [1, 1]} : vector<96x128xf32> to vector<32x128xf32>
    %350 = vector.extract_strided_slice %340 {offsets = [32, 0], sizes = [32, 128], strides = [1, 1]} : vector<96x128xf32> to vector<32x128xf32>
    %351 = arith.addf %349, %350 : vector<32x128xf32>
    %352 = arith.negf %351 : vector<32x128xf32>
    %353 = math.exp %352 : vector<32x128xf32>
    %cst_76 = arith.constant 1.000000e+00 : f32
    %354 = vector.broadcast %cst_76 : f32 to vector<32x128xf32>
    %355 = arith.addf %354, %353 : vector<32x128xf32>
    %356 = arith.divf %354, %355 : vector<32x128xf32>
    %357 = vector.extract_strided_slice %339 {offsets = [64, 0], sizes = [32, 128], strides = [1, 1]} : vector<96x128xf32> to vector<32x128xf32>
    %358 = vector.extract_strided_slice %340 {offsets = [64, 0], sizes = [32, 128], strides = [1, 1]} : vector<96x128xf32> to vector<32x128xf32>
    %359 = arith.addf %358, %15 : vector<32x128xf32>
    %360 = arith.mulf %348, %359 : vector<32x128xf32>
    %361 = arith.addf %357, %360 : vector<32x128xf32>
    %362 = math.tanh %361 : vector<32x128xf32>
    %363 = arith.subf %307, %362 : vector<32x128xf32>
    %364 = arith.mulf %356, %363 : vector<32x128xf32>
    %365 = arith.addf %362, %364 : vector<32x128xf32>
    %c6 = arith.constant 6 : index
    %c0_77 = arith.constant 0 : index
    %c0_78 = arith.constant 0 : index
    %366 = vector.load %arg1[%c6, %c0_77, %c0_78] : memref<8x16x128xf32, #tpu.memory_space<vmem>>, vector<1x16x128xf32>
    %367 = vector.shape_cast %366 : vector<1x16x128xf32> to vector<16x128xf32>
    %cst_79 = arith.constant dense<0.000000e+00> : vector<96x128xf32>
    %368 = tpu.matmul %0, %367, %cst_79 {dimension_numbers = #tpu.dot_dimension_numbers<[1], [0], [0], [1], [0, 0, 1, 1], [], []>} : vector<96x16xf32>, vector<16x128xf32>, vector<96x128xf32> -> vector<96x128xf32>
    %369 = arith.addf %368, %4 : vector<96x128xf32>
    %cst_80 = arith.constant dense<0.000000e+00> : vector<96x128xf32>
    %370 = tpu.matmul %1, %337, %cst_80 {dimension_numbers = #tpu.dot_dimension_numbers<[1], [0], [0], [1], [0, 0, 1, 1], [], []>} : vector<96x32xf32>, vector<32x128xf32>, vector<96x128xf32> -> vector<96x128xf32>
    %371 = vector.extract_strided_slice %369 {offsets = [0, 0], sizes = [32, 128], strides = [1, 1]} : vector<96x128xf32> to vector<32x128xf32>
    %372 = vector.extract_strided_slice %370 {offsets = [0, 0], sizes = [32, 128], strides = [1, 1]} : vector<96x128xf32> to vector<32x128xf32>
    %373 = arith.addf %371, %372 : vector<32x128xf32>
    %374 = arith.negf %373 : vector<32x128xf32>
    %375 = math.exp %374 : vector<32x128xf32>
    %cst_81 = arith.constant 1.000000e+00 : f32
    %376 = vector.broadcast %cst_81 : f32 to vector<32x128xf32>
    %377 = arith.addf %376, %375 : vector<32x128xf32>
    %378 = arith.divf %376, %377 : vector<32x128xf32>
    %379 = vector.extract_strided_slice %369 {offsets = [32, 0], sizes = [32, 128], strides = [1, 1]} : vector<96x128xf32> to vector<32x128xf32>
    %380 = vector.extract_strided_slice %370 {offsets = [32, 0], sizes = [32, 128], strides = [1, 1]} : vector<96x128xf32> to vector<32x128xf32>
    %381 = arith.addf %379, %380 : vector<32x128xf32>
    %382 = arith.negf %381 : vector<32x128xf32>
    %383 = math.exp %382 : vector<32x128xf32>
    %cst_82 = arith.constant 1.000000e+00 : f32
    %384 = vector.broadcast %cst_82 : f32 to vector<32x128xf32>
    %385 = arith.addf %384, %383 : vector<32x128xf32>
    %386 = arith.divf %384, %385 : vector<32x128xf32>
    %387 = vector.extract_strided_slice %369 {offsets = [64, 0], sizes = [32, 128], strides = [1, 1]} : vector<96x128xf32> to vector<32x128xf32>
    %388 = vector.extract_strided_slice %370 {offsets = [64, 0], sizes = [32, 128], strides = [1, 1]} : vector<96x128xf32> to vector<32x128xf32>
    %389 = arith.addf %388, %7 : vector<32x128xf32>
    %390 = arith.mulf %378, %389 : vector<32x128xf32>
    %391 = arith.addf %387, %390 : vector<32x128xf32>
    %392 = math.tanh %391 : vector<32x128xf32>
    %393 = arith.subf %337, %392 : vector<32x128xf32>
    %394 = arith.mulf %386, %393 : vector<32x128xf32>
    %395 = arith.addf %392, %394 : vector<32x128xf32>
    %cst_83 = arith.constant dense<0.000000e+00> : vector<96x128xf32>
    %396 = tpu.matmul %8, %395, %cst_83 {dimension_numbers = #tpu.dot_dimension_numbers<[1], [0], [0], [1], [0, 0, 1, 1], [], []>} : vector<96x32xf32>, vector<32x128xf32>, vector<96x128xf32> -> vector<96x128xf32>
    %397 = arith.addf %396, %12 : vector<96x128xf32>
    %cst_84 = arith.constant dense<0.000000e+00> : vector<96x128xf32>
    %398 = tpu.matmul %9, %365, %cst_84 {dimension_numbers = #tpu.dot_dimension_numbers<[1], [0], [0], [1], [0, 0, 1, 1], [], []>} : vector<96x32xf32>, vector<32x128xf32>, vector<96x128xf32> -> vector<96x128xf32>
    %399 = vector.extract_strided_slice %397 {offsets = [0, 0], sizes = [32, 128], strides = [1, 1]} : vector<96x128xf32> to vector<32x128xf32>
    %400 = vector.extract_strided_slice %398 {offsets = [0, 0], sizes = [32, 128], strides = [1, 1]} : vector<96x128xf32> to vector<32x128xf32>
    %401 = arith.addf %399, %400 : vector<32x128xf32>
    %402 = arith.negf %401 : vector<32x128xf32>
    %403 = math.exp %402 : vector<32x128xf32>
    %cst_85 = arith.constant 1.000000e+00 : f32
    %404 = vector.broadcast %cst_85 : f32 to vector<32x128xf32>
    %405 = arith.addf %404, %403 : vector<32x128xf32>
    %406 = arith.divf %404, %405 : vector<32x128xf32>
    %407 = vector.extract_strided_slice %397 {offsets = [32, 0], sizes = [32, 128], strides = [1, 1]} : vector<96x128xf32> to vector<32x128xf32>
    %408 = vector.extract_strided_slice %398 {offsets = [32, 0], sizes = [32, 128], strides = [1, 1]} : vector<96x128xf32> to vector<32x128xf32>
    %409 = arith.addf %407, %408 : vector<32x128xf32>
    %410 = arith.negf %409 : vector<32x128xf32>
    %411 = math.exp %410 : vector<32x128xf32>
    %cst_86 = arith.constant 1.000000e+00 : f32
    %412 = vector.broadcast %cst_86 : f32 to vector<32x128xf32>
    %413 = arith.addf %412, %411 : vector<32x128xf32>
    %414 = arith.divf %412, %413 : vector<32x128xf32>
    %415 = vector.extract_strided_slice %397 {offsets = [64, 0], sizes = [32, 128], strides = [1, 1]} : vector<96x128xf32> to vector<32x128xf32>
    %416 = vector.extract_strided_slice %398 {offsets = [64, 0], sizes = [32, 128], strides = [1, 1]} : vector<96x128xf32> to vector<32x128xf32>
    %417 = arith.addf %416, %15 : vector<32x128xf32>
    %418 = arith.mulf %406, %417 : vector<32x128xf32>
    %419 = arith.addf %415, %418 : vector<32x128xf32>
    %420 = math.tanh %419 : vector<32x128xf32>
    %421 = arith.subf %365, %420 : vector<32x128xf32>
    %422 = arith.mulf %414, %421 : vector<32x128xf32>
    %423 = arith.addf %420, %422 : vector<32x128xf32>
    %c7 = arith.constant 7 : index
    %c0_87 = arith.constant 0 : index
    %c0_88 = arith.constant 0 : index
    %424 = vector.load %arg1[%c7, %c0_87, %c0_88] : memref<8x16x128xf32, #tpu.memory_space<vmem>>, vector<1x16x128xf32>
    %425 = vector.shape_cast %424 : vector<1x16x128xf32> to vector<16x128xf32>
    %cst_89 = arith.constant dense<0.000000e+00> : vector<96x128xf32>
    %426 = tpu.matmul %0, %425, %cst_89 {dimension_numbers = #tpu.dot_dimension_numbers<[1], [0], [0], [1], [0, 0, 1, 1], [], []>} : vector<96x16xf32>, vector<16x128xf32>, vector<96x128xf32> -> vector<96x128xf32>
    %427 = arith.addf %426, %4 : vector<96x128xf32>
    %cst_90 = arith.constant dense<0.000000e+00> : vector<96x128xf32>
    %428 = tpu.matmul %1, %395, %cst_90 {dimension_numbers = #tpu.dot_dimension_numbers<[1], [0], [0], [1], [0, 0, 1, 1], [], []>} : vector<96x32xf32>, vector<32x128xf32>, vector<96x128xf32> -> vector<96x128xf32>
    %429 = vector.extract_strided_slice %427 {offsets = [0, 0], sizes = [32, 128], strides = [1, 1]} : vector<96x128xf32> to vector<32x128xf32>
    %430 = vector.extract_strided_slice %428 {offsets = [0, 0], sizes = [32, 128], strides = [1, 1]} : vector<96x128xf32> to vector<32x128xf32>
    %431 = arith.addf %429, %430 : vector<32x128xf32>
    %432 = arith.negf %431 : vector<32x128xf32>
    %433 = math.exp %432 : vector<32x128xf32>
    %cst_91 = arith.constant 1.000000e+00 : f32
    %434 = vector.broadcast %cst_91 : f32 to vector<32x128xf32>
    %435 = arith.addf %434, %433 : vector<32x128xf32>
    %436 = arith.divf %434, %435 : vector<32x128xf32>
    %437 = vector.extract_strided_slice %427 {offsets = [32, 0], sizes = [32, 128], strides = [1, 1]} : vector<96x128xf32> to vector<32x128xf32>
    %438 = vector.extract_strided_slice %428 {offsets = [32, 0], sizes = [32, 128], strides = [1, 1]} : vector<96x128xf32> to vector<32x128xf32>
    %439 = arith.addf %437, %438 : vector<32x128xf32>
    %440 = arith.negf %439 : vector<32x128xf32>
    %441 = math.exp %440 : vector<32x128xf32>
    %cst_92 = arith.constant 1.000000e+00 : f32
    %442 = vector.broadcast %cst_92 : f32 to vector<32x128xf32>
    %443 = arith.addf %442, %441 : vector<32x128xf32>
    %444 = arith.divf %442, %443 : vector<32x128xf32>
    %445 = vector.extract_strided_slice %427 {offsets = [64, 0], sizes = [32, 128], strides = [1, 1]} : vector<96x128xf32> to vector<32x128xf32>
    %446 = vector.extract_strided_slice %428 {offsets = [64, 0], sizes = [32, 128], strides = [1, 1]} : vector<96x128xf32> to vector<32x128xf32>
    %447 = arith.addf %446, %7 : vector<32x128xf32>
    %448 = arith.mulf %436, %447 : vector<32x128xf32>
    %449 = arith.addf %445, %448 : vector<32x128xf32>
    %450 = math.tanh %449 : vector<32x128xf32>
    %451 = arith.subf %395, %450 : vector<32x128xf32>
    %452 = arith.mulf %444, %451 : vector<32x128xf32>
    %453 = arith.addf %450, %452 : vector<32x128xf32>
    %cst_93 = arith.constant dense<0.000000e+00> : vector<96x128xf32>
    %454 = tpu.matmul %8, %453, %cst_93 {dimension_numbers = #tpu.dot_dimension_numbers<[1], [0], [0], [1], [0, 0, 1, 1], [], []>} : vector<96x32xf32>, vector<32x128xf32>, vector<96x128xf32> -> vector<96x128xf32>
    %455 = arith.addf %454, %12 : vector<96x128xf32>
    %cst_94 = arith.constant dense<0.000000e+00> : vector<96x128xf32>
    %456 = tpu.matmul %9, %423, %cst_94 {dimension_numbers = #tpu.dot_dimension_numbers<[1], [0], [0], [1], [0, 0, 1, 1], [], []>} : vector<96x32xf32>, vector<32x128xf32>, vector<96x128xf32> -> vector<96x128xf32>
    %457 = vector.extract_strided_slice %455 {offsets = [0, 0], sizes = [32, 128], strides = [1, 1]} : vector<96x128xf32> to vector<32x128xf32>
    %458 = vector.extract_strided_slice %456 {offsets = [0, 0], sizes = [32, 128], strides = [1, 1]} : vector<96x128xf32> to vector<32x128xf32>
    %459 = arith.addf %457, %458 : vector<32x128xf32>
    %460 = arith.negf %459 : vector<32x128xf32>
    %461 = math.exp %460 : vector<32x128xf32>
    %cst_95 = arith.constant 1.000000e+00 : f32
    %462 = vector.broadcast %cst_95 : f32 to vector<32x128xf32>
    %463 = arith.addf %462, %461 : vector<32x128xf32>
    %464 = arith.divf %462, %463 : vector<32x128xf32>
    %465 = vector.extract_strided_slice %455 {offsets = [32, 0], sizes = [32, 128], strides = [1, 1]} : vector<96x128xf32> to vector<32x128xf32>
    %466 = vector.extract_strided_slice %456 {offsets = [32, 0], sizes = [32, 128], strides = [1, 1]} : vector<96x128xf32> to vector<32x128xf32>
    %467 = arith.addf %465, %466 : vector<32x128xf32>
    %468 = arith.negf %467 : vector<32x128xf32>
    %469 = math.exp %468 : vector<32x128xf32>
    %cst_96 = arith.constant 1.000000e+00 : f32
    %470 = vector.broadcast %cst_96 : f32 to vector<32x128xf32>
    %471 = arith.addf %470, %469 : vector<32x128xf32>
    %472 = arith.divf %470, %471 : vector<32x128xf32>
    %473 = vector.extract_strided_slice %455 {offsets = [64, 0], sizes = [32, 128], strides = [1, 1]} : vector<96x128xf32> to vector<32x128xf32>
    %474 = vector.extract_strided_slice %456 {offsets = [64, 0], sizes = [32, 128], strides = [1, 1]} : vector<96x128xf32> to vector<32x128xf32>
    %475 = arith.addf %474, %15 : vector<32x128xf32>
    %476 = arith.mulf %464, %475 : vector<32x128xf32>
    %477 = arith.addf %473, %476 : vector<32x128xf32>
    %478 = math.tanh %477 : vector<32x128xf32>
    %479 = arith.subf %423, %478 : vector<32x128xf32>
    %480 = arith.mulf %472, %479 : vector<32x128xf32>
    %481 = arith.addf %478, %480 : vector<32x128xf32>
    %c0_97 = arith.constant 0 : index
    %c0_98 = arith.constant 0 : index
    %482 = vector.load %arg10[%c0_97, %c0_98] : memref<32x128xf32, #tpu.memory_space<vmem>>, vector<32x128xf32>
    tpu.vector_store %arg10[%c0_97, %c0_98], %481 {strides = array<i32>} : memref<32x128xf32, #tpu.memory_space<vmem>>, vector<32x128xf32>,
    return
  }
  func.func @transform_0(%arg0: i32) -> (i32, i32, i32) {
    %c0_i32 = arith.constant 0 : i32
    %c0_i32_0 = arith.constant 0 : i32
    %c0_i32_1 = arith.constant 0 : i32
    return %c0_i32, %c0_i32_0, %arg0 : i32, i32, i32
  }
  func.func @transform_1(%arg0: i32) -> (i32, i32) {
    %c0_i32 = arith.constant 0 : i32
    %c0_i32_0 = arith.constant 0 : i32
    %c0_i32_1 = arith.constant 0 : i32
    return %c0_i32, %c0_i32_0 : i32, i32
  }
  func.func @transform_2(%arg0: i32) -> (i32, i32) {
    %c0_i32 = arith.constant 0 : i32
    %c0_i32_0 = arith.constant 0 : i32
    %c0_i32_1 = arith.constant 0 : i32
    return %c0_i32, %c0_i32_0 : i32, i32
  }
  func.func @transform_3(%arg0: i32) -> (i32, i32) {
    %c0_i32 = arith.constant 0 : i32
    %c0_i32_0 = arith.constant 0 : i32
    %c0_i32_1 = arith.constant 0 : i32
    return %c0_i32, %c0_i32_0 : i32, i32
  }
  func.func @transform_4(%arg0: i32) -> (i32, i32) {
    %c0_i32 = arith.constant 0 : i32
    %c0_i32_0 = arith.constant 0 : i32
    %c0_i32_1 = arith.constant 0 : i32
    return %c0_i32, %c0_i32_0 : i32, i32
  }
  func.func @transform_5(%arg0: i32) -> (i32, i32) {
    %c0_i32 = arith.constant 0 : i32
    %c0_i32_0 = arith.constant 0 : i32
    %c0_i32_1 = arith.constant 0 : i32
    return %c0_i32, %c0_i32_0 : i32, i32
  }
  func.func @transform_6(%arg0: i32) -> (i32, i32) {
    %c0_i32 = arith.constant 0 : i32
    %c0_i32_0 = arith.constant 0 : i32
    %c0_i32_1 = arith.constant 0 : i32
    return %c0_i32, %c0_i32_0 : i32, i32
  }
  func.func @transform_7(%arg0: i32) -> (i32, i32) {
    %c0_i32 = arith.constant 0 : i32
    %c0_i32_0 = arith.constant 0 : i32
    %c0_i32_1 = arith.constant 0 : i32
    return %c0_i32, %c0_i32_0 : i32, i32
  }
  func.func @transform_8(%arg0: i32) -> (i32, i32) {
    %c0_i32 = arith.constant 0 : i32
    %c0_i32_0 = arith.constant 0 : i32
    %c0_i32_1 = arith.constant 0 : i32
    return %c0_i32, %c0_i32_0 : i32, i32
  }
  func.func @transform_9(%arg0: i32) -> (i32, i32) {
    %c0_i32 = arith.constant 0 : i32
    %c0_i32_0 = arith.constant 0 : i32
    return %c0_i32, %arg0 : i32, i32
  }
}

</mosaic_0001>

<llo_original>
// kernel: tpu_custom_call.1
$region0: #{tpu_custom_call.1}
  #allocation0 [shape = 'u32[]', space=smem, size = 0x4, offset = 0x4, fixed_abs, tag = 'smem constant byte address 0x4 - core index']
  #allocation1 [shape = 'u32[72,128]{1,0:T(1,128)}', space=vmem, size = 0x9000, scoped, tag = 'internal scratch']
  %s0 = inlined_call_operand.vmem [shape: f32[8,16,128], index: 0, kind: input, shape index: {}]
  %s1 = inlined_call_operand.vmem [shape: f32[96,16], index: 1, kind: input, shape index: {}]
  %s2 = inlined_call_operand.vmem [shape: f32[96,32], index: 2, kind: input, shape index: {}]
  %s3 = inlined_call_operand.vmem [shape: f32[96,1], index: 3, kind: input, shape index: {}]
  %s4 = inlined_call_operand.vmem [shape: f32[32,1], index: 4, kind: input, shape index: {}]
  %s5 = inlined_call_operand.vmem [shape: f32[96,32], index: 5, kind: input, shape index: {}]
  %s6 = inlined_call_operand.vmem [shape: f32[96,32], index: 6, kind: input, shape index: {}]
  %s7 = inlined_call_operand.vmem [shape: f32[96,1], index: 7, kind: input, shape index: {}]
  %s8 = inlined_call_operand.vmem [shape: f32[32,1], index: 8, kind: input, shape index: {}]
  %s9 = inlined_call_operand.hbm [shape: f32[32,128], index: 9, kind: output, shape index: {}]
  %s10 = sld [smem:[#allocation0]]
  $region46: #{tpu_custom_call.1} parent=0
    _
  %s12 = ssub.s32 1, %s10
  %s13 = scalar_select 0, %s12, %s10
  $region1: #{tpu_custom_call.1} parent=0
    #allocation2 [shape = 'u8[16384]{0}', space=vmem, size = 0x4000, scoped, tag = 'output window, operand 0, single buffered']
    #allocation3 [shape = 's32[1]{0}', space=sflag, size = 0x4, scoped, tag = 'scoped memory for tpu_custom_call.1']
    %14 = vsyncpa [#allocation3], 0
    // Predicated region
    $region2: #{tpu_custom_call.1} parent=1 // pred_check
      _
    $region3: #{tpu_custom_call.1} parent=1 // pred_check_branch
      %16 = sbr.rel (0) target = $region5
    $region4: #{tpu_custom_call.1} parent=1 // pred_region
      _
    $region5: #{tpu_custom_call.1} parent=1 // pred_fallthru
      _
    // Predicated region
    $region6: #{tpu_custom_call.1} parent=1 // pred_check
      _
    $region7: #{tpu_custom_call.1} parent=1 // pred_check_branch
      %18 = sbr.rel (0) target = $region9
    $region8: #{tpu_custom_call.1} parent=1 // pred_region
      _
    $region9: #{tpu_custom_call.1} parent=1 // pred_fallthru
      _
    // Predicated region
    $region10: #{tpu_custom_call.1} parent=1 // pred_check
      _
    $region11: #{tpu_custom_call.1} parent=1 // pred_check_branch
      %20 = sbr.rel (0) target = $region13
    $region12: #{tpu_custom_call.1} parent=1 // pred_region
      _
    $region13: #{tpu_custom_call.1} parent=1 // pred_fallthru
      _
    // Predicated region
    $region14: #{tpu_custom_call.1} parent=1 // pred_check
      _
    $region15: #{tpu_custom_call.1} parent=1 // pred_check_branch
      %22 = sbr.rel (0) target = $region17
    $region16: #{tpu_custom_call.1} parent=1 // pred_region
      _
    $region17: #{tpu_custom_call.1} parent=1 // pred_fallthru
      _
    // Predicated region
    $region18: #{tpu_custom_call.1} parent=1 // pred_check
      _
    $region19: #{tpu_custom_call.1} parent=1 // pred_check_branch
      %24 = sbr.rel (0) target = $region21
    $region20: #{tpu_custom_call.1} parent=1 // pred_region
      _
    $region21: #{tpu_custom_call.1} parent=1 // pred_fallthru
      _
    // Predicated region
    $region22: #{tpu_custom_call.1} parent=1 // pred_check
      _
    $region23: #{tpu_custom_call.1} parent=1 // pred_check_branch
      %26 = sbr.rel (0) target = $region25
    $region24: #{tpu_custom_call.1} parent=1 // pred_region
      _
    $region25: #{tpu_custom_call.1} parent=1 // pred_fallthru
      _
    // Predicated region
    $region26: #{tpu_custom_call.1} parent=1 // pred_check
      _
    $region27: #{tpu_custom_call.1} parent=1 // pred_check_branch
      %28 = sbr.rel (0) target = $region29
    $region28: #{tpu_custom_call.1} parent=1 // pred_region
      _
    $region29: #{tpu_custom_call.1} parent=1 // pred_fallthru
      _
    // Predicated region
    $region30: #{tpu_custom_call.1} parent=1 // pred_check
      _
    $region31: #{tpu_custom_call.1} parent=1 // pred_check_branch
      %30 = sbr.rel (0) target = $region33
    $region32: #{tpu_custom_call.1} parent=1 // pred_region
      _
    $region33: #{tpu_custom_call.1} parent=1 // pred_fallthru
      _
    // Predicated region
    $region34: #{tpu_custom_call.1} parent=1 // pred_check
      _
    $region35: #{tpu_custom_call.1} parent=1 // pred_check_branch
      %32 = sbr.rel (0) target = $region37
    $region36: #{tpu_custom_call.1} parent=1 // pred_region
      _
    $region37: #{tpu_custom_call.1} parent=1 // pred_fallthru
      _
    %v33 = vld [vmem:[%s1] sm:$0xff]
    %v34 = vld [vmem:[%s1 + $0x8] sm:$0xff]
    %v35 = vld [vmem:[%s1 + $0x10] sm:$0xff]
    %v36 = vld [vmem:[%s1 + $0x18] sm:$0xff]
    %v37 = vld [vmem:[%s1 + $0x20] sm:$0xff]
    %v38 = vld [vmem:[%s1 + $0x28] sm:$0xff]
    %v39 = vld [vmem:[%s1 + $0x30] sm:$0xff]
    %v40 = vld [vmem:[%s1 + $0x38] sm:$0xff]
    %v41 = vld [vmem:[%s1 + $0x40] sm:$0xff]
    %v42 = vld [vmem:[%s1 + $0x48] sm:$0xff]
    %v43 = vld [vmem:[%s1 + $0x50] sm:$0xff]
    %v44 = vld [vmem:[%s1 + $0x58] sm:$0xff]
    %v45 = vld [vmem:[%s2] sm:$0xff]
    %v46 = vld [vmem:[%s2 + $0x8] sm:$0xff]
    %v47 = vld [vmem:[%s2 + $0x10] sm:$0xff]
    %v48 = vld [vmem:[%s2 + $0x18] sm:$0xff]
    %v49 = vld [vmem:[%s2 + $0x20] sm:$0xff]
    %v50 = vld [vmem:[%s2 + $0x28] sm:$0xff]
    %v51 = vld [vmem:[%s2 + $0x30] sm:$0xff]
    %v52 = vld [vmem:[%s2 + $0x38] sm:$0xff]
    %v53 = vld [vmem:[%s2 + $0x40] sm:$0xff]
    %v54 = vld [vmem:[%s2 + $0x48] sm:$0xff]
    %v55 = vld [vmem:[%s2 + $0x50] sm:$0xff]
    %v56 = vld [vmem:[%s2 + $0x58] sm:$0xff]
    %v57 = vld [vmem:[%s3] sm:$0xff]
    %v58 = vld [vmem:[%s3 + $0x8] sm:$0xff]
    %v59 = vld [vmem:[%s3 + $0x10] sm:$0xff]
    %v60 = vld [vmem:[%s3 + $0x18] sm:$0xff]
    %v61 = vld [vmem:[%s3 + $0x20] sm:$0xff]
    %v62 = vld [vmem:[%s3 + $0x28] sm:$0xff]
    %v63 = vld [vmem:[%s3 + $0x30] sm:$0xff]
    %v64 = vld [vmem:[%s3 + $0x38] sm:$0xff]
    %v65 = vld [vmem:[%s3 + $0x40] sm:$0xff]
    %v66 = vld [vmem:[%s3 + $0x48] sm:$0xff]
    %v67 = vld [vmem:[%s3 + $0x50] sm:$0xff]
    %v68 = vld [vmem:[%s3 + $0x58] sm:$0xff]
    %70 = vset.pattern.permute.xlu0 0
    %71 = vperm.xlu0 %70, %v57
    %v72 = vpop.permute.xlu0 %71
    %75 = vset.pattern.permute.xlu0 0
    %76 = vperm.xlu0 %75, %v58
    %v77 = vpop.permute.xlu0 %76
    %80 = vset.pattern.permute.xlu0 0
    %81 = vperm.xlu0 %80, %v59
    %v82 = vpop.permute.xlu0 %81
    %85 = vset.pattern.permute.xlu0 0
    %86 = vperm.xlu0 %85, %v60
    %v87 = vpop.permute.xlu0 %86
    %90 = vset.pattern.permute.xlu0 0
    %91 = vperm.xlu0 %90, %v61
    %v92 = vpop.permute.xlu0 %91
    %95 = vset.pattern.permute.xlu0 0
    %96 = vperm.xlu0 %95, %v62
    %v97 = vpop.permute.xlu0 %96
    %100 = vset.pattern.permute.xlu0 0
    %101 = vperm.xlu0 %100, %v63
    %v102 = vpop.permute.xlu0 %101
    %105 = vset.pattern.permute.xlu0 0
    %106 = vperm.xlu0 %105, %v64
    %v107 = vpop.permute.xlu0 %106
    %110 = vset.pattern.permute.xlu0 0
    %111 = vperm.xlu0 %110, %v65
    %v112 = vpop.permute.xlu0 %111
    %115 = vset.pattern.permute.xlu0 0
    %116 = vperm.xlu0 %115, %v66
    %v117 = vpop.permute.xlu0 %116
    %120 = vset.pattern.permute.xlu0 0
    %121 = vperm.xlu0 %120, %v67
    %v122 = vpop.permute.xlu0 %121
    %125 = vset.pattern.permute.xlu0 0
    %126 = vperm.xlu0 %125, %v68
    %v127 = vpop.permute.xlu0 %126
    %v129 = vld [vmem:[%s4] sm:$0xff]
    %v130 = vld [vmem:[%s4 + $0x8] sm:$0xff]
    %v131 = vld [vmem:[%s4 + $0x10] sm:$0xff]
    %v132 = vld [vmem:[%s4 + $0x18] sm:$0xff]
    %134 = vset.pattern.permute.xlu0 0
    %135 = vperm.xlu0 %134, %v129
    %v136 = vpop.permute.xlu0 %135
    %139 = vset.pattern.permute.xlu0 0
    %140 = vperm.xlu0 %139, %v130
    %v141 = vpop.permute.xlu0 %140
    %144 = vset.pattern.permute.xlu0 0
    %145 = vperm.xlu0 %144, %v131
    %v146 = vpop.permute.xlu0 %145
    %149 = vset.pattern.permute.xlu0 0
    %150 = vperm.xlu0 %149, %v132
    %v151 = vpop.permute.xlu0 %150
    %v153 = vld [vmem:[%s5] sm:$0xff]
    %v154 = vld [vmem:[%s5 + $0x8] sm:$0xff]
    %v155 = vld [vmem:[%s5 + $0x10] sm:$0xff]
    %v156 = vld [vmem:[%s5 + $0x18] sm:$0xff]
    %v157 = vld [vmem:[%s5 + $0x20] sm:$0xff]
    %v158 = vld [vmem:[%s5 + $0x28] sm:$0xff]
    %v159 = vld [vmem:[%s5 + $0x30] sm:$0xff]
    %v160 = vld [vmem:[%s5 + $0x38] sm:$0xff]
    %v161 = vld [vmem:[%s5 + $0x40] sm:$0xff]
    %v162 = vld [vmem:[%s5 + $0x48] sm:$0xff]
    %v163 = vld [vmem:[%s5 + $0x50] sm:$0xff]
    %v164 = vld [vmem:[%s5 + $0x58] sm:$0xff]
    %v165 = vld [vmem:[%s6] sm:$0xff]
    %v166 = vld [vmem:[%s6 + $0x8] sm:$0xff]
    %v167 = vld [vmem:[%s6 + $0x10] sm:$0xff]
    %v168 = vld [vmem:[%s6 + $0x18] sm:$0xff]
    %v169 = vld [vmem:[%s6 + $0x20] sm:$0xff]
    %v170 = vld [vmem:[%s6 + $0x28] sm:$0xff]
    %v171 = vld [vmem:[%s6 + $0x30] sm:$0xff]
    %v172 = vld [vmem:[%s6 + $0x38] sm:$0xff]
    %v173 = vld [vmem:[%s6 + $0x40] sm:$0xff]
    %v174 = vld [vmem:[%s6 + $0x48] sm:$0xff]
    %v175 = vld [vmem:[%s6 + $0x50] sm:$0xff]
    %v176 = vld [vmem:[%s6 + $0x58] sm:$0xff]
    %v177 = vld [vmem:[%s7] sm:$0xff]
    %v178 = vld [vmem:[%s7 + $0x8] sm:$0xff]
    %v179 = vld [vmem:[%s7 + $0x10] sm:$0xff]
    %v180 = vld [vmem:[%s7 + $0x18] sm:$0xff]
    %v181 = vld [vmem:[%s7 + $0x20] sm:$0xff]
    %v182 = vld [vmem:[%s7 + $0x28] sm:$0xff]
    %v183 = vld [vmem:[%s7 + $0x30] sm:$0xff]
    %v184 = vld [vmem:[%s7 + $0x38] sm:$0xff]
    %v185 = vld [vmem:[%s7 + $0x40] sm:$0xff]
    %v186 = vld [vmem:[%s7 + $0x48] sm:$0xff]
    %v187 = vld [vmem:[%s7 + $0x50] sm:$0xff]
    %v188 = vld [vmem:[%s7 + $0x58] sm:$0xff]
    %190 = vset.pattern.permute.xlu0 0
    %191 = vperm.xlu0 %190, %v177
    %v192 = vpop.permute.xlu0 %191
    %195 = vset.pattern.permute.xlu0 0
    %196 = vperm.xlu0 %195, %v178
    %v197 = vpop.permute.xlu0 %196
    %200 = vset.pattern.permute.xlu0 0
    %201 = vperm.xlu0 %200, %v179
    %v202 = vpop.permute.xlu0 %201
    %205 = vset.pattern.permute.xlu0 0
    %206 = vperm.xlu0 %205, %v180
    %v207 = vpop.permute.xlu0 %206
    %210 = vset.pattern.permute.xlu0 0
    %211 = vperm.xlu0 %210, %v181
    %v212 = vpop.permute.xlu0 %211
    %215 = vset.pattern.permute.xlu0 0
    %216 = vperm.xlu0 %215, %v182
    %v217 = vpop.permute.xlu0 %216
    %220 = vset.pattern.permute.xlu0 0
    %221 = vperm.xlu0 %220, %v183
    %v222 = vpop.permute.xlu0 %221
    %225 = vset.pattern.permute.xlu0 0
    %226 = vperm.xlu0 %225, %v184
    %v227 = vpop.permute.xlu0 %226
    %230 = vset.pattern.permute.xlu0 0
    %231 = vperm.xlu0 %230, %v185
    %v232 = vpop.permute.xlu0 %231
    %235 = vset.pattern.permute.xlu0 0
    %236 = vperm.xlu0 %235, %v186
    %v237 = vpop.permute.xlu0 %236
    %240 = vset.pattern.permute.xlu0 0
    %241 = vperm.xlu0 %240, %v187
    %v242 = vpop.permute.xlu0 %241
    %245 = vset.pattern.permute.xlu0 0
    %246 = vperm.xlu0 %245, %v188
    %v247 = vpop.permute.xlu0 %246
    %v249 = vld [vmem:[%s8] sm:$0xff]
    %v250 = vld [vmem:[%s8 + $0x8] sm:$0xff]
    %v251 = vld [vmem:[%s8 + $0x10] sm:$0xff]
    %v252 = vld [vmem:[%s8 + $0x18] sm:$0xff]
    %254 = vset.pattern.permute.xlu0 0
    %255 = vperm.xlu0 %254, %v249
    %v256 = vpop.permute.xlu0 %255
    %259 = vset.pattern.permute.xlu0 0
    %260 = vperm.xlu0 %259, %v250
    %v261 = vpop.permute.xlu0 %260
    %264 = vset.pattern.permute.xlu0 0
    %265 = vperm.xlu0 %264, %v251
    %v266 = vpop.permute.xlu0 %265
    %269 = vset.pattern.permute.xlu0 0
    %270 = vperm.xlu0 %269, %v252
    %v271 = vpop.permute.xlu0 %270
    %v273 = vld [vmem:[%s0] sm:$0xff]
    %v274 = vld [vmem:[%s0 + $0x8] sm:$0xff]
    %vm275 = vcmask 130048
    %v277 = vsel %vm275, %v33, 0
    %v280 = vsel %vm275, %v34, 0
    %v283 = vsel %vm275, %v35, 0
    %v286 = vsel %vm275, %v36, 0
    %v289 = vsel %vm275, %v37, 0
    %v292 = vsel %vm275, %v38, 0
    %v295 = vsel %vm275, %v39, 0
    %v298 = vsel %vm275, %v40, 0
    %v301 = vsel %vm275, %v41, 0
    %v304 = vsel %vm275, %v42, 0
    %v307 = vsel %vm275, %v43, 0
    %v310 = vsel %vm275, %v44, 0
    %312 = vmatpush.msra.mxu0 0.0
    %313 = vmatpush.msra.mxu0 0.0
    %314 = vmatpush.msra.mxu0 0.0
    %315 = vmatpush.msra.mxu0 0.0
    %316 = vmatpush.msra.mxu0 0.0
    %317 = vmatpush.msra.mxu0 0.0
    %318 = vmatpush.msra.mxu0 0.0
    %319 = vmatpush.msra.mxu0 0.0
    %320 = vmatpush.msra.mxu0 0.0
    %321 = vmatpush.msra.mxu0 0.0
    %322 = vmatpush.msra.mxu0 0.0
    %323 = vmatpush.msra.mxu0 0.0
    %324 = vmatpush.msra.mxu0 0.0
    %325 = vmatpush.msra.mxu0 0.0
    %326 = vmatpush.msra.mxu0 %v274
    %327 = vmatpush.msra.mxu0 %v273
    %328 = vmatmul.f32.gmra.mxu0 %v277
    %v329 = vpop.f32.mrf.mxu0
    %v330 = vadd.f32 %v72, %v329
    %331 = vmatmul.f32.gmra.mxu0 %v280
    %v332 = vpop.f32.mrf.mxu0
    %v333 = vadd.f32 %v77, %v332
    %334 = vmatmul.f32.gmra.mxu0 %v283
    %v335 = vpop.f32.mrf.mxu0
    %v336 = vadd.f32 %v82, %v335
    %337 = vmatmul.f32.gmra.mxu0 %v286
    %v338 = vpop.f32.mrf.mxu0
    %v339 = vadd.f32 %v87, %v338
    %340 = vmatmul.f32.gmra.mxu0 %v289
    %v341 = vpop.f32.mrf.mxu0
    %v342 = vadd.f32 %v92, %v341
    %343 = vmatmul.f32.gmra.mxu0 %v292
    %v344 = vpop.f32.mrf.mxu0
    %v345 = vadd.f32 %v97, %v344
    %346 = vmatmul.f32.gmra.mxu0 %v295
    %v347 = vpop.f32.mrf.mxu0
    %v348 = vadd.f32 %v102, %v347
    %349 = vmatmul.f32.gmra.mxu0 %v298
    %v350 = vpop.f32.mrf.mxu0
    %v351 = vadd.f32 %v107, %v350
    %352 = vmatmul.f32.gmra.mxu0 %v301
    %v353 = vpop.f32.mrf.mxu0
    %v354 = vadd.f32 %v112, %v353
    %355 = vmatmul.f32.gmra.mxu0 %v304
    %v356 = vpop.f32.mrf.mxu0
    %v357 = vadd.f32 %v117, %v356
    %358 = vmatmul.f32.gmra.mxu0 %v307
    %v359 = vpop.f32.mrf.mxu0
    %v360 = vadd.f32 %v122, %v359
    %361 = vmatmul.f32.gmra.mxu0 %v310
    %v362 = vpop.f32.mrf.mxu0
    %v363 = vadd.f32 %v127, %v362
    %364 = vdwg.mxu0
    %vm365 = vcmask 261120
    %v367 = vsel %vm365, %v45, 0
    %v370 = vsel %vm365, %v46, 0
    %v373 = vsel %vm365, %v47, 0
    %v376 = vsel %vm365, %v48, 0
    %v379 = vsel %vm365, %v49, 0
    %v382 = vsel %vm365, %v50, 0
    %v385 = vsel %vm365, %v51, 0
    %v388 = vsel %vm365, %v52, 0
    %v391 = vsel %vm365, %v53, 0
    %v394 = vsel %vm365, %v54, 0
    %v397 = vsel %vm365, %v55, 0
    %v400 = vsel %vm365, %v56, 0
    %402 = vmatpush.msra.mxu0 0.0
    %403 = vmatpush.msra.mxu0 0.0
    %404 = vmatpush.msra.mxu0 0.0
    %405 = vmatpush.msra.mxu0 0.0
    %406 = vmatpush.msra.mxu0 0.0
    %407 = vmatpush.msra.mxu0 0.0
    %408 = vmatpush.msra.mxu0 0.0
    %409 = vmatpush.msra.mxu0 0.0
    %410 = vmatpush.msra.mxu0 0.0
    %411 = vmatpush.msra.mxu0 0.0
    %412 = vmatpush.msra.mxu0 0.0
    %413 = vmatpush.msra.mxu0 0.0
    %414 = vmatpush.msra.mxu0 0.0
    %415 = vmatpush.msra.mxu0 0.0
    %416 = vmatpush.msra.mxu0 0.0
    %417 = vmatpush.msra.mxu0 0.0
    %418 = vmatmul.f32.gmra.mxu0 %v367
    %v419 = vpop.f32.mrf.mxu0
    %v420 = vadd.f32 0.0, %v419
    %421 = vmatmul.f32.gmra.mxu0 %v370
    %v422 = vpop.f32.mrf.mxu0
    %v423 = vadd.f32 0.0, %v422
    %424 = vmatmul.f32.gmra.mxu0 %v373
    %v425 = vpop.f32.mrf.mxu0
    %v426 = vadd.f32 0.0, %v425
    %427 = vmatmul.f32.gmra.mxu0 %v376
    %v428 = vpop.f32.mrf.mxu0
    %v429 = vadd.f32 0.0, %v428
    %430 = vmatmul.f32.gmra.mxu0 %v379
    %v431 = vpop.f32.mrf.mxu0
    %v432 = vadd.f32 0.0, %v431
    %433 = vmatmul.f32.gmra.mxu0 %v382
    %v434 = vpop.f32.mrf.mxu0
    %v435 = vadd.f32 0.0, %v434
    %436 = vmatmul.f32.gmra.mxu0 %v385
    %v437 = vpop.f32.mrf.mxu0
    %v438 = vadd.f32 0.0, %v437
    %439 = vmatmul.f32.gmra.mxu0 %v388
    %v440 = vpop.f32.mrf.mxu0
    %v441 = vadd.f32 0.0, %v440
    %442 = vmatmul.f32.gmra.mxu0 %v391
    %v443 = vpop.f32.mrf.mxu0
    %v444 = vadd.f32 0.0, %v443
    %445 = vmatmul.f32.gmra.mxu0 %v394
    %v446 = vpop.f32.mrf.mxu0
    %v447 = vadd.f32 0.0, %v446
    %448 = vmatmul.f32.gmra.mxu0 %v397
    %v449 = vpop.f32.mrf.mxu0
    %v450 = vadd.f32 0.0, %v449
    %451 = vmatmul.f32.gmra.mxu0 %v400
    %v452 = vpop.f32.mrf.mxu0
    %v453 = vadd.f32 0.0, %v452
    %454 = vdwg.mxu0
    %v455 = vadd.f32 %v330, %v420
    %v456 = vadd.f32 %v333, %v423
    %v457 = vadd.f32 %v336, %v426
    %v458 = vadd.f32 %v339, %v429
    %v459 = vxor.u32 %v455, 2147483648
    %v460 = vxor.u32 %v456, 2147483648
    %v461 = vxor.u32 %v457, 2147483648
    %v462 = vxor.u32 %v458, 2147483648
    %v463 = vmul.f32 %v459, 1.442695
    %v464 = vpow.pop %v463
    %v465 = vmul.f32 %v460, 1.442695
    %v466 = vpow.pop %v465
    %v467 = vmul.f32 %v461, 1.442695
    %v468 = vpow.pop %v467
    %v469 = vmul.f32 %v462, 1.442695
    %v470 = vpow.pop %v469
    %v471 = vadd.f32 %v464, 1.0
    %v472 = vadd.f32 %v466, 1.0
    %v473 = vadd.f32 %v468, 1.0
    %v474 = vadd.f32 %v470, 1.0
    %v475 = vrcp.pop %v471
    %v476 = vmul.f32 %v471, %v475
    %v477 = vsub.f32 1.0, %v476
    %v478 = vmul.f32 %v475, %v477
    %v479 = vadd.f32 %v475, %v478
    %vm480 = vweird.f32 %v471
    %vm481 = vweird.f32 %v475
    %vm482 = vmor %vm480, %vm481
    %v483 = vsel %vm482, %v475, %v479
    %v484 = vand.u32 2147483647, %v471
    %vm485 = vcmp.eq.f32.partialorder %v484, 8.507059e+37
    %v486 = vand.u32 %v471, 2147483648
    %v487 = vor.u32 1.1754944e-38, %v486
    %v488 = vsel %vm485, %v487, %v483
    %v489 = vmul.f32 1.0, %v488
    %v490 = vrcp.pop %v472
    %v491 = vmul.f32 %v472, %v490
    %v492 = vsub.f32 1.0, %v491
    %v493 = vmul.f32 %v490, %v492
    %v494 = vadd.f32 %v490, %v493
    %vm495 = vweird.f32 %v472
    %vm496 = vweird.f32 %v490
    %vm497 = vmor %vm495, %vm496
    %v498 = vsel %vm497, %v490, %v494
    %v499 = vand.u32 2147483647, %v472
    %vm500 = vcmp.eq.f32.partialorder %v499, 8.507059e+37
    %v501 = vand.u32 %v472, 2147483648
    %v502 = vor.u32 1.1754944e-38, %v501
    %v503 = vsel %vm500, %v502, %v498
    %v504 = vmul.f32 1.0, %v503
    %v505 = vrcp.pop %v473
    %v506 = vmul.f32 %v473, %v505
    %v507 = vsub.f32 1.0, %v506
    %v508 = vmul.f32 %v505, %v507
    %v509 = vadd.f32 %v505, %v508
    %vm510 = vweird.f32 %v473
    %vm511 = vweird.f32 %v505
    %vm512 = vmor %vm510, %vm511
    %v513 = vsel %vm512, %v505, %v509
    %v514 = vand.u32 2147483647, %v473
    %vm515 = vcmp.eq.f32.partialorder %v514, 8.507059e+37
    %v516 = vand.u32 %v473, 2147483648
    %v517 = vor.u32 1.1754944e-38, %v516
    %v518 = vsel %vm515, %v517, %v513
    %v519 = vmul.f32 1.0, %v518
    %v520 = vrcp.pop %v474
    %v521 = vmul.f32 %v474, %v520
    %v522 = vsub.f32 1.0, %v521
    %v523 = vmul.f32 %v520, %v522
    %v524 = vadd.f32 %v520, %v523
    %vm525 = vweird.f32 %v474
    %vm526 = vweird.f32 %v520
    %vm527 = vmor %vm525, %vm526
    %v528 = vsel %vm527, %v520, %v524
    %v529 = vand.u32 2147483647, %v474
    %vm530 = vcmp.eq.f32.partialorder %v529, 8.507059e+37
    %v531 = vand.u32 %v474, 2147483648
    %v532 = vor.u32 1.1754944e-38, %v531
    %v533 = vsel %vm530, %v532, %v528
    %v534 = vmul.f32 1.0, %v533
    %v535 = vadd.f32 %v342, %v432
    %v536 = vadd.f32 %v345, %v435
    %v537 = vadd.f32 %v348, %v438
    %v538 = vadd.f32 %v351, %v441
    %v539 = vxor.u32 %v535, 2147483648
    %v540 = vxor.u32 %v536, 2147483648
    %v541 = vxor.u32 %v537, 2147483648
    %v542 = vxor.u32 %v538, 2147483648
    %v543 = vmul.f32 %v539, 1.442695
    %v544 = vpow.pop %v543
    %v545 = vmul.f32 %v540, 1.442695
    %v546 = vpow.pop %v545
    %v547 = vmul.f32 %v541, 1.442695
    %v548 = vpow.pop %v547
    %v549 = vmul.f32 %v542, 1.442695
    %v550 = vpow.pop %v549
    %v551 = vadd.f32 %v544, 1.0
    %v552 = vadd.f32 %v546, 1.0
    %v553 = vadd.f32 %v548, 1.0
    %v554 = vadd.f32 %v550, 1.0
    %v555 = vrcp.pop %v551
    %v556 = vmul.f32 %v551, %v555
    %v557 = vsub.f32 1.0, %v556
    %v558 = vmul.f32 %v555, %v557
    %v559 = vadd.f32 %v555, %v558
    %vm560 = vweird.f32 %v551
    %vm561 = vweird.f32 %v555
    %vm562 = vmor %vm560, %vm561
    %v563 = vsel %vm562, %v555, %v559
    %v564 = vand.u32 2147483647, %v551
    %vm565 = vcmp.eq.f32.partialorder %v564, 8.507059e+37
    %v566 = vand.u32 %v551, 2147483648
    %v567 = vor.u32 1.1754944e-38, %v566
    %v568 = vsel %vm565, %v567, %v563
    %v569 = vmul.f32 1.0, %v568
    %v570 = vrcp.pop %v552
    %v571 = vmul.f32 %v552, %v570
    %v572 = vsub.f32 1.0, %v571
    %v573 = vmul.f32 %v570, %v572
    %v574 = vadd.f32 %v570, %v573
    %vm575 = vweird.f32 %v552
    %vm576 = vweird.f32 %v570
    %vm577 = vmor %vm575, %vm576
    %v578 = vsel %vm577, %v570, %v574
    %v579 = vand.u32 2147483647, %v552
    %vm580 = vcmp.eq.f32.partialorder %v579, 8.507059e+37
    %v581 = vand.u32 %v552, 2147483648
    %v582 = vor.u32 1.1754944e-38, %v581
    %v583 = vsel %vm580, %v582, %v578
    %v584 = vmul.f32 1.0, %v583
    %v585 = vrcp.pop %v553
    %v586 = vmul.f32 %v553, %v585
    %v587 = vsub.f32 1.0, %v586
    %v588 = vmul.f32 %v585, %v587
    %v589 = vadd.f32 %v585, %v588
    %vm590 = vweird.f32 %v553
    %vm591 = vweird.f32 %v585
    %vm592 = vmor %vm590, %vm591
    %v593 = vsel %vm592, %v585, %v589
    %v594 = vand.u32 2147483647, %v553
    %vm595 = vcmp.eq.f32.partialorder %v594, 8.507059e+37
    %v596 = vand.u32 %v553, 2147483648
    %v597 = vor.u32 1.1754944e-38, %v596
    %v598 = vsel %vm595, %v597, %v593
    %v599 = vmul.f32 1.0, %v598
    %v600 = vrcp.pop %v554
    %v601 = vmul.f32 %v554, %v600
    %v602 = vsub.f32 1.0, %v601
    %v603 = vmul.f32 %v600, %v602
    %v604 = vadd.f32 %v600, %v603
    %vm605 = vweird.f32 %v554
    %vm606 = vweird.f32 %v600
    %vm607 = vmor %vm605, %vm606
    %v608 = vsel %vm607, %v600, %v604
    %v609 = vand.u32 2147483647, %v554
    %vm610 = vcmp.eq.f32.partialorder %v609, 8.507059e+37
    %v611 = vand.u32 %v554, 2147483648
    %v612 = vor.u32 1.1754944e-38, %v611
    %v613 = vsel %vm610, %v612, %v608
    %v614 = vmul.f32 1.0, %v613
    %v615 = vadd.f32 %v444, %v136
    %v616 = vadd.f32 %v447, %v141
    %v617 = vadd.f32 %v450, %v146
    %v618 = vadd.f32 %v453, %v151
    %v619 = vmul.f32 %v489, %v615
    %v620 = vmul.f32 %v504, %v616
    %v621 = vmul.f32 %v519, %v617
    %v622 = vmul.f32 %v534, %v618
    %v623 = vadd.f32 %v354, %v619
    %v624 = vadd.f32 %v357, %v620
    %v625 = vadd.f32 %v360, %v621
    %v626 = vadd.f32 %v363, %v622
    %v627 = vtanh.pop %v623
    %v628 = vtanh.pop %v624
    %v629 = vtanh.pop %v625
    %v630 = vtanh.pop %v626
    %v631 = vsub.f32 0.0, %v627
    %v632 = vsub.f32 0.0, %v628
    %v633 = vsub.f32 0.0, %v629
    %v634 = vsub.f32 0.0, %v630
    %v635 = vmul.f32 %v569, %v631
    %v636 = vmul.f32 %v584, %v632
    %v637 = vmul.f32 %v599, %v633
    %v638 = vmul.f32 %v614, %v634
    %v639 = vadd.f32 %v627, %v635
    %v640 = vadd.f32 %v628, %v636
    %v641 = vadd.f32 %v629, %v637
    %v642 = vadd.f32 %v630, %v638
    %v644 = vsel %vm365, %v153, 0
    %v647 = vsel %vm365, %v154, 0
    %v650 = vsel %vm365, %v155, 0
    %v653 = vsel %vm365, %v156, 0
    %v656 = vsel %vm365, %v157, 0
    %v659 = vsel %vm365, %v158, 0
    %v662 = vsel %vm365, %v159, 0
    %v665 = vsel %vm365, %v160, 0
    %v668 = vsel %vm365, %v161, 0
    %v671 = vsel %vm365, %v162, 0
    %v674 = vsel %vm365, %v163, 0
    %v677 = vsel %vm365, %v164, 0
    %679 = vmatpush.msra.mxu0 0.0
    %680 = vmatpush.msra.mxu0 0.0
    %681 = vmatpush.msra.mxu0 0.0
    %682 = vmatpush.msra.mxu0 0.0
    %683 = vmatpush.msra.mxu0 0.0
    %684 = vmatpush.msra.mxu0 0.0
    %685 = vmatpush.msra.mxu0 0.0
    %686 = vmatpush.msra.mxu0 0.0
    %687 = vmatpush.msra.mxu0 0.0
    %688 = vmatpush.msra.mxu0 0.0
    %689 = vmatpush.msra.mxu0 0.0
    %690 = vmatpush.msra.mxu0 0.0
    %691 = vmatpush.msra.mxu0 %v642
    %692 = vmatpush.msra.mxu0 %v641
    %693 = vmatpush.msra.mxu0 %v640
    %694 = vmatpush.msra.mxu0 %v639
    %695 = vmatmul.f32.gmra.mxu0 %v644
    %v696 = vpop.f32.mrf.mxu0
    %v697 = vadd.f32 %v192, %v696
    %698 = vmatmul.f32.gmra.mxu0 %v647
    %v699 = vpop.f32.mrf.mxu0
    %v700 = vadd.f32 %v197, %v699
    %701 = vmatmul.f32.gmra.mxu0 %v650
    %v702 = vpop.f32.mrf.mxu0
    %v703 = vadd.f32 %v202, %v702
    %704 = vmatmul.f32.gmra.mxu0 %v653
    %v705 = vpop.f32.mrf.mxu0
    %v706 = vadd.f32 %v207, %v705
    %707 = vmatmul.f32.gmra.mxu0 %v656
    %v708 = vpop.f32.mrf.mxu0
    %v709 = vadd.f32 %v212, %v708
    %710 = vmatmul.f32.gmra.mxu0 %v659
    %v711 = vpop.f32.mrf.mxu0
    %v712 = vadd.f32 %v217, %v711
    %713 = vmatmul.f32.gmra.mxu0 %v662
    %v714 = vpop.f32.mrf.mxu0
    %v715 = vadd.f32 %v222, %v714
    %716 = vmatmul.f32.gmra.mxu0 %v665
    %v717 = vpop.f32.mrf.mxu0
    %v718 = vadd.f32 %v227, %v717
    %719 = vmatmul.f32.gmra.mxu0 %v668
    %v720 = vpop.f32.mrf.mxu0
    %v721 = vadd.f32 %v232, %v720
    %722 = vmatmul.f32.gmra.mxu0 %v671
    %v723 = vpop.f32.mrf.mxu0
    %v724 = vadd.f32 %v237, %v723
    %725 = vmatmul.f32.gmra.mxu0 %v674
    %v726 = vpop.f32.mrf.mxu0
    %v727 = vadd.f32 %v242, %v726
    %728 = vmatmul.f32.gmra.mxu0 %v677
    %v729 = vpop.f32.mrf.mxu0
    %v730 = vadd.f32 %v247, %v729
    %731 = vdwg.mxu0
    %v733 = vsel %vm365, %v165, 0
    %v736 = vsel %vm365, %v166, 0
    %v739 = vsel %vm365, %v167, 0
    %v742 = vsel %vm365, %v168, 0
    %v745 = vsel %vm365, %v169, 0
    %v748 = vsel %vm365, %v170, 0
    %v751 = vsel %vm365, %v171, 0
    %v754 = vsel %vm365, %v172, 0
    %v757 = vsel %vm365, %v173, 0
    %v760 = vsel %vm365, %v174, 0
    %v763 = vsel %vm365, %v175, 0
    %v766 = vsel %vm365, %v176, 0
    %768 = vmatpush.msra.mxu0 0.0
    %769 = vmatpush.msra.mxu0 0.0
    %770 = vmatpush.msra.mxu0 0.0
    %771 = vmatpush.msra.mxu0 0.0
    %772 = vmatpush.msra.mxu0 0.0
    %773 = vmatpush.msra.mxu0 0.0
    %774 = vmatpush.msra.mxu0 0.0
    %775 = vmatpush.msra.mxu0 0.0
    %776 = vmatpush.msra.mxu0 0.0
    %777 = vmatpush.msra.mxu0 0.0
    %778 = vmatpush.msra.mxu0 0.0
    %779 = vmatpush.msra.mxu0 0.0
    %780 = vmatpush.msra.mxu0 0.0
    %781 = vmatpush.msra.mxu0 0.0
    %782 = vmatpush.msra.mxu0 0.0
    %783 = vmatpush.msra.mxu0 0.0
    %784 = vmatmul.f32.gmra.mxu0 %v733
    %v785 = vpop.f32.mrf.mxu0
    %v786 = vadd.f32 0.0, %v785
    %787 = vmatmul.f32.gmra.mxu0 %v736
    %v788 = vpop.f32.mrf.mxu0
    %v789 = vadd.f32 0.0, %v788
    %790 = vmatmul.f32.gmra.mxu0 %v739
    %v791 = vpop.f32.mrf.mxu0
    %v792 = vadd.f32 0.0, %v791
    %793 = vmatmul.f32.gmra.mxu0 %v742
    %v794 = vpop.f32.mrf.mxu0
    %v795 = vadd.f32 0.0, %v794
    %796 = vmatmul.f32.gmra.mxu0 %v745
    %v797 = vpop.f32.mrf.mxu0
    %v798 = vadd.f32 0.0, %v797
    %799 = vmatmul.f32.gmra.mxu0 %v748
    %v800 = vpop.f32.mrf.mxu0
    %v801 = vadd.f32 0.0, %v800
    %802 = vmatmul.f32.gmra.mxu0 %v751
    %v803 = vpop.f32.mrf.mxu0
    %v804 = vadd.f32 0.0, %v803
    %805 = vmatmul.f32.gmra.mxu0 %v754
    %v806 = vpop.f32.mrf.mxu0
    %v807 = vadd.f32 0.0, %v806
    %808 = vmatmul.f32.gmra.mxu0 %v757
    %v809 = vpop.f32.mrf.mxu0
    %v810 = vadd.f32 0.0, %v809
    %811 = vmatmul.f32.gmra.mxu0 %v760
    %v812 = vpop.f32.mrf.mxu0
    %v813 = vadd.f32 0.0, %v812
    %814 = vmatmul.f32.gmra.mxu0 %v763
    %v815 = vpop.f32.mrf.mxu0
    %v816 = vadd.f32 0.0, %v815
    %817 = vmatmul.f32.gmra.mxu0 %v766
    %v818 = vpop.f32.mrf.mxu0
    %v819 = vadd.f32 0.0, %v818
    %820 = vdwg.mxu0
    %v821 = vadd.f32 %v697, %v786
    %v822 = vadd.f32 %v700, %v789
    %v823 = vadd.f32 %v703, %v792
    %v824 = vadd.f32 %v706, %v795
    %v825 = vxor.u32 %v821, 2147483648
    %v826 = vxor.u32 %v822, 2147483648
    %v827 = vxor.u32 %v823, 2147483648
    %v828 = vxor.u32 %v824, 2147483648
    %v829 = vmul.f32 %v825, 1.442695
    %v830 = vpow.pop %v829
    %v831 = vmul.f32 %v826, 1.442695
    %v832 = vpow.pop %v831
    %v833 = vmul.f32 %v827, 1.442695
    %v834 = vpow.pop %v833
    %v835 = vmul.f32 %v828, 1.442695
    %v836 = vpow.pop %v835
    %v837 = vadd.f32 %v830, 1.0
    %v838 = vadd.f32 %v832, 1.0
    %v839 = vadd.f32 %v834, 1.0
    %v840 = vadd.f32 %v836, 1.0
    %v841 = vrcp.pop %v837
    %v842 = vmul.f32 %v837, %v841
    %v843 = vsub.f32 1.0, %v842
    %v844 = vmul.f32 %v841, %v843
    %v845 = vadd.f32 %v841, %v844
    %vm846 = vweird.f32 %v837
    %vm847 = vweird.f32 %v841
    %vm848 = vmor %vm846, %vm847
    %v849 = vsel %vm848, %v841, %v845
    %v850 = vand.u32 2147483647, %v837
    %vm851 = vcmp.eq.f32.partialorder %v850, 8.507059e+37
    %v852 = vand.u32 %v837, 2147483648
    %v853 = vor.u32 1.1754944e-38, %v852
    %v854 = vsel %vm851, %v853, %v849
    %v855 = vmul.f32 1.0, %v854
    %v856 = vrcp.pop %v838
    %v857 = vmul.f32 %v838, %v856
    %v858 = vsub.f32 1.0, %v857
    %v859 = vmul.f32 %v856, %v858
    %v860 = vadd.f32 %v856, %v859
    %vm861 = vweird.f32 %v838
    %vm862 = vweird.f32 %v856
    %vm863 = vmor %vm861, %vm862
    %v864 = vsel %vm863, %v856, %v860
    %v865 = vand.u32 2147483647, %v838
    %vm866 = vcmp.eq.f32.partialorder %v865, 8.507059e+37
    %v867 = vand.u32 %v838, 2147483648
    %v868 = vor.u32 1.1754944e-38, %v867
    %v869 = vsel %vm866, %v868, %v864
    %v870 = vmul.f32 1.0, %v869
    %v871 = vrcp.pop %v839
    %v872 = vmul.f32 %v839, %v871
    %v873 = vsub.f32 1.0, %v872
    %v874 = vmul.f32 %v871, %v873
    %v875 = vadd.f32 %v871, %v874
    %vm876 = vweird.f32 %v839
    %vm877 = vweird.f32 %v871
    %vm878 = vmor %vm876, %vm877
    %v879 = vsel %vm878, %v871, %v875
    %v880 = vand.u32 2147483647, %v839
    %vm881 = vcmp.eq.f32.partialorder %v880, 8.507059e+37
    %v882 = vand.u32 %v839, 2147483648
    %v883 = vor.u32 1.1754944e-38, %v882
    %v884 = vsel %vm881, %v883, %v879
    %v885 = vmul.f32 1.0, %v884
    %v886 = vrcp.pop %v840
    %v887 = vmul.f32 %v840, %v886
    %v888 = vsub.f32 1.0, %v887
    %v889 = vmul.f32 %v886, %v888
    %v890 = vadd.f32 %v886, %v889
    %vm891 = vweird.f32 %v840
    %vm892 = vweird.f32 %v886
    %vm893 = vmor %vm891, %vm892
    %v894 = vsel %vm893, %v886, %v890
    %v895 = vand.u32 2147483647, %v840
    %vm896 = vcmp.eq.f32.partialorder %v895, 8.507059e+37
    %v897 = vand.u32 %v840, 2147483648
    %v898 = vor.u32 1.1754944e-38, %v897
    %v899 = vsel %vm896, %v898, %v894
    %v900 = vmul.f32 1.0, %v899
    %v901 = vadd.f32 %v709, %v798
    %v902 = vadd.f32 %v712, %v801
    %v903 = vadd.f32 %v715, %v804
    %v904 = vadd.f32 %v718, %v807
    %v905 = vxor.u32 %v901, 2147483648
    %v906 = vxor.u32 %v902, 2147483648
    %v907 = vxor.u32 %v903, 2147483648
    %v908 = vxor.u32 %v904, 2147483648
    %v909 = vmul.f32 %v905, 1.442695
    %v910 = vpow.pop %v909
    %v911 = vmul.f32 %v906, 1.442695
    %v912 = vpow.pop %v911
    %v913 = vmul.f32 %v907, 1.442695
    %v914 = vpow.pop %v913
    %v915 = vmul.f32 %v908, 1.442695
    %v916 = vpow.pop %v915
    %v917 = vadd.f32 %v910, 1.0
    %v918 = vadd.f32 %v912, 1.0
    %v919 = vadd.f32 %v914, 1.0
    %v920 = vadd.f32 %v916, 1.0
    %v921 = vrcp.pop %v917
    %v922 = vmul.f32 %v917, %v921
    %v923 = vsub.f32 1.0, %v922
    %v924 = vmul.f32 %v921, %v923
    %v925 = vadd.f32 %v921, %v924
    %vm926 = vweird.f32 %v917
    %vm927 = vweird.f32 %v921
    %vm928 = vmor %vm926, %vm927
    %v929 = vsel %vm928, %v921, %v925
    %v930 = vand.u32 2147483647, %v917
    %vm931 = vcmp.eq.f32.partialorder %v930, 8.507059e+37
    %v932 = vand.u32 %v917, 2147483648
    %v933 = vor.u32 1.1754944e-38, %v932
    %v934 = vsel %vm931, %v933, %v929
    %v935 = vmul.f32 1.0, %v934
    %v936 = vrcp.pop %v918
    %v937 = vmul.f32 %v918, %v936
    %v938 = vsub.f32 1.0, %v937
    %v939 = vmul.f32 %v936, %v938
    %v940 = vadd.f32 %v936, %v939
    %vm941 = vweird.f32 %v918
    %vm942 = vweird.f32 %v936
    %vm943 = vmor %vm941, %vm942
    %v944 = vsel %vm943, %v936, %v940
    %v945 = vand.u32 2147483647, %v918
    %vm946 = vcmp.eq.f32.partialorder %v945, 8.507059e+37
    %v947 = vand.u32 %v918, 2147483648
    %v948 = vor.u32 1.1754944e-38, %v947
    %v949 = vsel %vm946, %v948, %v944
    %v950 = vmul.f32 1.0, %v949
    %v951 = vrcp.pop %v919
    %v952 = vmul.f32 %v919, %v951
    %v953 = vsub.f32 1.0, %v952
    %v954 = vmul.f32 %v951, %v953
    %v955 = vadd.f32 %v951, %v954
    %vm956 = vweird.f32 %v919
    %vm957 = vweird.f32 %v951
    %vm958 = vmor %vm956, %vm957
    %v959 = vsel %vm958, %v951, %v955
    %v960 = vand.u32 2147483647, %v919
    %vm961 = vcmp.eq.f32.partialorder %v960, 8.507059e+37
    %v962 = vand.u32 %v919, 2147483648
    %v963 = vor.u32 1.1754944e-38, %v962
    %v964 = vsel %vm961, %v963, %v959
    %v965 = vmul.f32 1.0, %v964
    %v966 = vrcp.pop %v920
    %v967 = vmul.f32 %v920, %v966
    %v968 = vsub.f32 1.0, %v967
    %v969 = vmul.f32 %v966, %v968
    %v970 = vadd.f32 %v966, %v969
    %vm971 = vweird.f32 %v920
    %vm972 = vweird.f32 %v966
    %vm973 = vmor %vm971, %vm972
    %v974 = vsel %vm973, %v966, %v970
    %v975 = vand.u32 2147483647, %v920
    %vm976 = vcmp.eq.f32.partialorder %v975, 8.507059e+37
    %v977 = vand.u32 %v920, 2147483648
    %v978 = vor.u32 1.1754944e-38, %v977
    %v979 = vsel %vm976, %v978, %v974
    %v980 = vmul.f32 1.0, %v979
    %v981 = vadd.f32 %v810, %v256
    %v982 = vadd.f32 %v813, %v261
    %v983 = vadd.f32 %v816, %v266
    %v984 = vadd.f32 %v819, %v271
    %v985 = vmul.f32 %v855, %v981
    %v986 = vmul.f32 %v870, %v982
    %v987 = vmul.f32 %v885, %v983
    %v988 = vmul.f32 %v900, %v984
    %v989 = vadd.f32 %v721, %v985
    %v990 = vadd.f32 %v724, %v986
    %v991 = vadd.f32 %v727, %v987
    %v992 = vadd.f32 %v730, %v988
    %v993 = vtanh.pop %v989
    %v994 = vtanh.pop %v990
    %v995 = vtanh.pop %v991
    %v996 = vtanh.pop %v992
    %v997 = vsub.f32 0.0, %v993
    %v998 = vsub.f32 0.0, %v994
    %v999 = vsub.f32 0.0, %v995
    %v1000 = vsub.f32 0.0, %v996
    %v1001 = vmul.f32 %v935, %v997
    %v1002 = vmul.f32 %v950, %v998
    %v1003 = vmul.f32 %v965, %v999
    %v1004 = vmul.f32 %v980, %v1000
    %v1005 = vadd.f32 %v993, %v1001
    %v1006 = vadd.f32 %v994, %v1002
    %v1007 = vadd.f32 %v995, %v1003
    %v1008 = vadd.f32 %v996, %v1004
    %s1009 = scalar_lea.vmem %s0, 16
    %v1010 = vld [vmem:[%s1009] sm:$0xff]
    %v1011 = vld [vmem:[%s1009 + $0x8] sm:$0xff]
    %1012 = vmatpush.msra.mxu0 0.0
    %1013 = vmatpush.msra.mxu0 0.0
    %1014 = vmatpush.msra.mxu0 0.0
    %1015 = vmatpush.msra.mxu0 0.0
    %1016 = vmatpush.msra.mxu0 0.0
    %1017 = vmatpush.msra.mxu0 0.0
    %1018 = vmatpush.msra.mxu0 0.0
    %1019 = vmatpush.msra.mxu0 0.0
    %1020 = vmatpush.msra.mxu0 0.0
    %1021 = vmatpush.msra.mxu0 0.0
    %1022 = vmatpush.msra.mxu0 0.0
    %1023 = vmatpush.msra.mxu0 0.0
    %1024 = vmatpush.msra.mxu0 0.0
    %1025 = vmatpush.msra.mxu0 0.0
    %1026 = vmatpush.msra.mxu0 %v1011
    %1027 = vmatpush.msra.mxu0 %v1010
    %1028 = vmatmul.f32.gmra.mxu0 %v277
    %v1029 = vpop.f32.mrf.mxu0
    %v1030 = vadd.f32 %v72, %v1029
    %1031 = vmatmul.f32.gmra.mxu0 %v280
    %v1032 = vpop.f32.mrf.mxu0
    %v1033 = vadd.f32 %v77, %v1032
    %1034 = vmatmul.f32.gmra.mxu0 %v283
    %v1035 = vpop.f32.mrf.mxu0
    %v1036 = vadd.f32 %v82, %v1035
    %1037 = vmatmul.f32.gmra.mxu0 %v286
    %v1038 = vpop.f32.mrf.mxu0
    %v1039 = vadd.f32 %v87, %v1038
    %1040 = vmatmul.f32.gmra.mxu0 %v289
    %v1041 = vpop.f32.mrf.mxu0
    %v1042 = vadd.f32 %v92, %v1041
    %1043 = vmatmul.f32.gmra.mxu0 %v292
    %v1044 = vpop.f32.mrf.mxu0
    %v1045 = vadd.f32 %v97, %v1044
    %1046 = vmatmul.f32.gmra.mxu0 %v295
    %v1047 = vpop.f32.mrf.mxu0
    %v1048 = vadd.f32 %v102, %v1047
    %1049 = vmatmul.f32.gmra.mxu0 %v298
    %v1050 = vpop.f32.mrf.mxu0
    %v1051 = vadd.f32 %v107, %v1050
    %1052 = vmatmul.f32.gmra.mxu0 %v301
    %v1053 = vpop.f32.mrf.mxu0
    %v1054 = vadd.f32 %v112, %v1053
    %1055 = vmatmul.f32.gmra.mxu0 %v304
    %v1056 = vpop.f32.mrf.mxu0
    %v1057 = vadd.f32 %v117, %v1056
    %1058 = vmatmul.f32.gmra.mxu0 %v307
    %v1059 = vpop.f32.mrf.mxu0
    %v1060 = vadd.f32 %v122, %v1059
    %1061 = vmatmul.f32.gmra.mxu0 %v310
    %v1062 = vpop.f32.mrf.mxu0
    %v1063 = vadd.f32 %v127, %v1062
    %1064 = vdwg.mxu0
    %1065 = vmatpush.msra.mxu0 0.0
    %1066 = vmatpush.msra.mxu0 0.0
    %1067 = vmatpush.msra.mxu0 0.0
    %1068 = vmatpush.msra.mxu0 0.0
    %1069 = vmatpush.msra.mxu0 0.0
    %1070 = vmatpush.msra.mxu0 0.0
    %1071 = vmatpush.msra.mxu0 0.0
    %1072 = vmatpush.msra.mxu0 0.0
    %1073 = vmatpush.msra.mxu0 0.0
    %1074 = vmatpush.msra.mxu0 0.0
    %1075 = vmatpush.msra.mxu0 0.0
    %1076 = vmatpush.msra.mxu0 0.0
    %1077 = vmatpush.msra.mxu0 %v642
    %1078 = vmatpush.msra.mxu0 %v641
    %1079 = vmatpush.msra.mxu0 %v640
    %1080 = vmatpush.msra.mxu0 %v639
    %1081 = vmatmul.f32.gmra.mxu0 %v367
    %v1082 = vpop.f32.mrf.mxu0
    %v1083 = vadd.f32 0.0, %v1082
    %1084 = vmatmul.f32.gmra.mxu0 %v370
    %v1085 = vpop.f32.mrf.mxu0
    %v1086 = vadd.f32 0.0, %v1085
    %1087 = vmatmul.f32.gmra.mxu0 %v373
    %v1088 = vpop.f32.mrf.mxu0
    %v1089 = vadd.f32 0.0, %v1088
    %1090 = vmatmul.f32.gmra.mxu0 %v376
    %v1091 = vpop.f32.mrf.mxu0
    %v1092 = vadd.f32 0.0, %v1091
    %1093 = vmatmul.f32.gmra.mxu0 %v379
    %v1094 = vpop.f32.mrf.mxu0
    %v1095 = vadd.f32 0.0, %v1094
    %1096 = vmatmul.f32.gmra.mxu0 %v382
    %v1097 = vpop.f32.mrf.mxu0
    %v1098 = vadd.f32 0.0, %v1097
    %1099 = vmatmul.f32.gmra.mxu0 %v385
    %v1100 = vpop.f32.mrf.mxu0
    %v1101 = vadd.f32 0.0, %v1100
    %1102 = vmatmul.f32.gmra.mxu0 %v388
    %v1103 = vpop.f32.mrf.mxu0
    %v1104 = vadd.f32 0.0, %v1103
    %1105 = vmatmul.f32.gmra.mxu0 %v391
    %v1106 = vpop.f32.mrf.mxu0
    %v1107 = vadd.f32 0.0, %v1106
    %1108 = vmatmul.f32.gmra.mxu0 %v394
    %v1109 = vpop.f32.mrf.mxu0
    %v1110 = vadd.f32 0.0, %v1109
    %1111 = vmatmul.f32.gmra.mxu0 %v397
    %v1112 = vpop.f32.mrf.mxu0
    %v1113 = vadd.f32 0.0, %v1112
    %1114 = vmatmul.f32.gmra.mxu0 %v400
    %v1115 = vpop.f32.mrf.mxu0
    %v1116 = vadd.f32 0.0, %v1115
    %1117 = vdwg.mxu0
    %v1118 = vadd.f32 %v1030, %v1083
    %v1119 = vadd.f32 %v1033, %v1086
    %v1120 = vadd.f32 %v1036, %v1089
    %v1121 = vadd.f32 %v1039, %v1092
    %v1122 = vxor.u32 %v1118, 2147483648
    %v1123 = vxor.u32 %v1119, 2147483648
    %v1124 = vxor.u32 %v1120, 2147483648
    %v1125 = vxor.u32 %v1121, 2147483648
    %v1126 = vmul.f32 %v1122, 1.442695
    %v1127 = vpow.pop %v1126
    %v1128 = vmul.f32 %v1123, 1.442695
    %v1129 = vpow.pop %v1128
    %v1130 = vmul.f32 %v1124, 1.442695
    %v1131 = vpow.pop %v1130
    %v1132 = vmul.f32 %v1125, 1.442695
    %v1133 = vpow.pop %v1132
    %v1134 = vadd.f32 %v1127, 1.0
    %v1135 = vadd.f32 %v1129, 1.0
    %v1136 = vadd.f32 %v1131, 1.0
    %v1137 = vadd.f32 %v1133, 1.0
    %v1138 = vrcp.pop %v1134
    %v1139 = vmul.f32 %v1134, %v1138
    %v1140 = vsub.f32 1.0, %v1139
    %v1141 = vmul.f32 %v1138, %v1140
    %v1142 = vadd.f32 %v1138, %v1141
    %vm1143 = vweird.f32 %v1134
    %vm1144 = vweird.f32 %v1138
    %vm1145 = vmor %vm1143, %vm1144
    %v1146 = vsel %vm1145, %v1138, %v1142
    %v1147 = vand.u32 2147483647, %v1134
    %vm1148 = vcmp.eq.f32.partialorder %v1147, 8.507059e+37
    %v1149 = vand.u32 %v1134, 2147483648
    %v1150 = vor.u32 1.1754944e-38, %v1149
    %v1151 = vsel %vm1148, %v1150, %v1146
    %v1152 = vmul.f32 1.0, %v1151
    %v1153 = vrcp.pop %v1135
    %v1154 = vmul.f32 %v1135, %v1153
    %v1155 = vsub.f32 1.0, %v1154
    %v1156 = vmul.f32 %v1153, %v1155
    %v1157 = vadd.f32 %v1153, %v1156
    %vm1158 = vweird.f32 %v1135
    %vm1159 = vweird.f32 %v1153
    %vm1160 = vmor %vm1158, %vm1159
    %v1161 = vsel %vm1160, %v1153, %v1157
    %v1162 = vand.u32 2147483647, %v1135
    %vm1163 = vcmp.eq.f32.partialorder %v1162, 8.507059e+37
    %v1164 = vand.u32 %v1135, 2147483648
    %v1165 = vor.u32 1.1754944e-38, %v1164
    %v1166 = vsel %vm1163, %v1165, %v1161
    %v1167 = vmul.f32 1.0, %v1166
    %v1168 = vrcp.pop %v1136
    %v1169 = vmul.f32 %v1136, %v1168
    %v1170 = vsub.f32 1.0, %v1169
    %v1171 = vmul.f32 %v1168, %v1170
    %v1172 = vadd.f32 %v1168, %v1171
    %vm1173 = vweird.f32 %v1136
    %vm1174 = vweird.f32 %v1168
    %vm1175 = vmor %vm1173, %vm1174
    %v1176 = vsel %vm1175, %v1168, %v1172
    %v1177 = vand.u32 2147483647, %v1136
    %vm1178 = vcmp.eq.f32.partialorder %v1177, 8.507059e+37
    %v1179 = vand.u32 %v1136, 2147483648
    %v1180 = vor.u32 1.1754944e-38, %v1179
    %v1181 = vsel %vm1178, %v1180, %v1176
    %v1182 = vmul.f32 1.0, %v1181
    %v1183 = vrcp.pop %v1137
    %v1184 = vmul.f32 %v1137, %v1183
    %v1185 = vsub.f32 1.0, %v1184
    %v1186 = vmul.f32 %v1183, %v1185
    %v1187 = vadd.f32 %v1183, %v1186
    %vm1188 = vweird.f32 %v1137
    %vm1189 = vweird.f32 %v1183
    %vm1190 = vmor %vm1188, %vm1189
    %v1191 = vsel %vm1190, %v1183, %v1187
    %v1192 = vand.u32 2147483647, %v1137
    %vm1193 = vcmp.eq.f32.partialorder %v1192, 8.507059e+37
    %v1194 = vand.u32 %v1137, 2147483648
    %v1195 = vor.u32 1.1754944e-38, %v1194
    %v1196 = vsel %vm1193, %v1195, %v1191
    %v1197 = vmul.f32 1.0, %v1196
    %v1198 = vadd.f32 %v1042, %v1095
    %v1199 = vadd.f32 %v1045, %v1098
    %v1200 = vadd.f32 %v1048, %v1101
    %v1201 = vadd.f32 %v1051, %v1104
    %v1202 = vxor.u32 %v1198, 2147483648
    %v1203 = vxor.u32 %v1199, 2147483648
    %v1204 = vxor.u32 %v1200, 2147483648
    %v1205 = vxor.u32 %v1201, 2147483648
    %v1206 = vmul.f32 %v1202, 1.442695
    %v1207 = vpow.pop %v1206
    %v1208 = vmul.f32 %v1203, 1.442695
    %v1209 = vpow.pop %v1208
    %v1210 = vmul.f32 %v1204, 1.442695
    %v1211 = vpow.pop %v1210
    %v1212 = vmul.f32 %v1205, 1.442695
    %v1213 = vpow.pop %v1212
    %v1214 = vadd.f32 %v1207, 1.0
    %v1215 = vadd.f32 %v1209, 1.0
    %v1216 = vadd.f32 %v1211, 1.0
    %v1217 = vadd.f32 %v1213, 1.0
    %v1218 = vrcp.pop %v1214
    %v1219 = vmul.f32 %v1214, %v1218
    %v1220 = vsub.f32 1.0, %v1219
    %v1221 = vmul.f32 %v1218, %v1220
    %v1222 = vadd.f32 %v1218, %v1221
    %vm1223 = vweird.f32 %v1214
    %vm1224 = vweird.f32 %v1218
    %vm1225 = vmor %vm1223, %vm1224
    %v1226 = vsel %vm1225, %v1218, %v1222
    %v1227 = vand.u32 2147483647, %v1214
    %vm1228 = vcmp.eq.f32.partialorder %v1227, 8.507059e+37
    %v1229 = vand.u32 %v1214, 2147483648
    %v1230 = vor.u32 1.1754944e-38, %v1229
    %v1231 = vsel %vm1228, %v1230, %v1226
    %v1232 = vmul.f32 1.0, %v1231
    %v1233 = vrcp.pop %v1215
    %v1234 = vmul.f32 %v1215, %v1233
    %v1235 = vsub.f32 1.0, %v1234
    %v1236 = vmul.f32 %v1233, %v1235
    %v1237 = vadd.f32 %v1233, %v1236
    %vm1238 = vweird.f32 %v1215
    %vm1239 = vweird.f32 %v1233
    %vm1240 = vmor %vm1238, %vm1239
    %v1241 = vsel %vm1240, %v1233, %v1237
    %v1242 = vand.u32 2147483647, %v1215
    %vm1243 = vcmp.eq.f32.partialorder %v1242, 8.507059e+37
    %v1244 = vand.u32 %v1215, 2147483648
    %v1245 = vor.u32 1.1754944e-38, %v1244
    %v1246 = vsel %vm1243, %v1245, %v1241
    %v1247 = vmul.f32 1.0, %v1246
    %v1248 = vrcp.pop %v1216
    %v1249 = vmul.f32 %v1216, %v1248
    %v1250 = vsub.f32 1.0, %v1249
    %v1251 = vmul.f32 %v1248, %v1250
    %v1252 = vadd.f32 %v1248, %v1251
    %vm1253 = vweird.f32 %v1216
    %vm1254 = vweird.f32 %v1248
    %vm1255 = vmor %vm1253, %vm1254
    %v1256 = vsel %vm1255, %v1248, %v1252
    %v1257 = vand.u32 2147483647, %v1216
    %vm1258 = vcmp.eq.f32.partialorder %v1257, 8.507059e+37
    %v1259 = vand.u32 %v1216, 2147483648
    %v1260 = vor.u32 1.1754944e-38, %v1259
    %v1261 = vsel %vm1258, %v1260, %v1256
    %v1262 = vmul.f32 1.0, %v1261
    %v1263 = vrcp.pop %v1217
    %v1264 = vmul.f32 %v1217, %v1263
    %v1265 = vsub.f32 1.0, %v1264
    %v1266 = vmul.f32 %v1263, %v1265
    %v1267 = vadd.f32 %v1263, %v1266
    %vm1268 = vweird.f32 %v1217
    %vm1269 = vweird.f32 %v1263
    %vm1270 = vmor %vm1268, %vm1269
    %v1271 = vsel %vm1270, %v1263, %v1267
    %v1272 = vand.u32 2147483647, %v1217
    %vm1273 = vcmp.eq.f32.partialorder %v1272, 8.507059e+37
    %v1274 = vand.u32 %v1217, 2147483648
    %v1275 = vor.u32 1.1754944e-38, %v1274
    %v1276 = vsel %vm1273, %v1275, %v1271
    %v1277 = vmul.f32 1.0, %v1276
    %v1278 = vadd.f32 %v1107, %v136
    %v1279 = vadd.f32 %v1110, %v141
    %v1280 = vadd.f32 %v1113, %v146
    %v1281 = vadd.f32 %v1116, %v151
    %v1282 = vmul.f32 %v1152, %v1278
    %v1283 = vmul.f32 %v1167, %v1279
    %v1284 = vmul.f32 %v1182, %v1280
    %v1285 = vmul.f32 %v1197, %v1281
    %v1286 = vadd.f32 %v1054, %v1282
    %v1287 = vadd.f32 %v1057, %v1283
    %v1288 = vadd.f32 %v1060, %v1284
    %v1289 = vadd.f32 %v1063, %v1285
    %v1290 = vtanh.pop %v1286
    %v1291 = vtanh.pop %v1287
    %v1292 = vtanh.pop %v1288
    %v1293 = vtanh.pop %v1289
    %v1294 = vsub.f32 %v639, %v1290
    %v1295 = vsub.f32 %v640, %v1291
    %v1296 = vsub.f32 %v641, %v1292
    %v1297 = vsub.f32 %v642, %v1293
    %v1298 = vmul.f32 %v1232, %v1294
    %v1299 = vmul.f32 %v1247, %v1295
    %v1300 = vmul.f32 %v1262, %v1296
    %v1301 = vmul.f32 %v1277, %v1297
    %v1302 = vadd.f32 %v1290, %v1298
    %v1303 = vadd.f32 %v1291, %v1299
    %v1304 = vadd.f32 %v1292, %v1300
    %v1305 = vadd.f32 %v1293, %v1301
    %1306 = vmatpush.msra.mxu0 0.0
    %1307 = vmatpush.msra.mxu0 0.0
    %1308 = vmatpush.msra.mxu0 0.0
    %1309 = vmatpush.msra.mxu0 0.0
    %1310 = vmatpush.msra.mxu0 0.0
    %1311 = vmatpush.msra.mxu0 0.0
    %1312 = vmatpush.msra.mxu0 0.0
    %1313 = vmatpush.msra.mxu0 0.0
    %1314 = vmatpush.msra.mxu0 0.0
    %1315 = vmatpush.msra.mxu0 0.0
    %1316 = vmatpush.msra.mxu0 0.0
    %1317 = vmatpush.msra.mxu0 0.0
    %1318 = vmatpush.msra.mxu0 %v1305
    %1319 = vmatpush.msra.mxu0 %v1304
    %1320 = vmatpush.msra.mxu0 %v1303
    %1321 = vmatpush.msra.mxu0 %v1302
    %1322 = vmatmul.f32.gmra.mxu0 %v644
    %v1323 = vpop.f32.mrf.mxu0
    %v1324 = vadd.f32 %v192, %v1323
    %1325 = vmatmul.f32.gmra.mxu0 %v647
    %v1326 = vpop.f32.mrf.mxu0
    %v1327 = vadd.f32 %v197, %v1326
    %1328 = vmatmul.f32.gmra.mxu0 %v650
    %v1329 = vpop.f32.mrf.mxu0
    %v1330 = vadd.f32 %v202, %v1329
    %1331 = vmatmul.f32.gmra.mxu0 %v653
    %v1332 = vpop.f32.mrf.mxu0
    %v1333 = vadd.f32 %v207, %v1332
    %1334 = vmatmul.f32.gmra.mxu0 %v656
    %v1335 = vpop.f32.mrf.mxu0
    %v1336 = vadd.f32 %v212, %v1335
    %1337 = vmatmul.f32.gmra.mxu0 %v659
    %v1338 = vpop.f32.mrf.mxu0
    %v1339 = vadd.f32 %v217, %v1338
    %1340 = vmatmul.f32.gmra.mxu0 %v662
    %v1341 = vpop.f32.mrf.mxu0
    %v1342 = vadd.f32 %v222, %v1341
    %1343 = vmatmul.f32.gmra.mxu0 %v665
    %v1344 = vpop.f32.mrf.mxu0
    %v1345 = vadd.f32 %v227, %v1344
    %1346 = vmatmul.f32.gmra.mxu0 %v668
    %v1347 = vpop.f32.mrf.mxu0
    %v1348 = vadd.f32 %v232, %v1347
    %1349 = vmatmul.f32.gmra.mxu0 %v671
    %v1350 = vpop.f32.mrf.mxu0
    %v1351 = vadd.f32 %v237, %v1350
    %1352 = vmatmul.f32.gmra.mxu0 %v674
    %v1353 = vpop.f32.mrf.mxu0
    %v1354 = vadd.f32 %v242, %v1353
    %1355 = vmatmul.f32.gmra.mxu0 %v677
    %v1356 = vpop.f32.mrf.mxu0
    %v1357 = vadd.f32 %v247, %v1356
    %1358 = vdwg.mxu0
    %1359 = vmatpush.msra.mxu0 0.0
    %1360 = vmatpush.msra.mxu0 0.0
    %1361 = vmatpush.msra.mxu0 0.0
    %1362 = vmatpush.msra.mxu0 0.0
    %1363 = vmatpush.msra.mxu0 0.0
    %1364 = vmatpush.msra.mxu0 0.0
    %1365 = vmatpush.msra.mxu0 0.0
    %1366 = vmatpush.msra.mxu0 0.0
    %1367 = vmatpush.msra.mxu0 0.0
    %1368 = vmatpush.msra.mxu0 0.0
    %1369 = vmatpush.msra.mxu0 0.0
    %1370 = vmatpush.msra.mxu0 0.0
    %1371 = vmatpush.msra.mxu0 %v1008
    %1372 = vmatpush.msra.mxu0 %v1007
    %1373 = vmatpush.msra.mxu0 %v1006
    %1374 = vmatpush.msra.mxu0 %v1005
    %1375 = vmatmul.f32.gmra.mxu0 %v733
    %v1376 = vpop.f32.mrf.mxu0
    %v1377 = vadd.f32 0.0, %v1376
    %1378 = vmatmul.f32.gmra.mxu0 %v736
    %v1379 = vpop.f32.mrf.mxu0
    %v1380 = vadd.f32 0.0, %v1379
    %1381 = vmatmul.f32.gmra.mxu0 %v739
    %v1382 = vpop.f32.mrf.mxu0
    %v1383 = vadd.f32 0.0, %v1382
    %1384 = vmatmul.f32.gmra.mxu0 %v742
    %v1385 = vpop.f32.mrf.mxu0
    %v1386 = vadd.f32 0.0, %v1385
    %1387 = vmatmul.f32.gmra.mxu0 %v745
    %v1388 = vpop.f32.mrf.mxu0
    %v1389 = vadd.f32 0.0, %v1388
    %1390 = vmatmul.f32.gmra.mxu0 %v748
    %v1391 = vpop.f32.mrf.mxu0
    %v1392 = vadd.f32 0.0, %v1391
    %1393 = vmatmul.f32.gmra.mxu0 %v751
    %v1394 = vpop.f32.mrf.mxu0
    %v1395 = vadd.f32 0.0, %v1394
    %1396 = vmatmul.f32.gmra.mxu0 %v754
    %v1397 = vpop.f32.mrf.mxu0
    %v1398 = vadd.f32 0.0, %v1397
    %1399 = vmatmul.f32.gmra.mxu0 %v757
    %v1400 = vpop.f32.mrf.mxu0
    %v1401 = vadd.f32 0.0, %v1400
    %1402 = vmatmul.f32.gmra.mxu0 %v760
    %v1403 = vpop.f32.mrf.mxu0
    %v1404 = vadd.f32 0.0, %v1403
    %1405 = vmatmul.f32.gmra.mxu0 %v763
    %v1406 = vpop.f32.mrf.mxu0
    %v1407 = vadd.f32 0.0, %v1406
    %1408 = vmatmul.f32.gmra.mxu0 %v766
    %v1409 = vpop.f32.mrf.mxu0
    %v1410 = vadd.f32 0.0, %v1409
    %1411 = vdwg.mxu0
    %v1412 = vadd.f32 %v1324, %v1377
    %v1413 = vadd.f32 %v1327, %v1380
    %v1414 = vadd.f32 %v1330, %v1383
    %v1415 = vadd.f32 %v1333, %v1386
    %v1416 = vxor.u32 %v1412, 2147483648
    %v1417 = vxor.u32 %v1413, 2147483648
    %v1418 = vxor.u32 %v1414, 2147483648
    %v1419 = vxor.u32 %v1415, 2147483648
    %v1420 = vmul.f32 %v1416, 1.442695
    %v1421 = vpow.pop %v1420
    %v1422 = vmul.f32 %v1417, 1.442695
    %v1423 = vpow.pop %v1422
    %v1424 = vmul.f32 %v1418, 1.442695
    %v1425 = vpow.pop %v1424
    %v1426 = vmul.f32 %v1419, 1.442695
    %v1427 = vpow.pop %v1426
    %v1428 = vadd.f32 %v1421, 1.0
    %v1429 = vadd.f32 %v1423, 1.0
    %v1430 = vadd.f32 %v1425, 1.0
    %v1431 = vadd.f32 %v1427, 1.0
    %v1432 = vrcp.pop %v1428
    %v1433 = vmul.f32 %v1428, %v1432
    %v1434 = vsub.f32 1.0, %v1433
    %v1435 = vmul.f32 %v1432, %v1434
    %v1436 = vadd.f32 %v1432, %v1435
    %vm1437 = vweird.f32 %v1428
    %vm1438 = vweird.f32 %v1432
    %vm1439 = vmor %vm1437, %vm1438
    %v1440 = vsel %vm1439, %v1432, %v1436
    %v1441 = vand.u32 2147483647, %v1428
    %vm1442 = vcmp.eq.f32.partialorder %v1441, 8.507059e+37
    %v1443 = vand.u32 %v1428, 2147483648
    %v1444 = vor.u32 1.1754944e-38, %v1443
    %v1445 = vsel %vm1442, %v1444, %v1440
    %v1446 = vmul.f32 1.0, %v1445
    %v1447 = vrcp.pop %v1429
    %v1448 = vmul.f32 %v1429, %v1447
    %v1449 = vsub.f32 1.0, %v1448
    %v1450 = vmul.f32 %v1447, %v1449
    %v1451 = vadd.f32 %v1447, %v1450
    %vm1452 = vweird.f32 %v1429
    %vm1453 = vweird.f32 %v1447
    %vm1454 = vmor %vm1452, %vm1453
    %v1455 = vsel %vm1454, %v1447, %v1451
    %v1456 = vand.u32 2147483647, %v1429
    %vm1457 = vcmp.eq.f32.partialorder %v1456, 8.507059e+37
    %v1458 = vand.u32 %v1429, 2147483648
    %v1459 = vor.u32 1.1754944e-38, %v1458
    %v1460 = vsel %vm1457, %v1459, %v1455
    %v1461 = vmul.f32 1.0, %v1460
    %v1462 = vrcp.pop %v1430
    %v1463 = vmul.f32 %v1430, %v1462
    %v1464 = vsub.f32 1.0, %v1463
    %v1465 = vmul.f32 %v1462, %v1464
    %v1466 = vadd.f32 %v1462, %v1465
    %vm1467 = vweird.f32 %v1430
    %vm1468 = vweird.f32 %v1462
    %vm1469 = vmor %vm1467, %vm1468
    %v1470 = vsel %vm1469, %v1462, %v1466
    %v1471 = vand.u32 2147483647, %v1430
    %vm1472 = vcmp.eq.f32.partialorder %v1471, 8.507059e+37
    %v1473 = vand.u32 %v1430, 2147483648
    %v1474 = vor.u32 1.1754944e-38, %v1473
    %v1475 = vsel %vm1472, %v1474, %v1470
    %v1476 = vmul.f32 1.0, %v1475
    %v1477 = vrcp.pop %v1431
    %v1478 = vmul.f32 %v1431, %v1477
    %v1479 = vsub.f32 1.0, %v1478
    %v1480 = vmul.f32 %v1477, %v1479
    %v1481 = vadd.f32 %v1477, %v1480
    %vm1482 = vweird.f32 %v1431
    %vm1483 = vweird.f32 %v1477
    %vm1484 = vmor %vm1482, %vm1483
    %v1485 = vsel %vm1484, %v1477, %v1481
    %v1486 = vand.u32 2147483647, %v1431
    %vm1487 = vcmp.eq.f32.partialorder %v1486, 8.507059e+37
    %v1488 = vand.u32 %v1431, 2147483648
    %v1489 = vor.u32 1.1754944e-38, %v1488
    %v1490 = vsel %vm1487, %v1489, %v1485
    %v1491 = vmul.f32 1.0, %v1490
    %v1492 = vadd.f32 %v1336, %v1389
    %v1493 = vadd.f32 %v1339, %v1392
    %v1494 = vadd.f32 %v1342, %v1395
    %v1495 = vadd.f32 %v1345, %v1398
    %v1496 = vxor.u32 %v1492, 2147483648
    %v1497 = vxor.u32 %v1493, 2147483648
    %v1498 = vxor.u32 %v1494, 2147483648
    %v1499 = vxor.u32 %v1495, 2147483648
    %v1500 = vmul.f32 %v1496, 1.442695
    %v1501 = vpow.pop %v1500
    %v1502 = vmul.f32 %v1497, 1.442695
    %v1503 = vpow.pop %v1502
    %v1504 = vmul.f32 %v1498, 1.442695
    %v1505 = vpow.pop %v1504
    %v1506 = vmul.f32 %v1499, 1.442695
    %v1507 = vpow.pop %v1506
    %v1508 = vadd.f32 %v1501, 1.0
    %v1509 = vadd.f32 %v1503, 1.0
    %v1510 = vadd.f32 %v1505, 1.0
    %v1511 = vadd.f32 %v1507, 1.0
    %v1512 = vrcp.pop %v1508
    %v1513 = vmul.f32 %v1508, %v1512
    %v1514 = vsub.f32 1.0, %v1513
    %v1515 = vmul.f32 %v1512, %v1514
    %v1516 = vadd.f32 %v1512, %v1515
    %vm1517 = vweird.f32 %v1508
    %vm1518 = vweird.f32 %v1512
    %vm1519 = vmor %vm1517, %vm1518
    %v1520 = vsel %vm1519, %v1512, %v1516
    %v1521 = vand.u32 2147483647, %v1508
    %vm1522 = vcmp.eq.f32.partialorder %v1521, 8.507059e+37
    %v1523 = vand.u32 %v1508, 2147483648
    %v1524 = vor.u32 1.1754944e-38, %v1523
    %v1525 = vsel %vm1522, %v1524, %v1520
    %v1526 = vmul.f32 1.0, %v1525
    %v1527 = vrcp.pop %v1509
    %v1528 = vmul.f32 %v1509, %v1527
    %v1529 = vsub.f32 1.0, %v1528
    %v1530 = vmul.f32 %v1527, %v1529
    %v1531 = vadd.f32 %v1527, %v1530
    %vm1532 = vweird.f32 %v1509
    %vm1533 = vweird.f32 %v1527
    %vm1534 = vmor %vm1532, %vm1533
    %v1535 = vsel %vm1534, %v1527, %v1531
    %v1536 = vand.u32 2147483647, %v1509
    %vm1537 = vcmp.eq.f32.partialorder %v1536, 8.507059e+37
    %v1538 = vand.u32 %v1509, 2147483648
    %v1539 = vor.u32 1.1754944e-38, %v1538
    %v1540 = vsel %vm1537, %v1539, %v1535
    %v1541 = vmul.f32 1.0, %v1540
    %v1542 = vrcp.pop %v1510
    %v1543 = vmul.f32 %v1510, %v1542
    %v1544 = vsub.f32 1.0, %v1543
    %v1545 = vmul.f32 %v1542, %v1544
    %v1546 = vadd.f32 %v1542, %v1545
    %vm1547 = vweird.f32 %v1510
    %vm1548 = vweird.f32 %v1542
    %vm1549 = vmor %vm1547, %vm1548
    %v1550 = vsel %vm1549, %v1542, %v1546
    %v1551 = vand.u32 2147483647, %v1510
    %vm1552 = vcmp.eq.f32.partialorder %v1551, 8.507059e+37
    %v1553 = vand.u32 %v1510, 2147483648
    %v1554 = vor.u32 1.1754944e-38, %v1553
    %v1555 = vsel %vm1552, %v1554, %v1550
    %v1556 = vmul.f32 1.0, %v1555
    %v1557 = vrcp.pop %v1511
    %v1558 = vmul.f32 %v1511, %v1557
    %v1559 = vsub.f32 1.0, %v1558
    %v1560 = vmul.f32 %v1557, %v1559
    %v1561 = vadd.f32 %v1557, %v1560
    %vm1562 = vweird.f32 %v1511
    %vm1563 = vweird.f32 %v1557
    %vm1564 = vmor %vm1562, %vm1563
    %v1565 = vsel %vm1564, %v1557, %v1561
    %v1566 = vand.u32 2147483647, %v1511
    %vm1567 = vcmp.eq.f32.partialorder %v1566, 8.507059e+37
    %v1568 = vand.u32 %v1511, 2147483648
    %v1569 = vor.u32 1.1754944e-38, %v1568
    %v1570 = vsel %vm1567, %v1569, %v1565
    %v1571 = vmul.f32 1.0, %v1570
    %v1572 = vadd.f32 %v1401, %v256
    %v1573 = vadd.f32 %v1404, %v261
    %v1574 = vadd.f32 %v1407, %v266
    %v1575 = vadd.f32 %v1410, %v271
    %v1576 = vmul.f32 %v1446, %v1572
    %v1577 = vmul.f32 %v1461, %v1573
    %v1578 = vmul.f32 %v1476, %v1574
    %v1579 = vmul.f32 %v1491, %v1575
    %v1580 = vadd.f32 %v1348, %v1576
    %v1581 = vadd.f32 %v1351, %v1577
    %v1582 = vadd.f32 %v1354, %v1578
    %v1583 = vadd.f32 %v1357, %v1579
    %v1584 = vtanh.pop %v1580
    %v1585 = vtanh.pop %v1581
    %v1586 = vtanh.pop %v1582
    %v1587 = vtanh.pop %v1583
    %v1588 = vsub.f32 %v1005, %v1584
    %v1589 = vsub.f32 %v1006, %v1585
    %v1590 = vsub.f32 %v1007, %v1586
    %v1591 = vsub.f32 %v1008, %v1587
    %v1592 = vmul.f32 %v1526, %v1588
    %v1593 = vmul.f32 %v1541, %v1589
    %v1594 = vmul.f32 %v1556, %v1590
    %v1595 = vmul.f32 %v1571, %v1591
    %v1596 = vadd.f32 %v1584, %v1592
    %v1597 = vadd.f32 %v1585, %v1593
    %v1598 = vadd.f32 %v1586, %v1594
    %v1599 = vadd.f32 %v1587, %v1595
    %s1600 = scalar_lea.vmem %s0, 32
    %v1601 = vld [vmem:[%s1600] sm:$0xff]
    %v1602 = vld [vmem:[%s1600 + $0x8] sm:$0xff]
    %1603 = vmatpush.msra.mxu0 0.0
    %1604 = vmatpush.msra.mxu0 0.0
    %1605 = vmatpush.msra.mxu0 0.0
    %1606 = vmatpush.msra.mxu0 0.0
    %1607 = vmatpush.msra.mxu0 0.0
    %1608 = vmatpush.msra.mxu0 0.0
    %1609 = vmatpush.msra.mxu0 0.0
    %1610 = vmatpush.msra.mxu0 0.0
    %1611 = vmatpush.msra.mxu0 0.0
    %1612 = vmatpush.msra.mxu0 0.0
    %1613 = vmatpush.msra.mxu0 0.0
    %1614 = vmatpush.msra.mxu0 0.0
    %1615 = vmatpush.msra.mxu0 0.0
    %1616 = vmatpush.msra.mxu0 0.0
    %1617 = vmatpush.msra.mxu0 %v1602
    %1618 = vmatpush.msra.mxu0 %v1601
    %1619 = vmatmul.f32.gmra.mxu0 %v277
    %v1620 = vpop.f32.mrf.mxu0
    %v1621 = vadd.f32 %v72, %v1620
    %1622 = vmatmul.f32.gmra.mxu0 %v280
    %v1623 = vpop.f32.mrf.mxu0
    %v1624 = vadd.f32 %v77, %v1623
    %1625 = vmatmul.f32.gmra.mxu0 %v283
    %v1626 = vpop.f32.mrf.mxu0
    %v1627 = vadd.f32 %v82, %v1626
    %1628 = vmatmul.f32.gmra.mxu0 %v286
    %v1629 = vpop.f32.mrf.mxu0
    %v1630 = vadd.f32 %v87, %v1629
    %1631 = vmatmul.f32.gmra.mxu0 %v289
    %v1632 = vpop.f32.mrf.mxu0
    %v1633 = vadd.f32 %v92, %v1632
    %1634 = vmatmul.f32.gmra.mxu0 %v292
    %v1635 = vpop.f32.mrf.mxu0
    %v1636 = vadd.f32 %v97, %v1635
    %1637 = vmatmul.f32.gmra.mxu0 %v295
    %v1638 = vpop.f32.mrf.mxu0
    %v1639 = vadd.f32 %v102, %v1638
    %1640 = vmatmul.f32.gmra.mxu0 %v298
    %v1641 = vpop.f32.mrf.mxu0
    %v1642 = vadd.f32 %v107, %v1641
    %1643 = vmatmul.f32.gmra.mxu0 %v301
    %v1644 = vpop.f32.mrf.mxu0
    %v1645 = vadd.f32 %v112, %v1644
    %1646 = vmatmul.f32.gmra.mxu0 %v304
    %v1647 = vpop.f32.mrf.mxu0
    %v1648 = vadd.f32 %v117, %v1647
    %1649 = vmatmul.f32.gmra.mxu0 %v307
    %v1650 = vpop.f32.mrf.mxu0
    %v1651 = vadd.f32 %v122, %v1650
    %1652 = vmatmul.f32.gmra.mxu0 %v310
    %v1653 = vpop.f32.mrf.mxu0
    %v1654 = vadd.f32 %v127, %v1653
    %1655 = vdwg.mxu0
    %1656 = vmatpush.msra.mxu0 0.0
    %1657 = vmatpush.msra.mxu0 0.0
    %1658 = vmatpush.msra.mxu0 0.0
    %1659 = vmatpush.msra.mxu0 0.0
    %1660 = vmatpush.msra.mxu0 0.0
    %1661 = vmatpush.msra.mxu0 0.0
    %1662 = vmatpush.msra.mxu0 0.0
    %1663 = vmatpush.msra.mxu0 0.0
    %1664 = vmatpush.msra.mxu0 0.0
    %1665 = vmatpush.msra.mxu0 0.0
    %1666 = vmatpush.msra.mxu0 0.0
    %1667 = vmatpush.msra.mxu0 0.0
    %1668 = vmatpush.msra.mxu0 %v1305
    %1669 = vmatpush.msra.mxu0 %v1304
    %1670 = vmatpush.msra.mxu0 %v1303
    %1671 = vmatpush.msra.mxu0 %v1302
    %1672 = vmatmul.f32.gmra.mxu0 %v367
    %v1673 = vpop.f32.mrf.mxu0
    %v1674 = vadd.f32 0.0, %v1673
    %1675 = vmatmul.f32.gmra.mxu0 %v370
    %v1676 = vpop.f32.mrf.mxu0
    %v1677 = vadd.f32 0.0, %v1676
    %1678 = vmatmul.f32.gmra.mxu0 %v373
    %v1679 = vpop.f32.mrf.mxu0
    %v1680 = vadd.f32 0.0, %v1679
    %1681 = vmatmul.f32.gmra.mxu0 %v376
    %v1682 = vpop.f32.mrf.mxu0
    %v1683 = vadd.f32 0.0, %v1682
    %1684 = vmatmul.f32.gmra.mxu0 %v379
    %v1685 = vpop.f32.mrf.mxu0
    %v1686 = vadd.f32 0.0, %v1685
    %1687 = vmatmul.f32.gmra.mxu0 %v382
    %v1688 = vpop.f32.mrf.mxu0
    %v1689 = vadd.f32 0.0, %v1688
    %1690 = vmatmul.f32.gmra.mxu0 %v385
    %v1691 = vpop.f32.mrf.mxu0
    %v1692 = vadd.f32 0.0, %v1691
    %1693 = vmatmul.f32.gmra.mxu0 %v388
    %v1694 = vpop.f32.mrf.mxu0
    %v1695 = vadd.f32 0.0, %v1694
    %1696 = vmatmul.f32.gmra.mxu0 %v391
    %v1697 = vpop.f32.mrf.mxu0
    %v1698 = vadd.f32 0.0, %v1697
    %1699 = vmatmul.f32.gmra.mxu0 %v394
    %v1700 = vpop.f32.mrf.mxu0
    %v1701 = vadd.f32 0.0, %v1700
    %1702 = vmatmul.f32.gmra.mxu0 %v397
    %v1703 = vpop.f32.mrf.mxu0
    %v1704 = vadd.f32 0.0, %v1703
    %1705 = vmatmul.f32.gmra.mxu0 %v400
    %v1706 = vpop.f32.mrf.mxu0
    %v1707 = vadd.f32 0.0, %v1706
    %1708 = vdwg.mxu0
    %v1709 = vadd.f32 %v1621, %v1674
    %v1710 = vadd.f32 %v1624, %v1677
    %v1711 = vadd.f32 %v1627, %v1680
    %v1712 = vadd.f32 %v1630, %v1683
    %v1713 = vxor.u32 %v1709, 2147483648
    %v1714 = vxor.u32 %v1710, 2147483648
    %v1715 = vxor.u32 %v1711, 2147483648
    %v1716 = vxor.u32 %v1712, 2147483648
    %v1717 = vmul.f32 %v1713, 1.442695
    %v1718 = vpow.pop %v1717
    %v1719 = vmul.f32 %v1714, 1.442695
    %v1720 = vpow.pop %v1719
    %v1721 = vmul.f32 %v1715, 1.442695
    %v1722 = vpow.pop %v1721
    %v1723 = vmul.f32 %v1716, 1.442695
    %v1724 = vpow.pop %v1723
    %v1725 = vadd.f32 %v1718, 1.0
    %v1726 = vadd.f32 %v1720, 1.0
    %v1727 = vadd.f32 %v1722, 1.0
    %v1728 = vadd.f32 %v1724, 1.0
    %v1729 = vrcp.pop %v1725
    %v1730 = vmul.f32 %v1725, %v1729
    %v1731 = vsub.f32 1.0, %v1730
    %v1732 = vmul.f32 %v1729, %v1731
    %v1733 = vadd.f32 %v1729, %v1732
    %vm1734 = vweird.f32 %v1725
    %vm1735 = vweird.f32 %v1729
    %vm1736 = vmor %vm1734, %vm1735
    %v1737 = vsel %vm1736, %v1729, %v1733
    %v1738 = vand.u32 2147483647, %v1725
    %vm1739 = vcmp.eq.f32.partialorder %v1738, 8.507059e+37
    %v1740 = vand.u32 %v1725, 2147483648
    %v1741 = vor.u32 1.1754944e-38, %v1740
    %v1742 = vsel %vm1739, %v1741, %v1737
    %v1743 = vmul.f32 1.0, %v1742
    %v1744 = vrcp.pop %v1726
    %v1745 = vmul.f32 %v1726, %v1744
    %v1746 = vsub.f32 1.0, %v1745
    %v1747 = vmul.f32 %v1744, %v1746
    %v1748 = vadd.f32 %v1744, %v1747
    %vm1749 = vweird.f32 %v1726
    %vm1750 = vweird.f32 %v1744
    %vm1751 = vmor %vm1749, %vm1750
    %v1752 = vsel %vm1751, %v1744, %v1748
    %v1753 = vand.u32 2147483647, %v1726
    %vm1754 = vcmp.eq.f32.partialorder %v1753, 8.507059e+37
    %v1755 = vand.u32 %v1726, 2147483648
    %v1756 = vor.u32 1.1754944e-38, %v1755
    %v1757 = vsel %vm1754, %v1756, %v1752
    %v1758 = vmul.f32 1.0, %v1757
    %v1759 = vrcp.pop %v1727
    %v1760 = vmul.f32 %v1727, %v1759
    %v1761 = vsub.f32 1.0, %v1760
    %v1762 = vmul.f32 %v1759, %v1761
    %v1763 = vadd.f32 %v1759, %v1762
    %vm1764 = vweird.f32 %v1727
    %vm1765 = vweird.f32 %v1759
    %vm1766 = vmor %vm1764, %vm1765
    %v1767 = vsel %vm1766, %v1759, %v1763
    %v1768 = vand.u32 2147483647, %v1727
    %vm1769 = vcmp.eq.f32.partialorder %v1768, 8.507059e+37
    %v1770 = vand.u32 %v1727, 2147483648
    %v1771 = vor.u32 1.1754944e-38, %v1770
    %v1772 = vsel %vm1769, %v1771, %v1767
    %v1773 = vmul.f32 1.0, %v1772
    %v1774 = vrcp.pop %v1728
    %v1775 = vmul.f32 %v1728, %v1774
    %v1776 = vsub.f32 1.0, %v1775
    %v1777 = vmul.f32 %v1774, %v1776
    %v1778 = vadd.f32 %v1774, %v1777
    %vm1779 = vweird.f32 %v1728
    %vm1780 = vweird.f32 %v1774
    %vm1781 = vmor %vm1779, %vm1780
    %v1782 = vsel %vm1781, %v1774, %v1778
    %v1783 = vand.u32 2147483647, %v1728
    %vm1784 = vcmp.eq.f32.partialorder %v1783, 8.507059e+37
    %v1785 = vand.u32 %v1728, 2147483648
    %v1786 = vor.u32 1.1754944e-38, %v1785
    %v1787 = vsel %vm1784, %v1786, %v1782
    %v1788 = vmul.f32 1.0, %v1787
    %v1789 = vadd.f32 %v1633, %v1686
    %v1790 = vadd.f32 %v1636, %v1689
    %v1791 = vadd.f32 %v1639, %v1692
    %v1792 = vadd.f32 %v1642, %v1695
    %v1793 = vxor.u32 %v1789, 2147483648
    %v1794 = vxor.u32 %v1790, 2147483648
    %v1795 = vxor.u32 %v1791, 2147483648
    %v1796 = vxor.u32 %v1792, 2147483648
    %v1797 = vmul.f32 %v1793, 1.442695
    %v1798 = vpow.pop %v1797
    %v1799 = vmul.f32 %v1794, 1.442695
    %v1800 = vpow.pop %v1799
    %v1801 = vmul.f32 %v1795, 1.442695
    %v1802 = vpow.pop %v1801
    %v1803 = vmul.f32 %v1796, 1.442695
    %v1804 = vpow.pop %v1803
    %v1805 = vadd.f32 %v1798, 1.0
    %v1806 = vadd.f32 %v1800, 1.0
    %v1807 = vadd.f32 %v1802, 1.0
    %v1808 = vadd.f32 %v1804, 1.0
    %v1809 = vrcp.pop %v1805
    %v1810 = vmul.f32 %v1805, %v1809
    %v1811 = vsub.f32 1.0, %v1810
    %v1812 = vmul.f32 %v1809, %v1811
    %v1813 = vadd.f32 %v1809, %v1812
    %vm1814 = vweird.f32 %v1805
    %vm1815 = vweird.f32 %v1809
    %vm1816 = vmor %vm1814, %vm1815
    %v1817 = vsel %vm1816, %v1809, %v1813
    %v1818 = vand.u32 2147483647, %v1805
    %vm1819 = vcmp.eq.f32.partialorder %v1818, 8.507059e+37
    %v1820 = vand.u32 %v1805, 2147483648
    %v1821 = vor.u32 1.1754944e-38, %v1820
    %v1822 = vsel %vm1819, %v1821, %v1817
    %v1823 = vmul.f32 1.0, %v1822
    %v1824 = vrcp.pop %v1806
    %v1825 = vmul.f32 %v1806, %v1824
    %v1826 = vsub.f32 1.0, %v1825
    %v1827 = vmul.f32 %v1824, %v1826
    %v1828 = vadd.f32 %v1824, %v1827
    %vm1829 = vweird.f32 %v1806
    %vm1830 = vweird.f32 %v1824
    %vm1831 = vmor %vm1829, %vm1830
    %v1832 = vsel %vm1831, %v1824, %v1828
    %v1833 = vand.u32 2147483647, %v1806
    %vm1834 = vcmp.eq.f32.partialorder %v1833, 8.507059e+37
    %v1835 = vand.u32 %v1806, 2147483648
    %v1836 = vor.u32 1.1754944e-38, %v1835
    %v1837 = vsel %vm1834, %v1836, %v1832
    %v1838 = vmul.f32 1.0, %v1837
    %v1839 = vrcp.pop %v1807
    %v1840 = vmul.f32 %v1807, %v1839
    %v1841 = vsub.f32 1.0, %v1840
    %v1842 = vmul.f32 %v1839, %v1841
    %v1843 = vadd.f32 %v1839, %v1842
    %vm1844 = vweird.f32 %v1807
    %vm1845 = vweird.f32 %v1839
    %vm1846 = vmor %vm1844, %vm1845
    %v1847 = vsel %vm1846, %v1839, %v1843
    %v1848 = vand.u32 2147483647, %v1807
    %vm1849 = vcmp.eq.f32.partialorder %v1848, 8.507059e+37
    %v1850 = vand.u32 %v1807, 2147483648
    %v1851 = vor.u32 1.1754944e-38, %v1850
    %v1852 = vsel %vm1849, %v1851, %v1847
    %v1853 = vmul.f32 1.0, %v1852
    %v1854 = vrcp.pop %v1808
    %v1855 = vmul.f32 %v1808, %v1854
    %v1856 = vsub.f32 1.0, %v1855
    %v1857 = vmul.f32 %v1854, %v1856
    %v1858 = vadd.f32 %v1854, %v1857
    %vm1859 = vweird.f32 %v1808
    %vm1860 = vweird.f32 %v1854
    %vm1861 = vmor %vm1859, %vm1860
    %v1862 = vsel %vm1861, %v1854, %v1858
    %v1863 = vand.u32 2147483647, %v1808
    %vm1864 = vcmp.eq.f32.partialorder %v1863, 8.507059e+37
    %v1865 = vand.u32 %v1808, 2147483648
    %v1866 = vor.u32 1.1754944e-38, %v1865
    %v1867 = vsel %vm1864, %v1866, %v1862
    %v1868 = vmul.f32 1.0, %v1867
    %v1869 = vadd.f32 %v1698, %v136
    %v1870 = vadd.f32 %v1701, %v141
    %v1871 = vadd.f32 %v1704, %v146
    %v1872 = vadd.f32 %v1707, %v151
    %v1873 = vmul.f32 %v1743, %v1869
    %v1874 = vmul.f32 %v1758, %v1870
    %v1875 = vmul.f32 %v1773, %v1871
    %v1876 = vmul.f32 %v1788, %v1872
    %v1877 = vadd.f32 %v1645, %v1873
    %v1878 = vadd.f32 %v1648, %v1874
    %v1879 = vadd.f32 %v1651, %v1875
    %v1880 = vadd.f32 %v1654, %v1876
    %v1881 = vtanh.pop %v1877
    %v1882 = vtanh.pop %v1878
    %v1883 = vtanh.pop %v1879
    %v1884 = vtanh.pop %v1880
    %v1885 = vsub.f32 %v1302, %v1881
    %v1886 = vsub.f32 %v1303, %v1882
    %v1887 = vsub.f32 %v1304, %v1883
    %v1888 = vsub.f32 %v1305, %v1884
    %v1889 = vmul.f32 %v1823, %v1885
    %v1890 = vmul.f32 %v1838, %v1886
    %v1891 = vmul.f32 %v1853, %v1887
    %v1892 = vmul.f32 %v1868, %v1888
    %v1893 = vadd.f32 %v1881, %v1889
    %v1894 = vadd.f32 %v1882, %v1890
    %v1895 = vadd.f32 %v1883, %v1891
    %v1896 = vadd.f32 %v1884, %v1892
    %1897 = vmatpush.msra.mxu0 0.0
    %1898 = vmatpush.msra.mxu0 0.0
    %1899 = vmatpush.msra.mxu0 0.0
    %1900 = vmatpush.msra.mxu0 0.0
    %1901 = vmatpush.msra.mxu0 0.0
    %1902 = vmatpush.msra.mxu0 0.0
    %1903 = vmatpush.msra.mxu0 0.0
    %1904 = vmatpush.msra.mxu0 0.0
    %1905 = vmatpush.msra.mxu0 0.0
    %1906 = vmatpush.msra.mxu0 0.0
    %1907 = vmatpush.msra.mxu0 0.0
    %1908 = vmatpush.msra.mxu0 0.0
    %1909 = vmatpush.msra.mxu0 %v1896
    %1910 = vmatpush.msra.mxu0 %v1895
    %1911 = vmatpush.msra.mxu0 %v1894
    %1912 = vmatpush.msra.mxu0 %v1893
    %1913 = vmatmul.f32.gmra.mxu0 %v644
    %v1914 = vpop.f32.mrf.mxu0
    %v1915 = vadd.f32 %v192, %v1914
    %1916 = vmatmul.f32.gmra.mxu0 %v647
    %v1917 = vpop.f32.mrf.mxu0
    %v1918 = vadd.f32 %v197, %v1917
    %1919 = vmatmul.f32.gmra.mxu0 %v650
    %v1920 = vpop.f32.mrf.mxu0
    %v1921 = vadd.f32 %v202, %v1920
    %1922 = vmatmul.f32.gmra.mxu0 %v653
    %v1923 = vpop.f32.mrf.mxu0
    %v1924 = vadd.f32 %v207, %v1923
    %1925 = vmatmul.f32.gmra.mxu0 %v656
    %v1926 = vpop.f32.mrf.mxu0
    %v1927 = vadd.f32 %v212, %v1926
    %1928 = vmatmul.f32.gmra.mxu0 %v659
    %v1929 = vpop.f32.mrf.mxu0
    %v1930 = vadd.f32 %v217, %v1929
    %1931 = vmatmul.f32.gmra.mxu0 %v662
    %v1932 = vpop.f32.mrf.mxu0
    %v1933 = vadd.f32 %v222, %v1932
    %1934 = vmatmul.f32.gmra.mxu0 %v665
    %v1935 = vpop.f32.mrf.mxu0
    %v1936 = vadd.f32 %v227, %v1935
    %1937 = vmatmul.f32.gmra.mxu0 %v668
    %v1938 = vpop.f32.mrf.mxu0
    %v1939 = vadd.f32 %v232, %v1938
    %1940 = vmatmul.f32.gmra.mxu0 %v671
    %v1941 = vpop.f32.mrf.mxu0
    %v1942 = vadd.f32 %v237, %v1941
    %1943 = vmatmul.f32.gmra.mxu0 %v674
    %v1944 = vpop.f32.mrf.mxu0
    %v1945 = vadd.f32 %v242, %v1944
    %1946 = vmatmul.f32.gmra.mxu0 %v677
    %v1947 = vpop.f32.mrf.mxu0
    %v1948 = vadd.f32 %v247, %v1947
    %1949 = vdwg.mxu0
    %1950 = vmatpush.msra.mxu0 0.0
    %1951 = vmatpush.msra.mxu0 0.0
    %1952 = vmatpush.msra.mxu0 0.0
    %1953 = vmatpush.msra.mxu0 0.0
    %1954 = vmatpush.msra.mxu0 0.0
    %1955 = vmatpush.msra.mxu0 0.0
    %1956 = vmatpush.msra.mxu0 0.0
    %1957 = vmatpush.msra.mxu0 0.0
    %1958 = vmatpush.msra.mxu0 0.0
    %1959 = vmatpush.msra.mxu0 0.0
    %1960 = vmatpush.msra.mxu0 0.0
    %1961 = vmatpush.msra.mxu0 0.0
    %1962 = vmatpush.msra.mxu0 %v1599
    %1963 = vmatpush.msra.mxu0 %v1598
    %1964 = vmatpush.msra.mxu0 %v1597
    %1965 = vmatpush.msra.mxu0 %v1596
    %1966 = vmatmul.f32.gmra.mxu0 %v733
    %v1967 = vpop.f32.mrf.mxu0
    %v1968 = vadd.f32 0.0, %v1967
    %1969 = vmatmul.f32.gmra.mxu0 %v736
    %v1970 = vpop.f32.mrf.mxu0
    %v1971 = vadd.f32 0.0, %v1970
    %1972 = vmatmul.f32.gmra.mxu0 %v739
    %v1973 = vpop.f32.mrf.mxu0
    %v1974 = vadd.f32 0.0, %v1973
    %1975 = vmatmul.f32.gmra.mxu0 %v742
    %v1976 = vpop.f32.mrf.mxu0
    %v1977 = vadd.f32 0.0, %v1976
    %1978 = vmatmul.f32.gmra.mxu0 %v745
    %v1979 = vpop.f32.mrf.mxu0
    %v1980 = vadd.f32 0.0, %v1979
    %1981 = vmatmul.f32.gmra.mxu0 %v748
    %v1982 = vpop.f32.mrf.mxu0
    %v1983 = vadd.f32 0.0, %v1982
    %1984 = vmatmul.f32.gmra.mxu0 %v751
    %v1985 = vpop.f32.mrf.mxu0
    %v1986 = vadd.f32 0.0, %v1985
    %1987 = vmatmul.f32.gmra.mxu0 %v754
    %v1988 = vpop.f32.mrf.mxu0
    %v1989 = vadd.f32 0.0, %v1988
    %1990 = vmatmul.f32.gmra.mxu0 %v757
    %v1991 = vpop.f32.mrf.mxu0
    %v1992 = vadd.f32 0.0, %v1991
    %1993 = vmatmul.f32.gmra.mxu0 %v760
    %v1994 = vpop.f32.mrf.mxu0
    %v1995 = vadd.f32 0.0, %v1994
    %1996 = vmatmul.f32.gmra.mxu0 %v763
    %v1997 = vpop.f32.mrf.mxu0
    %v1998 = vadd.f32 0.0, %v1997
    %1999 = vmatmul.f32.gmra.mxu0 %v766
    %v2000 = vpop.f32.mrf.mxu0
    %v2001 = vadd.f32 0.0, %v2000
    %2002 = vdwg.mxu0
    %v2003 = vadd.f32 %v1915, %v1968
    %v2004 = vadd.f32 %v1918, %v1971
    %v2005 = vadd.f32 %v1921, %v1974
    %v2006 = vadd.f32 %v1924, %v1977
    %v2007 = vxor.u32 %v2003, 2147483648
    %v2008 = vxor.u32 %v2004, 2147483648
    %v2009 = vxor.u32 %v2005, 2147483648
    %v2010 = vxor.u32 %v2006, 2147483648
    %v2011 = vmul.f32 %v2007, 1.442695
    %v2012 = vpow.pop %v2011
    %v2013 = vmul.f32 %v2008, 1.442695
    %v2014 = vpow.pop %v2013
    %v2015 = vmul.f32 %v2009, 1.442695
    %v2016 = vpow.pop %v2015
    %v2017 = vmul.f32 %v2010, 1.442695
    %v2018 = vpow.pop %v2017
    %v2019 = vadd.f32 %v2012, 1.0
    %v2020 = vadd.f32 %v2014, 1.0
    %v2021 = vadd.f32 %v2016, 1.0
    %v2022 = vadd.f32 %v2018, 1.0
    %v2023 = vrcp.pop %v2019
    %v2024 = vmul.f32 %v2019, %v2023
    %v2025 = vsub.f32 1.0, %v2024
    %v2026 = vmul.f32 %v2023, %v2025
    %v2027 = vadd.f32 %v2023, %v2026
    %vm2028 = vweird.f32 %v2019
    %vm2029 = vweird.f32 %v2023
    %vm2030 = vmor %vm2028, %vm2029
    %v2031 = vsel %vm2030, %v2023, %v2027
    %v2032 = vand.u32 2147483647, %v2019
    %vm2033 = vcmp.eq.f32.partialorder %v2032, 8.507059e+37
    %v2034 = vand.u32 %v2019, 2147483648
    %v2035 = vor.u32 1.1754944e-38, %v2034
    %v2036 = vsel %vm2033, %v2035, %v2031
    %v2037 = vmul.f32 1.0, %v2036
    %v2038 = vrcp.pop %v2020
    %v2039 = vmul.f32 %v2020, %v2038
    %v2040 = vsub.f32 1.0, %v2039
    %v2041 = vmul.f32 %v2038, %v2040
    %v2042 = vadd.f32 %v2038, %v2041
    %vm2043 = vweird.f32 %v2020
    %vm2044 = vweird.f32 %v2038
    %vm2045 = vmor %vm2043, %vm2044
    %v2046 = vsel %vm2045, %v2038, %v2042
    %v2047 = vand.u32 2147483647, %v2020
    %vm2048 = vcmp.eq.f32.partialorder %v2047, 8.507059e+37
    %v2049 = vand.u32 %v2020, 2147483648
    %v2050 = vor.u32 1.1754944e-38, %v2049
    %v2051 = vsel %vm2048, %v2050, %v2046
    %v2052 = vmul.f32 1.0, %v2051
    %v2053 = vrcp.pop %v2021
    %v2054 = vmul.f32 %v2021, %v2053
    %v2055 = vsub.f32 1.0, %v2054
    %v2056 = vmul.f32 %v2053, %v2055
    %v2057 = vadd.f32 %v2053, %v2056
    %vm2058 = vweird.f32 %v2021
    %vm2059 = vweird.f32 %v2053
    %vm2060 = vmor %vm2058, %vm2059
    %v2061 = vsel %vm2060, %v2053, %v2057
    %v2062 = vand.u32 2147483647, %v2021
    %vm2063 = vcmp.eq.f32.partialorder %v2062, 8.507059e+37
    %v2064 = vand.u32 %v2021, 2147483648
    %v2065 = vor.u32 1.1754944e-38, %v2064
    %v2066 = vsel %vm2063, %v2065, %v2061
    %v2067 = vmul.f32 1.0, %v2066
    %v2068 = vrcp.pop %v2022
    %v2069 = vmul.f32 %v2022, %v2068
    %v2070 = vsub.f32 1.0, %v2069
    %v2071 = vmul.f32 %v2068, %v2070
    %v2072 = vadd.f32 %v2068, %v2071
    %vm2073 = vweird.f32 %v2022
    %vm2074 = vweird.f32 %v2068
    %vm2075 = vmor %vm2073, %vm2074
    %v2076 = vsel %vm2075, %v2068, %v2072
    %v2077 = vand.u32 2147483647, %v2022
    %vm2078 = vcmp.eq.f32.partialorder %v2077, 8.507059e+37
    %v2079 = vand.u32 %v2022, 2147483648
    %v2080 = vor.u32 1.1754944e-38, %v2079
    %v2081 = vsel %vm2078, %v2080, %v2076
    %v2082 = vmul.f32 1.0, %v2081
    %v2083 = vadd.f32 %v1927, %v1980
    %v2084 = vadd.f32 %v1930, %v1983
    %v2085 = vadd.f32 %v1933, %v1986
    %v2086 = vadd.f32 %v1936, %v1989
    %v2087 = vxor.u32 %v2083, 2147483648
    %v2088 = vxor.u32 %v2084, 2147483648
    %v2089 = vxor.u32 %v2085, 2147483648
    %v2090 = vxor.u32 %v2086, 2147483648
    %v2091 = vmul.f32 %v2087, 1.442695
    %v2092 = vpow.pop %v2091
    %v2093 = vmul.f32 %v2088, 1.442695
    %v2094 = vpow.pop %v2093
    %v2095 = vmul.f32 %v2089, 1.442695
    %v2096 = vpow.pop %v2095
    %v2097 = vmul.f32 %v2090, 1.442695
    %v2098 = vpow.pop %v2097
    %v2099 = vadd.f32 %v2092, 1.0
    %v2100 = vadd.f32 %v2094, 1.0
    %v2101 = vadd.f32 %v2096, 1.0
    %v2102 = vadd.f32 %v2098, 1.0
    %v2103 = vrcp.pop %v2099
    %v2104 = vmul.f32 %v2099, %v2103
    %v2105 = vsub.f32 1.0, %v2104
    %v2106 = vmul.f32 %v2103, %v2105
    %v2107 = vadd.f32 %v2103, %v2106
    %vm2108 = vweird.f32 %v2099
    %vm2109 = vweird.f32 %v2103
    %vm2110 = vmor %vm2108, %vm2109
    %v2111 = vsel %vm2110, %v2103, %v2107
    %v2112 = vand.u32 2147483647, %v2099
    %vm2113 = vcmp.eq.f32.partialorder %v2112, 8.507059e+37
    %v2114 = vand.u32 %v2099, 2147483648
    %v2115 = vor.u32 1.1754944e-38, %v2114
    %v2116 = vsel %vm2113, %v2115, %v2111
    %v2117 = vmul.f32 1.0, %v2116
    %v2118 = vrcp.pop %v2100
    %v2119 = vmul.f32 %v2100, %v2118
    %v2120 = vsub.f32 1.0, %v2119
    %v2121 = vmul.f32 %v2118, %v2120
    %v2122 = vadd.f32 %v2118, %v2121
    %vm2123 = vweird.f32 %v2100
    %vm2124 = vweird.f32 %v2118
    %vm2125 = vmor %vm2123, %vm2124
    %v2126 = vsel %vm2125, %v2118, %v2122
    %v2127 = vand.u32 2147483647, %v2100
    %vm2128 = vcmp.eq.f32.partialorder %v2127, 8.507059e+37
    %v2129 = vand.u32 %v2100, 2147483648
    %v2130 = vor.u32 1.1754944e-38, %v2129
    %v2131 = vsel %vm2128, %v2130, %v2126
    %v2132 = vmul.f32 1.0, %v2131
    %v2133 = vrcp.pop %v2101
    %v2134 = vmul.f32 %v2101, %v2133
    %v2135 = vsub.f32 1.0, %v2134
    %v2136 = vmul.f32 %v2133, %v2135
    %v2137 = vadd.f32 %v2133, %v2136
    %vm2138 = vweird.f32 %v2101
    %vm2139 = vweird.f32 %v2133
    %vm2140 = vmor %vm2138, %vm2139
    %v2141 = vsel %vm2140, %v2133, %v2137
    %v2142 = vand.u32 2147483647, %v2101
    %vm2143 = vcmp.eq.f32.partialorder %v2142, 8.507059e+37
    %v2144 = vand.u32 %v2101, 2147483648
    %v2145 = vor.u32 1.1754944e-38, %v2144
    %v2146 = vsel %vm2143, %v2145, %v2141
    %v2147 = vmul.f32 1.0, %v2146
    %v2148 = vrcp.pop %v2102
    %v2149 = vmul.f32 %v2102, %v2148
    %v2150 = vsub.f32 1.0, %v2149
    %v2151 = vmul.f32 %v2148, %v2150
    %v2152 = vadd.f32 %v2148, %v2151
    %vm2153 = vweird.f32 %v2102
    %vm2154 = vweird.f32 %v2148
    %vm2155 = vmor %vm2153, %vm2154
    %v2156 = vsel %vm2155, %v2148, %v2152
    %v2157 = vand.u32 2147483647, %v2102
    %vm2158 = vcmp.eq.f32.partialorder %v2157, 8.507059e+37
    %v2159 = vand.u32 %v2102, 2147483648
    %v2160 = vor.u32 1.1754944e-38, %v2159
    %v2161 = vsel %vm2158, %v2160, %v2156
    %v2162 = vmul.f32 1.0, %v2161
    %v2163 = vadd.f32 %v1992, %v256
    %v2164 = vadd.f32 %v1995, %v261
    %v2165 = vadd.f32 %v1998, %v266
    %v2166 = vadd.f32 %v2001, %v271
    %v2167 = vmul.f32 %v2037, %v2163
    %v2168 = vmul.f32 %v2052, %v2164
    %v2169 = vmul.f32 %v2067, %v2165
    %v2170 = vmul.f32 %v2082, %v2166
    %v2171 = vadd.f32 %v1939, %v2167
    %v2172 = vadd.f32 %v1942, %v2168
    %v2173 = vadd.f32 %v1945, %v2169
    %v2174 = vadd.f32 %v1948, %v2170
    %v2175 = vtanh.pop %v2171
    %v2176 = vtanh.pop %v2172
    %v2177 = vtanh.pop %v2173
    %v2178 = vtanh.pop %v2174
    %v2179 = vsub.f32 %v1596, %v2175
    %v2180 = vsub.f32 %v1597, %v2176
    %v2181 = vsub.f32 %v1598, %v2177
    %v2182 = vsub.f32 %v1599, %v2178
    %v2183 = vmul.f32 %v2117, %v2179
    %v2184 = vmul.f32 %v2132, %v2180
    %v2185 = vmul.f32 %v2147, %v2181
    %v2186 = vmul.f32 %v2162, %v2182
    %v2187 = vadd.f32 %v2175, %v2183
    %v2188 = vadd.f32 %v2176, %v2184
    %v2189 = vadd.f32 %v2177, %v2185
    %v2190 = vadd.f32 %v2178, %v2186
    %s2191 = scalar_lea.vmem %s0, 48
    %v2192 = vld [vmem:[%s2191] sm:$0xff]
    %v2193 = vld [vmem:[%s2191 + $0x8] sm:$0xff]
    %2194 = vmatpush.msra.mxu0 0.0
    %2195 = vmatpush.msra.mxu0 0.0
    %2196 = vmatpush.msra.mxu0 0.0
    %2197 = vmatpush.msra.mxu0 0.0
    %2198 = vmatpush.msra.mxu0 0.0
    %2199 = vmatpush.msra.mxu0 0.0
    %2200 = vmatpush.msra.mxu0 0.0
    %2201 = vmatpush.msra.mxu0 0.0
    %2202 = vmatpush.msra.mxu0 0.0
    %2203 = vmatpush.msra.mxu0 0.0
    %2204 = vmatpush.msra.mxu0 0.0
    %2205 = vmatpush.msra.mxu0 0.0
    %2206 = vmatpush.msra.mxu0 0.0
    %2207 = vmatpush.msra.mxu0 0.0
    %2208 = vmatpush.msra.mxu0 %v2193
    %2209 = vmatpush.msra.mxu0 %v2192
    %2210 = vmatmul.f32.gmra.mxu0 %v277
    %v2211 = vpop.f32.mrf.mxu0
    %v2212 = vadd.f32 %v72, %v2211
    %2213 = vmatmul.f32.gmra.mxu0 %v280
    %v2214 = vpop.f32.mrf.mxu0
    %v2215 = vadd.f32 %v77, %v2214
    %2216 = vmatmul.f32.gmra.mxu0 %v283
    %v2217 = vpop.f32.mrf.mxu0
    %v2218 = vadd.f32 %v82, %v2217
    %2219 = vmatmul.f32.gmra.mxu0 %v286
    %v2220 = vpop.f32.mrf.mxu0
    %v2221 = vadd.f32 %v87, %v2220
    %2222 = vmatmul.f32.gmra.mxu0 %v289
    %v2223 = vpop.f32.mrf.mxu0
    %v2224 = vadd.f32 %v92, %v2223
    %2225 = vmatmul.f32.gmra.mxu0 %v292
    %v2226 = vpop.f32.mrf.mxu0
    %v2227 = vadd.f32 %v97, %v2226
    %2228 = vmatmul.f32.gmra.mxu0 %v295
    %v2229 = vpop.f32.mrf.mxu0
    %v2230 = vadd.f32 %v102, %v2229
    %2231 = vmatmul.f32.gmra.mxu0 %v298
    %v2232 = vpop.f32.mrf.mxu0
    %v2233 = vadd.f32 %v107, %v2232
    %2234 = vmatmul.f32.gmra.mxu0 %v301
    %v2235 = vpop.f32.mrf.mxu0
    %v2236 = vadd.f32 %v112, %v2235
    %2237 = vmatmul.f32.gmra.mxu0 %v304
    %v2238 = vpop.f32.mrf.mxu0
    %v2239 = vadd.f32 %v117, %v2238
    %2240 = vmatmul.f32.gmra.mxu0 %v307
    %v2241 = vpop.f32.mrf.mxu0
    %v2242 = vadd.f32 %v122, %v2241
    %2243 = vmatmul.f32.gmra.mxu0 %v310
    %v2244 = vpop.f32.mrf.mxu0
    %v2245 = vadd.f32 %v127, %v2244
    %2246 = vdwg.mxu0
    %2247 = vmatpush.msra.mxu0 0.0
    %2248 = vmatpush.msra.mxu0 0.0
    %2249 = vmatpush.msra.mxu0 0.0
    %2250 = vmatpush.msra.mxu0 0.0
    %2251 = vmatpush.msra.mxu0 0.0
    %2252 = vmatpush.msra.mxu0 0.0
    %2253 = vmatpush.msra.mxu0 0.0
    %2254 = vmatpush.msra.mxu0 0.0
    %2255 = vmatpush.msra.mxu0 0.0
    %2256 = vmatpush.msra.mxu0 0.0
    %2257 = vmatpush.msra.mxu0 0.0
    %2258 = vmatpush.msra.mxu0 0.0
    %2259 = vmatpush.msra.mxu0 %v1896
    %2260 = vmatpush.msra.mxu0 %v1895
    %2261 = vmatpush.msra.mxu0 %v1894
    %2262 = vmatpush.msra.mxu0 %v1893
    %2263 = vmatmul.f32.gmra.mxu0 %v367
    %v2264 = vpop.f32.mrf.mxu0
    %v2265 = vadd.f32 0.0, %v2264
    %2266 = vmatmul.f32.gmra.mxu0 %v370
    %v2267 = vpop.f32.mrf.mxu0
    %v2268 = vadd.f32 0.0, %v2267
    %2269 = vmatmul.f32.gmra.mxu0 %v373
    %v2270 = vpop.f32.mrf.mxu0
    %v2271 = vadd.f32 0.0, %v2270
    %2272 = vmatmul.f32.gmra.mxu0 %v376
    %v2273 = vpop.f32.mrf.mxu0
    %v2274 = vadd.f32 0.0, %v2273
    %2275 = vmatmul.f32.gmra.mxu0 %v379
    %v2276 = vpop.f32.mrf.mxu0
    %v2277 = vadd.f32 0.0, %v2276
    %2278 = vmatmul.f32.gmra.mxu0 %v382
    %v2279 = vpop.f32.mrf.mxu0
    %v2280 = vadd.f32 0.0, %v2279
    %2281 = vmatmul.f32.gmra.mxu0 %v385
    %v2282 = vpop.f32.mrf.mxu0
    %v2283 = vadd.f32 0.0, %v2282
    %2284 = vmatmul.f32.gmra.mxu0 %v388
    %v2285 = vpop.f32.mrf.mxu0
    %v2286 = vadd.f32 0.0, %v2285
    %2287 = vmatmul.f32.gmra.mxu0 %v391
    %v2288 = vpop.f32.mrf.mxu0
    %v2289 = vadd.f32 0.0, %v2288
    %2290 = vmatmul.f32.gmra.mxu0 %v394
    %v2291 = vpop.f32.mrf.mxu0
    %v2292 = vadd.f32 0.0, %v2291
    %2293 = vmatmul.f32.gmra.mxu0 %v397
    %v2294 = vpop.f32.mrf.mxu0
    %v2295 = vadd.f32 0.0, %v2294
    %2296 = vmatmul.f32.gmra.mxu0 %v400
    %v2297 = vpop.f32.mrf.mxu0
    %v2298 = vadd.f32 0.0, %v2297
    %2299 = vdwg.mxu0
    %v2300 = vadd.f32 %v2212, %v2265
    %v2301 = vadd.f32 %v2215, %v2268
    %v2302 = vadd.f32 %v2218, %v2271
    %v2303 = vadd.f32 %v2221, %v2274
    %v2304 = vxor.u32 %v2300, 2147483648
    %v2305 = vxor.u32 %v2301, 2147483648
    %v2306 = vxor.u32 %v2302, 2147483648
    %v2307 = vxor.u32 %v2303, 2147483648
    %v2308 = vmul.f32 %v2304, 1.442695
    %v2309 = vpow.pop %v2308
    %v2310 = vmul.f32 %v2305, 1.442695
    %v2311 = vpow.pop %v2310
    %v2312 = vmul.f32 %v2306, 1.442695
    %v2313 = vpow.pop %v2312
    %v2314 = vmul.f32 %v2307, 1.442695
    %v2315 = vpow.pop %v2314
    %v2316 = vadd.f32 %v2309, 1.0
    %v2317 = vadd.f32 %v2311, 1.0
    %v2318 = vadd.f32 %v2313, 1.0
    %v2319 = vadd.f32 %v2315, 1.0
    %v2320 = vrcp.pop %v2316
    %v2321 = vmul.f32 %v2316, %v2320
    %v2322 = vsub.f32 1.0, %v2321
    %v2323 = vmul.f32 %v2320, %v2322
    %v2324 = vadd.f32 %v2320, %v2323
    %vm2325 = vweird.f32 %v2316
    %vm2326 = vweird.f32 %v2320
    %vm2327 = vmor %vm2325, %vm2326
    %v2328 = vsel %vm2327, %v2320, %v2324
    %v2329 = vand.u32 2147483647, %v2316
    %vm2330 = vcmp.eq.f32.partialorder %v2329, 8.507059e+37
    %v2331 = vand.u32 %v2316, 2147483648
    %v2332 = vor.u32 1.1754944e-38, %v2331
    %v2333 = vsel %vm2330, %v2332, %v2328
    %v2334 = vmul.f32 1.0, %v2333
    %v2335 = vrcp.pop %v2317
    %v2336 = vmul.f32 %v2317, %v2335
    %v2337 = vsub.f32 1.0, %v2336
    %v2338 = vmul.f32 %v2335, %v2337
    %v2339 = vadd.f32 %v2335, %v2338
    %vm2340 = vweird.f32 %v2317
    %vm2341 = vweird.f32 %v2335
    %vm2342 = vmor %vm2340, %vm2341
    %v2343 = vsel %vm2342, %v2335, %v2339
    %v2344 = vand.u32 2147483647, %v2317
    %vm2345 = vcmp.eq.f32.partialorder %v2344, 8.507059e+37
    %v2346 = vand.u32 %v2317, 2147483648
    %v2347 = vor.u32 1.1754944e-38, %v2346
    %v2348 = vsel %vm2345, %v2347, %v2343
    %v2349 = vmul.f32 1.0, %v2348
    %v2350 = vrcp.pop %v2318
    %v2351 = vmul.f32 %v2318, %v2350
    %v2352 = vsub.f32 1.0, %v2351
    %v2353 = vmul.f32 %v2350, %v2352
    %v2354 = vadd.f32 %v2350, %v2353
    %vm2355 = vweird.f32 %v2318
    %vm2356 = vweird.f32 %v2350
    %vm2357 = vmor %vm2355, %vm2356
    %v2358 = vsel %vm2357, %v2350, %v2354
    %v2359 = vand.u32 2147483647, %v2318
    %vm2360 = vcmp.eq.f32.partialorder %v2359, 8.507059e+37
    %v2361 = vand.u32 %v2318, 2147483648
    %v2362 = vor.u32 1.1754944e-38, %v2361
    %v2363 = vsel %vm2360, %v2362, %v2358
    %v2364 = vmul.f32 1.0, %v2363
    %v2365 = vrcp.pop %v2319
    %v2366 = vmul.f32 %v2319, %v2365
    %v2367 = vsub.f32 1.0, %v2366
    %v2368 = vmul.f32 %v2365, %v2367
    %v2369 = vadd.f32 %v2365, %v2368
    %vm2370 = vweird.f32 %v2319
    %vm2371 = vweird.f32 %v2365
    %vm2372 = vmor %vm2370, %vm2371
    %v2373 = vsel %vm2372, %v2365, %v2369
    %v2374 = vand.u32 2147483647, %v2319
    %vm2375 = vcmp.eq.f32.partialorder %v2374, 8.507059e+37
    %v2376 = vand.u32 %v2319, 2147483648
    %v2377 = vor.u32 1.1754944e-38, %v2376
    %v2378 = vsel %vm2375, %v2377, %v2373
    %v2379 = vmul.f32 1.0, %v2378
    %v2380 = vadd.f32 %v2224, %v2277
    %v2381 = vadd.f32 %v2227, %v2280
    %v2382 = vadd.f32 %v2230, %v2283
    %v2383 = vadd.f32 %v2233, %v2286
    %v2384 = vxor.u32 %v2380, 2147483648
    %v2385 = vxor.u32 %v2381, 2147483648
    %v2386 = vxor.u32 %v2382, 2147483648
    %v2387 = vxor.u32 %v2383, 2147483648
    %v2388 = vmul.f32 %v2384, 1.442695
    %v2389 = vpow.pop %v2388
    %v2390 = vmul.f32 %v2385, 1.442695
    %v2391 = vpow.pop %v2390
    %v2392 = vmul.f32 %v2386, 1.442695
    %v2393 = vpow.pop %v2392
    %v2394 = vmul.f32 %v2387, 1.442695
    %v2395 = vpow.pop %v2394
    %v2396 = vadd.f32 %v2389, 1.0
    %v2397 = vadd.f32 %v2391, 1.0
    %v2398 = vadd.f32 %v2393, 1.0
    %v2399 = vadd.f32 %v2395, 1.0
    %v2400 = vrcp.pop %v2396
    %v2401 = vmul.f32 %v2396, %v2400
    %v2402 = vsub.f32 1.0, %v2401
    %v2403 = vmul.f32 %v2400, %v2402
    %v2404 = vadd.f32 %v2400, %v2403
    %vm2405 = vweird.f32 %v2396
    %vm2406 = vweird.f32 %v2400
    %vm2407 = vmor %vm2405, %vm2406
    %v2408 = vsel %vm2407, %v2400, %v2404
    %v2409 = vand.u32 2147483647, %v2396
    %vm2410 = vcmp.eq.f32.partialorder %v2409, 8.507059e+37
    %v2411 = vand.u32 %v2396, 2147483648
    %v2412 = vor.u32 1.1754944e-38, %v2411
    %v2413 = vsel %vm2410, %v2412, %v2408
    %v2414 = vmul.f32 1.0, %v2413
    %v2415 = vrcp.pop %v2397
    %v2416 = vmul.f32 %v2397, %v2415
    %v2417 = vsub.f32 1.0, %v2416
    %v2418 = vmul.f32 %v2415, %v2417
    %v2419 = vadd.f32 %v2415, %v2418
    %vm2420 = vweird.f32 %v2397
    %vm2421 = vweird.f32 %v2415
    %vm2422 = vmor %vm2420, %vm2421
    %v2423 = vsel %vm2422, %v2415, %v2419
    %v2424 = vand.u32 2147483647, %v2397
    %vm2425 = vcmp.eq.f32.partialorder %v2424, 8.507059e+37
    %v2426 = vand.u32 %v2397, 2147483648
    %v2427 = vor.u32 1.1754944e-38, %v2426
    %v2428 = vsel %vm2425, %v2427, %v2423
    %v2429 = vmul.f32 1.0, %v2428
    %v2430 = vrcp.pop %v2398
    %v2431 = vmul.f32 %v2398, %v2430
    %v2432 = vsub.f32 1.0, %v2431
    %v2433 = vmul.f32 %v2430, %v2432
    %v2434 = vadd.f32 %v2430, %v2433
    %vm2435 = vweird.f32 %v2398
    %vm2436 = vweird.f32 %v2430
    %vm2437 = vmor %vm2435, %vm2436
    %v2438 = vsel %vm2437, %v2430, %v2434
    %v2439 = vand.u32 2147483647, %v2398
    %vm2440 = vcmp.eq.f32.partialorder %v2439, 8.507059e+37
    %v2441 = vand.u32 %v2398, 2147483648
    %v2442 = vor.u32 1.1754944e-38, %v2441
    %v2443 = vsel %vm2440, %v2442, %v2438
    %v2444 = vmul.f32 1.0, %v2443
    %v2445 = vrcp.pop %v2399
    %v2446 = vmul.f32 %v2399, %v2445
    %v2447 = vsub.f32 1.0, %v2446
    %v2448 = vmul.f32 %v2445, %v2447
    %v2449 = vadd.f32 %v2445, %v2448
    %vm2450 = vweird.f32 %v2399
    %vm2451 = vweird.f32 %v2445
    %vm2452 = vmor %vm2450, %vm2451
    %v2453 = vsel %vm2452, %v2445, %v2449
    %v2454 = vand.u32 2147483647, %v2399
    %vm2455 = vcmp.eq.f32.partialorder %v2454, 8.507059e+37
    %v2456 = vand.u32 %v2399, 2147483648
    %v2457 = vor.u32 1.1754944e-38, %v2456
    %v2458 = vsel %vm2455, %v2457, %v2453
    %v2459 = vmul.f32 1.0, %v2458
    %v2460 = vadd.f32 %v2289, %v136
    %v2461 = vadd.f32 %v2292, %v141
    %v2462 = vadd.f32 %v2295, %v146
    %v2463 = vadd.f32 %v2298, %v151
    %v2464 = vmul.f32 %v2334, %v2460
    %v2465 = vmul.f32 %v2349, %v2461
    %v2466 = vmul.f32 %v2364, %v2462
    %v2467 = vmul.f32 %v2379, %v2463
    %v2468 = vadd.f32 %v2236, %v2464
    %v2469 = vadd.f32 %v2239, %v2465
    %v2470 = vadd.f32 %v2242, %v2466
    %v2471 = vadd.f32 %v2245, %v2467
    %v2472 = vtanh.pop %v2468
    %v2473 = vtanh.pop %v2469
    %v2474 = vtanh.pop %v2470
    %v2475 = vtanh.pop %v2471
    %v2476 = vsub.f32 %v1893, %v2472
    %v2477 = vsub.f32 %v1894, %v2473
    %v2478 = vsub.f32 %v1895, %v2474
    %v2479 = vsub.f32 %v1896, %v2475
    %v2480 = vmul.f32 %v2414, %v2476
    %v2481 = vmul.f32 %v2429, %v2477
    %v2482 = vmul.f32 %v2444, %v2478
    %v2483 = vmul.f32 %v2459, %v2479
    %v2484 = vadd.f32 %v2472, %v2480
    %v2485 = vadd.f32 %v2473, %v2481
    %v2486 = vadd.f32 %v2474, %v2482
    %v2487 = vadd.f32 %v2475, %v2483
    %2488 = vmatpush.msra.mxu0 0.0
    %2489 = vmatpush.msra.mxu0 0.0
    %2490 = vmatpush.msra.mxu0 0.0
    %2491 = vmatpush.msra.mxu0 0.0
    %2492 = vmatpush.msra.mxu0 0.0
    %2493 = vmatpush.msra.mxu0 0.0
    %2494 = vmatpush.msra.mxu0 0.0
    %2495 = vmatpush.msra.mxu0 0.0
    %2496 = vmatpush.msra.mxu0 0.0
    %2497 = vmatpush.msra.mxu0 0.0
    %2498 = vmatpush.msra.mxu0 0.0
    %2499 = vmatpush.msra.mxu0 0.0
    %2500 = vmatpush.msra.mxu0 %v2487
    %2501 = vmatpush.msra.mxu0 %v2486
    %2502 = vmatpush.msra.mxu0 %v2485
    %2503 = vmatpush.msra.mxu0 %v2484
    %2504 = vmatmul.f32.gmra.mxu0 %v644
    %v2505 = vpop.f32.mrf.mxu0
    %v2506 = vadd.f32 %v192, %v2505
    %2507 = vmatmul.f32.gmra.mxu0 %v647
    %v2508 = vpop.f32.mrf.mxu0
    %v2509 = vadd.f32 %v197, %v2508
    %2510 = vmatmul.f32.gmra.mxu0 %v650
    %v2511 = vpop.f32.mrf.mxu0
    %v2512 = vadd.f32 %v202, %v2511
    %2513 = vmatmul.f32.gmra.mxu0 %v653
    %v2514 = vpop.f32.mrf.mxu0
    %v2515 = vadd.f32 %v207, %v2514
    %2516 = vmatmul.f32.gmra.mxu0 %v656
    %v2517 = vpop.f32.mrf.mxu0
    %v2518 = vadd.f32 %v212, %v2517
    %2519 = vmatmul.f32.gmra.mxu0 %v659
    %v2520 = vpop.f32.mrf.mxu0
    %v2521 = vadd.f32 %v217, %v2520
    %2522 = vmatmul.f32.gmra.mxu0 %v662
    %v2523 = vpop.f32.mrf.mxu0
    %v2524 = vadd.f32 %v222, %v2523
    %2525 = vmatmul.f32.gmra.mxu0 %v665
    %v2526 = vpop.f32.mrf.mxu0
    %v2527 = vadd.f32 %v227, %v2526
    %2528 = vmatmul.f32.gmra.mxu0 %v668
    %v2529 = vpop.f32.mrf.mxu0
    %v2530 = vadd.f32 %v232, %v2529
    %2531 = vmatmul.f32.gmra.mxu0 %v671
    %v2532 = vpop.f32.mrf.mxu0
    %v2533 = vadd.f32 %v237, %v2532
    %2534 = vmatmul.f32.gmra.mxu0 %v674
    %v2535 = vpop.f32.mrf.mxu0
    %v2536 = vadd.f32 %v242, %v2535
    %2537 = vmatmul.f32.gmra.mxu0 %v677
    %v2538 = vpop.f32.mrf.mxu0
    %v2539 = vadd.f32 %v247, %v2538
    %2540 = vdwg.mxu0
    %2541 = vmatpush.msra.mxu0 0.0
    %2542 = vmatpush.msra.mxu0 0.0
    %2543 = vmatpush.msra.mxu0 0.0
    %2544 = vmatpush.msra.mxu0 0.0
    %2545 = vmatpush.msra.mxu0 0.0
    %2546 = vmatpush.msra.mxu0 0.0
    %2547 = vmatpush.msra.mxu0 0.0
    %2548 = vmatpush.msra.mxu0 0.0
    %2549 = vmatpush.msra.mxu0 0.0
    %2550 = vmatpush.msra.mxu0 0.0
    %2551 = vmatpush.msra.mxu0 0.0
    %2552 = vmatpush.msra.mxu0 0.0
    %2553 = vmatpush.msra.mxu0 %v2190
    %2554 = vmatpush.msra.mxu0 %v2189
    %2555 = vmatpush.msra.mxu0 %v2188
    %2556 = vmatpush.msra.mxu0 %v2187
    %2557 = vmatmul.f32.gmra.mxu0 %v733
    %v2558 = vpop.f32.mrf.mxu0
    %v2559 = vadd.f32 0.0, %v2558
    %2560 = vmatmul.f32.gmra.mxu0 %v736
    %v2561 = vpop.f32.mrf.mxu0
    %v2562 = vadd.f32 0.0, %v2561
    %2563 = vmatmul.f32.gmra.mxu0 %v739
    %v2564 = vpop.f32.mrf.mxu0
    %v2565 = vadd.f32 0.0, %v2564
    %2566 = vmatmul.f32.gmra.mxu0 %v742
    %v2567 = vpop.f32.mrf.mxu0
    %v2568 = vadd.f32 0.0, %v2567
    %2569 = vmatmul.f32.gmra.mxu0 %v745
    %v2570 = vpop.f32.mrf.mxu0
    %v2571 = vadd.f32 0.0, %v2570
    %2572 = vmatmul.f32.gmra.mxu0 %v748
    %v2573 = vpop.f32.mrf.mxu0
    %v2574 = vadd.f32 0.0, %v2573
    %2575 = vmatmul.f32.gmra.mxu0 %v751
    %v2576 = vpop.f32.mrf.mxu0
    %v2577 = vadd.f32 0.0, %v2576
    %2578 = vmatmul.f32.gmra.mxu0 %v754
    %v2579 = vpop.f32.mrf.mxu0
    %v2580 = vadd.f32 0.0, %v2579
    %2581 = vmatmul.f32.gmra.mxu0 %v757
    %v2582 = vpop.f32.mrf.mxu0
    %v2583 = vadd.f32 0.0, %v2582
    %2584 = vmatmul.f32.gmra.mxu0 %v760
    %v2585 = vpop.f32.mrf.mxu0
    %v2586 = vadd.f32 0.0, %v2585
    %2587 = vmatmul.f32.gmra.mxu0 %v763
    %v2588 = vpop.f32.mrf.mxu0
    %v2589 = vadd.f32 0.0, %v2588
    %2590 = vmatmul.f32.gmra.mxu0 %v766
    %v2591 = vpop.f32.mrf.mxu0
    %v2592 = vadd.f32 0.0, %v2591
    %2593 = vdwg.mxu0
    %v2594 = vadd.f32 %v2506, %v2559
    %v2595 = vadd.f32 %v2509, %v2562
    %v2596 = vadd.f32 %v2512, %v2565
    %v2597 = vadd.f32 %v2515, %v2568
    %v2598 = vxor.u32 %v2594, 2147483648
    %v2599 = vxor.u32 %v2595, 2147483648
    %v2600 = vxor.u32 %v2596, 2147483648
    %v2601 = vxor.u32 %v2597, 2147483648
    %v2602 = vmul.f32 %v2598, 1.442695
    %v2603 = vpow.pop %v2602
    %v2604 = vmul.f32 %v2599, 1.442695
    %v2605 = vpow.pop %v2604
    %v2606 = vmul.f32 %v2600, 1.442695
    %v2607 = vpow.pop %v2606
    %v2608 = vmul.f32 %v2601, 1.442695
    %v2609 = vpow.pop %v2608
    %v2610 = vadd.f32 %v2603, 1.0
    %v2611 = vadd.f32 %v2605, 1.0
    %v2612 = vadd.f32 %v2607, 1.0
    %v2613 = vadd.f32 %v2609, 1.0
    %v2614 = vrcp.pop %v2610
    %v2615 = vmul.f32 %v2610, %v2614
    %v2616 = vsub.f32 1.0, %v2615
    %v2617 = vmul.f32 %v2614, %v2616
    %v2618 = vadd.f32 %v2614, %v2617
    %vm2619 = vweird.f32 %v2610
    %vm2620 = vweird.f32 %v2614
    %vm2621 = vmor %vm2619, %vm2620
    %v2622 = vsel %vm2621, %v2614, %v2618
    %v2623 = vand.u32 2147483647, %v2610
    %vm2624 = vcmp.eq.f32.partialorder %v2623, 8.507059e+37
    %v2625 = vand.u32 %v2610, 2147483648
    %v2626 = vor.u32 1.1754944e-38, %v2625
    %v2627 = vsel %vm2624, %v2626, %v2622
    %v2628 = vmul.f32 1.0, %v2627
    %v2629 = vrcp.pop %v2611
    %v2630 = vmul.f32 %v2611, %v2629
    %v2631 = vsub.f32 1.0, %v2630
    %v2632 = vmul.f32 %v2629, %v2631
    %v2633 = vadd.f32 %v2629, %v2632
    %vm2634 = vweird.f32 %v2611
    %vm2635 = vweird.f32 %v2629
    %vm2636 = vmor %vm2634, %vm2635
    %v2637 = vsel %vm2636, %v2629, %v2633
    %v2638 = vand.u32 2147483647, %v2611
    %vm2639 = vcmp.eq.f32.partialorder %v2638, 8.507059e+37
    %v2640 = vand.u32 %v2611, 2147483648
    %v2641 = vor.u32 1.1754944e-38, %v2640
    %v2642 = vsel %vm2639, %v2641, %v2637
    %v2643 = vmul.f32 1.0, %v2642
    %v2644 = vrcp.pop %v2612
    %v2645 = vmul.f32 %v2612, %v2644
    %v2646 = vsub.f32 1.0, %v2645
    %v2647 = vmul.f32 %v2644, %v2646
    %v2648 = vadd.f32 %v2644, %v2647
    %vm2649 = vweird.f32 %v2612
    %vm2650 = vweird.f32 %v2644
    %vm2651 = vmor %vm2649, %vm2650
    %v2652 = vsel %vm2651, %v2644, %v2648
    %v2653 = vand.u32 2147483647, %v2612
    %vm2654 = vcmp.eq.f32.partialorder %v2653, 8.507059e+37
    %v2655 = vand.u32 %v2612, 2147483648
    %v2656 = vor.u32 1.1754944e-38, %v2655
    %v2657 = vsel %vm2654, %v2656, %v2652
    %v2658 = vmul.f32 1.0, %v2657
    %v2659 = vrcp.pop %v2613
    %v2660 = vmul.f32 %v2613, %v2659
    %v2661 = vsub.f32 1.0, %v2660
    %v2662 = vmul.f32 %v2659, %v2661
    %v2663 = vadd.f32 %v2659, %v2662
    %vm2664 = vweird.f32 %v2613
    %vm2665 = vweird.f32 %v2659
    %vm2666 = vmor %vm2664, %vm2665
    %v2667 = vsel %vm2666, %v2659, %v2663
    %v2668 = vand.u32 2147483647, %v2613
    %vm2669 = vcmp.eq.f32.partialorder %v2668, 8.507059e+37
    %v2670 = vand.u32 %v2613, 2147483648
    %v2671 = vor.u32 1.1754944e-38, %v2670
    %v2672 = vsel %vm2669, %v2671, %v2667
    %v2673 = vmul.f32 1.0, %v2672
    %v2674 = vadd.f32 %v2518, %v2571
    %v2675 = vadd.f32 %v2521, %v2574
    %v2676 = vadd.f32 %v2524, %v2577
    %v2677 = vadd.f32 %v2527, %v2580
    %v2678 = vxor.u32 %v2674, 2147483648
    %v2679 = vxor.u32 %v2675, 2147483648
    %v2680 = vxor.u32 %v2676, 2147483648
    %v2681 = vxor.u32 %v2677, 2147483648
    %v2682 = vmul.f32 %v2678, 1.442695
    %v2683 = vpow.pop %v2682
    %v2684 = vmul.f32 %v2679, 1.442695
    %v2685 = vpow.pop %v2684
    %v2686 = vmul.f32 %v2680, 1.442695
    %v2687 = vpow.pop %v2686
    %v2688 = vmul.f32 %v2681, 1.442695
    %v2689 = vpow.pop %v2688
    %v2690 = vadd.f32 %v2683, 1.0
    %v2691 = vadd.f32 %v2685, 1.0
    %v2692 = vadd.f32 %v2687, 1.0
    %v2693 = vadd.f32 %v2689, 1.0
    %v2694 = vrcp.pop %v2690
    %v2695 = vmul.f32 %v2690, %v2694
    %v2696 = vsub.f32 1.0, %v2695
    %v2697 = vmul.f32 %v2694, %v2696
    %v2698 = vadd.f32 %v2694, %v2697
    %vm2699 = vweird.f32 %v2690
    %vm2700 = vweird.f32 %v2694
    %vm2701 = vmor %vm2699, %vm2700
    %v2702 = vsel %vm2701, %v2694, %v2698
    %v2703 = vand.u32 2147483647, %v2690
    %vm2704 = vcmp.eq.f32.partialorder %v2703, 8.507059e+37
    %v2705 = vand.u32 %v2690, 2147483648
    %v2706 = vor.u32 1.1754944e-38, %v2705
    %v2707 = vsel %vm2704, %v2706, %v2702
    %v2708 = vmul.f32 1.0, %v2707
    %v2709 = vrcp.pop %v2691
    %v2710 = vmul.f32 %v2691, %v2709
    %v2711 = vsub.f32 1.0, %v2710
    %v2712 = vmul.f32 %v2709, %v2711
    %v2713 = vadd.f32 %v2709, %v2712
    %vm2714 = vweird.f32 %v2691
    %vm2715 = vweird.f32 %v2709
    %vm2716 = vmor %vm2714, %vm2715
    %v2717 = vsel %vm2716, %v2709, %v2713
    %v2718 = vand.u32 2147483647, %v2691
    %vm2719 = vcmp.eq.f32.partialorder %v2718, 8.507059e+37
    %v2720 = vand.u32 %v2691, 2147483648
    %v2721 = vor.u32 1.1754944e-38, %v2720
    %v2722 = vsel %vm2719, %v2721, %v2717
    %v2723 = vmul.f32 1.0, %v2722
    %v2724 = vrcp.pop %v2692
    %v2725 = vmul.f32 %v2692, %v2724
    %v2726 = vsub.f32 1.0, %v2725
    %v2727 = vmul.f32 %v2724, %v2726
    %v2728 = vadd.f32 %v2724, %v2727
    %vm2729 = vweird.f32 %v2692
    %vm2730 = vweird.f32 %v2724
    %vm2731 = vmor %vm2729, %vm2730
    %v2732 = vsel %vm2731, %v2724, %v2728
    %v2733 = vand.u32 2147483647, %v2692
    %vm2734 = vcmp.eq.f32.partialorder %v2733, 8.507059e+37
    %v2735 = vand.u32 %v2692, 2147483648
    %v2736 = vor.u32 1.1754944e-38, %v2735
    %v2737 = vsel %vm2734, %v2736, %v2732
    %v2738 = vmul.f32 1.0, %v2737
    %v2739 = vrcp.pop %v2693
    %v2740 = vmul.f32 %v2693, %v2739
    %v2741 = vsub.f32 1.0, %v2740
    %v2742 = vmul.f32 %v2739, %v2741
    %v2743 = vadd.f32 %v2739, %v2742
    %vm2744 = vweird.f32 %v2693
    %vm2745 = vweird.f32 %v2739
    %vm2746 = vmor %vm2744, %vm2745
    %v2747 = vsel %vm2746, %v2739, %v2743
    %v2748 = vand.u32 2147483647, %v2693
    %vm2749 = vcmp.eq.f32.partialorder %v2748, 8.507059e+37
    %v2750 = vand.u32 %v2693, 2147483648
    %v2751 = vor.u32 1.1754944e-38, %v2750
    %v2752 = vsel %vm2749, %v2751, %v2747
    %v2753 = vmul.f32 1.0, %v2752
    %v2754 = vadd.f32 %v2583, %v256
    %v2755 = vadd.f32 %v2586, %v261
    %v2756 = vadd.f32 %v2589, %v266
    %v2757 = vadd.f32 %v2592, %v271
    %v2758 = vmul.f32 %v2628, %v2754
    %v2759 = vmul.f32 %v2643, %v2755
    %v2760 = vmul.f32 %v2658, %v2756
    %v2761 = vmul.f32 %v2673, %v2757
    %v2762 = vadd.f32 %v2530, %v2758
    %v2763 = vadd.f32 %v2533, %v2759
    %v2764 = vadd.f32 %v2536, %v2760
    %v2765 = vadd.f32 %v2539, %v2761
    %v2766 = vtanh.pop %v2762
    %v2767 = vtanh.pop %v2763
    %v2768 = vtanh.pop %v2764
    %v2769 = vtanh.pop %v2765
    %v2770 = vsub.f32 %v2187, %v2766
    %v2771 = vsub.f32 %v2188, %v2767
    %v2772 = vsub.f32 %v2189, %v2768
    %v2773 = vsub.f32 %v2190, %v2769
    %v2774 = vmul.f32 %v2708, %v2770
    %v2775 = vmul.f32 %v2723, %v2771
    %v2776 = vmul.f32 %v2738, %v2772
    %v2777 = vmul.f32 %v2753, %v2773
    %v2778 = vadd.f32 %v2766, %v2774
    %v2779 = vadd.f32 %v2767, %v2775
    %v2780 = vadd.f32 %v2768, %v2776
    %v2781 = vadd.f32 %v2769, %v2777
    %s2782 = scalar_lea.vmem %s0, 64
    %v2783 = vld [vmem:[%s2782] sm:$0xff]
    %v2784 = vld [vmem:[%s2782 + $0x8] sm:$0xff]
    %2785 = vmatpush.msra.mxu0 0.0
    %2786 = vmatpush.msra.mxu0 0.0
    %2787 = vmatpush.msra.mxu0 0.0
    %2788 = vmatpush.msra.mxu0 0.0
    %2789 = vmatpush.msra.mxu0 0.0
    %2790 = vmatpush.msra.mxu0 0.0
    %2791 = vmatpush.msra.mxu0 0.0
    %2792 = vmatpush.msra.mxu0 0.0
    %2793 = vmatpush.msra.mxu0 0.0
    %2794 = vmatpush.msra.mxu0 0.0
    %2795 = vmatpush.msra.mxu0 0.0
    %2796 = vmatpush.msra.mxu0 0.0
    %2797 = vmatpush.msra.mxu0 0.0
    %2798 = vmatpush.msra.mxu0 0.0
    %2799 = vmatpush.msra.mxu0 %v2784
    %2800 = vmatpush.msra.mxu0 %v2783
    %2801 = vmatmul.f32.gmra.mxu0 %v277
    %v2802 = vpop.f32.mrf.mxu0
    %v2803 = vadd.f32 %v72, %v2802
    %2804 = vmatmul.f32.gmra.mxu0 %v280
    %v2805 = vpop.f32.mrf.mxu0
    %v2806 = vadd.f32 %v77, %v2805
    %2807 = vmatmul.f32.gmra.mxu0 %v283
    %v2808 = vpop.f32.mrf.mxu0
    %v2809 = vadd.f32 %v82, %v2808
    %2810 = vmatmul.f32.gmra.mxu0 %v286
    %v2811 = vpop.f32.mrf.mxu0
    %v2812 = vadd.f32 %v87, %v2811
    %2813 = vmatmul.f32.gmra.mxu0 %v289
    %v2814 = vpop.f32.mrf.mxu0
    %v2815 = vadd.f32 %v92, %v2814
    %2816 = vmatmul.f32.gmra.mxu0 %v292
    %v2817 = vpop.f32.mrf.mxu0
    %v2818 = vadd.f32 %v97, %v2817
    %2819 = vmatmul.f32.gmra.mxu0 %v295
    %v2820 = vpop.f32.mrf.mxu0
    %v2821 = vadd.f32 %v102, %v2820
    %2822 = vmatmul.f32.gmra.mxu0 %v298
    %v2823 = vpop.f32.mrf.mxu0
    %v2824 = vadd.f32 %v107, %v2823
    %2825 = vmatmul.f32.gmra.mxu0 %v301
    %v2826 = vpop.f32.mrf.mxu0
    %v2827 = vadd.f32 %v112, %v2826
    %2828 = vmatmul.f32.gmra.mxu0 %v304
    %v2829 = vpop.f32.mrf.mxu0
    %v2830 = vadd.f32 %v117, %v2829
    %2831 = vmatmul.f32.gmra.mxu0 %v307
    %v2832 = vpop.f32.mrf.mxu0
    %v2833 = vadd.f32 %v122, %v2832
    %2834 = vmatmul.f32.gmra.mxu0 %v310
    %v2835 = vpop.f32.mrf.mxu0
    %v2836 = vadd.f32 %v127, %v2835
    %2837 = vdwg.mxu0
    %2838 = vmatpush.msra.mxu0 0.0
    %2839 = vmatpush.msra.mxu0 0.0
    %2840 = vmatpush.msra.mxu0 0.0
    %2841 = vmatpush.msra.mxu0 0.0
    %2842 = vmatpush.msra.mxu0 0.0
    %2843 = vmatpush.msra.mxu0 0.0
    %2844 = vmatpush.msra.mxu0 0.0
    %2845 = vmatpush.msra.mxu0 0.0
    %2846 = vmatpush.msra.mxu0 0.0
    %2847 = vmatpush.msra.mxu0 0.0
    %2848 = vmatpush.msra.mxu0 0.0
    %2849 = vmatpush.msra.mxu0 0.0
    %2850 = vmatpush.msra.mxu0 %v2487
    %2851 = vmatpush.msra.mxu0 %v2486
    %2852 = vmatpush.msra.mxu0 %v2485
    %2853 = vmatpush.msra.mxu0 %v2484
    %2854 = vmatmul.f32.gmra.mxu0 %v367
    %v2855 = vpop.f32.mrf.mxu0
    %v2856 = vadd.f32 0.0, %v2855
    %2857 = vmatmul.f32.gmra.mxu0 %v370
    %v2858 = vpop.f32.mrf.mxu0
    %v2859 = vadd.f32 0.0, %v2858
    %2860 = vmatmul.f32.gmra.mxu0 %v373
    %v2861 = vpop.f32.mrf.mxu0
    %v2862 = vadd.f32 0.0, %v2861
    %2863 = vmatmul.f32.gmra.mxu0 %v376
    %v2864 = vpop.f32.mrf.mxu0
    %v2865 = vadd.f32 0.0, %v2864
    %2866 = vmatmul.f32.gmra.mxu0 %v379
    %v2867 = vpop.f32.mrf.mxu0
    %v2868 = vadd.f32 0.0, %v2867
    %2869 = vmatmul.f32.gmra.mxu0 %v382
    %v2870 = vpop.f32.mrf.mxu0
    %v2871 = vadd.f32 0.0, %v2870
    %2872 = vmatmul.f32.gmra.mxu0 %v385
    %v2873 = vpop.f32.mrf.mxu0
    %v2874 = vadd.f32 0.0, %v2873
    %2875 = vmatmul.f32.gmra.mxu0 %v388
    %v2876 = vpop.f32.mrf.mxu0
    %v2877 = vadd.f32 0.0, %v2876
    %2878 = vmatmul.f32.gmra.mxu0 %v391
    %v2879 = vpop.f32.mrf.mxu0
    %v2880 = vadd.f32 0.0, %v2879
    %2881 = vmatmul.f32.gmra.mxu0 %v394
    %v2882 = vpop.f32.mrf.mxu0
    %v2883 = vadd.f32 0.0, %v2882
    %2884 = vmatmul.f32.gmra.mxu0 %v397
    %v2885 = vpop.f32.mrf.mxu0
    %v2886 = vadd.f32 0.0, %v2885
    %2887 = vmatmul.f32.gmra.mxu0 %v400
    %v2888 = vpop.f32.mrf.mxu0
    %v2889 = vadd.f32 0.0, %v2888
    %2890 = vdwg.mxu0
    %v2891 = vadd.f32 %v2803, %v2856
    %v2892 = vadd.f32 %v2806, %v2859
    %v2893 = vadd.f32 %v2809, %v2862
    %v2894 = vadd.f32 %v2812, %v2865
    %v2895 = vxor.u32 %v2891, 2147483648
    %v2896 = vxor.u32 %v2892, 2147483648
    %v2897 = vxor.u32 %v2893, 2147483648
    %v2898 = vxor.u32 %v2894, 2147483648
    %v2899 = vmul.f32 %v2895, 1.442695
    %v2900 = vpow.pop %v2899
    %v2901 = vmul.f32 %v2896, 1.442695
    %v2902 = vpow.pop %v2901
    %v2903 = vmul.f32 %v2897, 1.442695
    %v2904 = vpow.pop %v2903
    %v2905 = vmul.f32 %v2898, 1.442695
    %v2906 = vpow.pop %v2905
    %v2907 = vadd.f32 %v2900, 1.0
    %v2908 = vadd.f32 %v2902, 1.0
    %v2909 = vadd.f32 %v2904, 1.0
    %v2910 = vadd.f32 %v2906, 1.0
    %v2911 = vrcp.pop %v2907
    %v2912 = vmul.f32 %v2907, %v2911
    %v2913 = vsub.f32 1.0, %v2912
    %v2914 = vmul.f32 %v2911, %v2913
    %v2915 = vadd.f32 %v2911, %v2914
    %vm2916 = vweird.f32 %v2907
    %vm2917 = vweird.f32 %v2911
    %vm2918 = vmor %vm2916, %vm2917
    %v2919 = vsel %vm2918, %v2911, %v2915
    %v2920 = vand.u32 2147483647, %v2907
    %vm2921 = vcmp.eq.f32.partialorder %v2920, 8.507059e+37
    %v2922 = vand.u32 %v2907, 2147483648
    %v2923 = vor.u32 1.1754944e-38, %v2922
    %v2924 = vsel %vm2921, %v2923, %v2919
    %v2925 = vmul.f32 1.0, %v2924
    %v2926 = vrcp.pop %v2908
    %v2927 = vmul.f32 %v2908, %v2926
    %v2928 = vsub.f32 1.0, %v2927
    %v2929 = vmul.f32 %v2926, %v2928
    %v2930 = vadd.f32 %v2926, %v2929
    %vm2931 = vweird.f32 %v2908
    %vm2932 = vweird.f32 %v2926
    %vm2933 = vmor %vm2931, %vm2932
    %v2934 = vsel %vm2933, %v2926, %v2930
    %v2935 = vand.u32 2147483647, %v2908
    %vm2936 = vcmp.eq.f32.partialorder %v2935, 8.507059e+37
    %v2937 = vand.u32 %v2908, 2147483648
    %v2938 = vor.u32 1.1754944e-38, %v2937
    %v2939 = vsel %vm2936, %v2938, %v2934
    %v2940 = vmul.f32 1.0, %v2939
    %v2941 = vrcp.pop %v2909
    %v2942 = vmul.f32 %v2909, %v2941
    %v2943 = vsub.f32 1.0, %v2942
    %v2944 = vmul.f32 %v2941, %v2943
    %v2945 = vadd.f32 %v2941, %v2944
    %vm2946 = vweird.f32 %v2909
    %vm2947 = vweird.f32 %v2941
    %vm2948 = vmor %vm2946, %vm2947
    %v2949 = vsel %vm2948, %v2941, %v2945
    %v2950 = vand.u32 2147483647, %v2909
    %vm2951 = vcmp.eq.f32.partialorder %v2950, 8.507059e+37
    %v2952 = vand.u32 %v2909, 2147483648
    %v2953 = vor.u32 1.1754944e-38, %v2952
    %v2954 = vsel %vm2951, %v2953, %v2949
    %v2955 = vmul.f32 1.0, %v2954
    %v2956 = vrcp.pop %v2910
    %v2957 = vmul.f32 %v2910, %v2956
    %v2958 = vsub.f32 1.0, %v2957
    %v2959 = vmul.f32 %v2956, %v2958
    %v2960 = vadd.f32 %v2956, %v2959
    %vm2961 = vweird.f32 %v2910
    %vm2962 = vweird.f32 %v2956
    %vm2963 = vmor %vm2961, %vm2962
    %v2964 = vsel %vm2963, %v2956, %v2960
    %v2965 = vand.u32 2147483647, %v2910
    %vm2966 = vcmp.eq.f32.partialorder %v2965, 8.507059e+37
    %v2967 = vand.u32 %v2910, 2147483648
    %v2968 = vor.u32 1.1754944e-38, %v2967
    %v2969 = vsel %vm2966, %v2968, %v2964
    %v2970 = vmul.f32 1.0, %v2969
    %v2971 = vadd.f32 %v2815, %v2868
    %v2972 = vadd.f32 %v2818, %v2871
    %v2973 = vadd.f32 %v2821, %v2874
    %v2974 = vadd.f32 %v2824, %v2877
    %v2975 = vxor.u32 %v2971, 2147483648
    %v2976 = vxor.u32 %v2972, 2147483648
    %v2977 = vxor.u32 %v2973, 2147483648
    %v2978 = vxor.u32 %v2974, 2147483648
    %v2979 = vmul.f32 %v2975, 1.442695
    %v2980 = vpow.pop %v2979
    %v2981 = vmul.f32 %v2976, 1.442695
    %v2982 = vpow.pop %v2981
    %v2983 = vmul.f32 %v2977, 1.442695
    %v2984 = vpow.pop %v2983
    %v2985 = vmul.f32 %v2978, 1.442695
    %v2986 = vpow.pop %v2985
    %v2987 = vadd.f32 %v2980, 1.0
    %v2988 = vadd.f32 %v2982, 1.0
    %v2989 = vadd.f32 %v2984, 1.0
    %v2990 = vadd.f32 %v2986, 1.0
    %v2991 = vrcp.pop %v2987
    %v2992 = vmul.f32 %v2987, %v2991
    %v2993 = vsub.f32 1.0, %v2992
    %v2994 = vmul.f32 %v2991, %v2993
    %v2995 = vadd.f32 %v2991, %v2994
    %vm2996 = vweird.f32 %v2987
    %vm2997 = vweird.f32 %v2991
    %vm2998 = vmor %vm2996, %vm2997
    %v2999 = vsel %vm2998, %v2991, %v2995
    %v3000 = vand.u32 2147483647, %v2987
    %vm3001 = vcmp.eq.f32.partialorder %v3000, 8.507059e+37
    %v3002 = vand.u32 %v2987, 2147483648
    %v3003 = vor.u32 1.1754944e-38, %v3002
    %v3004 = vsel %vm3001, %v3003, %v2999
    %v3005 = vmul.f32 1.0, %v3004
    %v3006 = vrcp.pop %v2988
    %v3007 = vmul.f32 %v2988, %v3006
    %v3008 = vsub.f32 1.0, %v3007
    %v3009 = vmul.f32 %v3006, %v3008
    %v3010 = vadd.f32 %v3006, %v3009
    %vm3011 = vweird.f32 %v2988
    %vm3012 = vweird.f32 %v3006
    %vm3013 = vmor %vm3011, %vm3012
    %v3014 = vsel %vm3013, %v3006, %v3010
    %v3015 = vand.u32 2147483647, %v2988
    %vm3016 = vcmp.eq.f32.partialorder %v3015, 8.507059e+37
    %v3017 = vand.u32 %v2988, 2147483648
    %v3018 = vor.u32 1.1754944e-38, %v3017
    %v3019 = vsel %vm3016, %v3018, %v3014
    %v3020 = vmul.f32 1.0, %v3019
    %v3021 = vrcp.pop %v2989
    %v3022 = vmul.f32 %v2989, %v3021
    %v3023 = vsub.f32 1.0, %v3022
    %v3024 = vmul.f32 %v3021, %v3023
    %v3025 = vadd.f32 %v3021, %v3024
    %vm3026 = vweird.f32 %v2989
    %vm3027 = vweird.f32 %v3021
    %vm3028 = vmor %vm3026, %vm3027
    %v3029 = vsel %vm3028, %v3021, %v3025
    %v3030 = vand.u32 2147483647, %v2989
    %vm3031 = vcmp.eq.f32.partialorder %v3030, 8.507059e+37
    %v3032 = vand.u32 %v2989, 2147483648
    %v3033 = vor.u32 1.1754944e-38, %v3032
    %v3034 = vsel %vm3031, %v3033, %v3029
    %v3035 = vmul.f32 1.0, %v3034
    %v3036 = vrcp.pop %v2990
    %v3037 = vmul.f32 %v2990, %v3036
    %v3038 = vsub.f32 1.0, %v3037
    %v3039 = vmul.f32 %v3036, %v3038
    %v3040 = vadd.f32 %v3036, %v3039
    %vm3041 = vweird.f32 %v2990
    %vm3042 = vweird.f32 %v3036
    %vm3043 = vmor %vm3041, %vm3042
    %v3044 = vsel %vm3043, %v3036, %v3040
    %v3045 = vand.u32 2147483647, %v2990
    %vm3046 = vcmp.eq.f32.partialorder %v3045, 8.507059e+37
    %v3047 = vand.u32 %v2990, 2147483648
    %v3048 = vor.u32 1.1754944e-38, %v3047
    %v3049 = vsel %vm3046, %v3048, %v3044
    %v3050 = vmul.f32 1.0, %v3049
    %v3051 = vadd.f32 %v2880, %v136
    %v3052 = vadd.f32 %v2883, %v141
    %v3053 = vadd.f32 %v2886, %v146
    %v3054 = vadd.f32 %v2889, %v151
    %v3055 = vmul.f32 %v2925, %v3051
    %v3056 = vmul.f32 %v2940, %v3052
    %v3057 = vmul.f32 %v2955, %v3053
    %v3058 = vmul.f32 %v2970, %v3054
    %v3059 = vadd.f32 %v2827, %v3055
    %v3060 = vadd.f32 %v2830, %v3056
    %v3061 = vadd.f32 %v2833, %v3057
    %v3062 = vadd.f32 %v2836, %v3058
    %v3063 = vtanh.pop %v3059
    %v3064 = vtanh.pop %v3060
    %v3065 = vtanh.pop %v3061
    %v3066 = vtanh.pop %v3062
    %v3067 = vsub.f32 %v2484, %v3063
    %v3068 = vsub.f32 %v2485, %v3064
    %v3069 = vsub.f32 %v2486, %v3065
    %v3070 = vsub.f32 %v2487, %v3066
    %v3071 = vmul.f32 %v3005, %v3067
    %v3072 = vmul.f32 %v3020, %v3068
    %v3073 = vmul.f32 %v3035, %v3069
    %v3074 = vmul.f32 %v3050, %v3070
    %v3075 = vadd.f32 %v3063, %v3071
    %v3076 = vadd.f32 %v3064, %v3072
    %v3077 = vadd.f32 %v3065, %v3073
    %v3078 = vadd.f32 %v3066, %v3074
    %3079 = vmatpush.msra.mxu0 0.0
    %3080 = vmatpush.msra.mxu0 0.0
    %3081 = vmatpush.msra.mxu0 0.0
    %3082 = vmatpush.msra.mxu0 0.0
    %3083 = vmatpush.msra.mxu0 0.0
    %3084 = vmatpush.msra.mxu0 0.0
    %3085 = vmatpush.msra.mxu0 0.0
    %3086 = vmatpush.msra.mxu0 0.0
    %3087 = vmatpush.msra.mxu0 0.0
    %3088 = vmatpush.msra.mxu0 0.0
    %3089 = vmatpush.msra.mxu0 0.0
    %3090 = vmatpush.msra.mxu0 0.0
    %3091 = vmatpush.msra.mxu0 %v3078
    %3092 = vmatpush.msra.mxu0 %v3077
    %3093 = vmatpush.msra.mxu0 %v3076
    %3094 = vmatpush.msra.mxu0 %v3075
    %3095 = vmatmul.f32.gmra.mxu0 %v644
    %v3096 = vpop.f32.mrf.mxu0
    %v3097 = vadd.f32 %v192, %v3096
    %3098 = vmatmul.f32.gmra.mxu0 %v647
    %v3099 = vpop.f32.mrf.mxu0
    %v3100 = vadd.f32 %v197, %v3099
    %3101 = vmatmul.f32.gmra.mxu0 %v650
    %v3102 = vpop.f32.mrf.mxu0
    %v3103 = vadd.f32 %v202, %v3102
    %3104 = vmatmul.f32.gmra.mxu0 %v653
    %v3105 = vpop.f32.mrf.mxu0
    %v3106 = vadd.f32 %v207, %v3105
    %3107 = vmatmul.f32.gmra.mxu0 %v656
    %v3108 = vpop.f32.mrf.mxu0
    %v3109 = vadd.f32 %v212, %v3108
    %3110 = vmatmul.f32.gmra.mxu0 %v659
    %v3111 = vpop.f32.mrf.mxu0
    %v3112 = vadd.f32 %v217, %v3111
    %3113 = vmatmul.f32.gmra.mxu0 %v662
    %v3114 = vpop.f32.mrf.mxu0
    %v3115 = vadd.f32 %v222, %v3114
    %3116 = vmatmul.f32.gmra.mxu0 %v665
    %v3117 = vpop.f32.mrf.mxu0
    %v3118 = vadd.f32 %v227, %v3117
    %3119 = vmatmul.f32.gmra.mxu0 %v668
    %v3120 = vpop.f32.mrf.mxu0
    %v3121 = vadd.f32 %v232, %v3120
    %3122 = vmatmul.f32.gmra.mxu0 %v671
    %v3123 = vpop.f32.mrf.mxu0
    %v3124 = vadd.f32 %v237, %v3123
    %3125 = vmatmul.f32.gmra.mxu0 %v674
    %v3126 = vpop.f32.mrf.mxu0
    %v3127 = vadd.f32 %v242, %v3126
    %3128 = vmatmul.f32.gmra.mxu0 %v677
    %v3129 = vpop.f32.mrf.mxu0
    %v3130 = vadd.f32 %v247, %v3129
    %3131 = vdwg.mxu0
    %3132 = vmatpush.msra.mxu0 0.0
    %3133 = vmatpush.msra.mxu0 0.0
    %3134 = vmatpush.msra.mxu0 0.0
    %3135 = vmatpush.msra.mxu0 0.0
    %3136 = vmatpush.msra.mxu0 0.0
    %3137 = vmatpush.msra.mxu0 0.0
    %3138 = vmatpush.msra.mxu0 0.0
    %3139 = vmatpush.msra.mxu0 0.0
    %3140 = vmatpush.msra.mxu0 0.0
    %3141 = vmatpush.msra.mxu0 0.0
    %3142 = vmatpush.msra.mxu0 0.0
    %3143 = vmatpush.msra.mxu0 0.0
    %3144 = vmatpush.msra.mxu0 %v2781
    %3145 = vmatpush.msra.mxu0 %v2780
    %3146 = vmatpush.msra.mxu0 %v2779
    %3147 = vmatpush.msra.mxu0 %v2778
    %3148 = vmatmul.f32.gmra.mxu0 %v733
    %v3149 = vpop.f32.mrf.mxu0
    %v3150 = vadd.f32 0.0, %v3149
    %3151 = vmatmul.f32.gmra.mxu0 %v736
    %v3152 = vpop.f32.mrf.mxu0
    %v3153 = vadd.f32 0.0, %v3152
    %3154 = vmatmul.f32.gmra.mxu0 %v739
    %v3155 = vpop.f32.mrf.mxu0
    %v3156 = vadd.f32 0.0, %v3155
    %3157 = vmatmul.f32.gmra.mxu0 %v742
    %v3158 = vpop.f32.mrf.mxu0
    %v3159 = vadd.f32 0.0, %v3158
    %3160 = vmatmul.f32.gmra.mxu0 %v745
    %v3161 = vpop.f32.mrf.mxu0
    %v3162 = vadd.f32 0.0, %v3161
    %3163 = vmatmul.f32.gmra.mxu0 %v748
    %v3164 = vpop.f32.mrf.mxu0
    %v3165 = vadd.f32 0.0, %v3164
    %3166 = vmatmul.f32.gmra.mxu0 %v751
    %v3167 = vpop.f32.mrf.mxu0
    %v3168 = vadd.f32 0.0, %v3167
    %3169 = vmatmul.f32.gmra.mxu0 %v754
    %v3170 = vpop.f32.mrf.mxu0
    %v3171 = vadd.f32 0.0, %v3170
    %3172 = vmatmul.f32.gmra.mxu0 %v757
    %v3173 = vpop.f32.mrf.mxu0
    %v3174 = vadd.f32 0.0, %v3173
    %3175 = vmatmul.f32.gmra.mxu0 %v760
    %v3176 = vpop.f32.mrf.mxu0
    %v3177 = vadd.f32 0.0, %v3176
    %3178 = vmatmul.f32.gmra.mxu0 %v763
    %v3179 = vpop.f32.mrf.mxu0
    %v3180 = vadd.f32 0.0, %v3179
    %3181 = vmatmul.f32.gmra.mxu0 %v766
    %v3182 = vpop.f32.mrf.mxu0
    %v3183 = vadd.f32 0.0, %v3182
    %3184 = vdwg.mxu0
    %v3185 = vadd.f32 %v3097, %v3150
    %v3186 = vadd.f32 %v3100, %v3153
    %v3187 = vadd.f32 %v3103, %v3156
    %v3188 = vadd.f32 %v3106, %v3159
    %v3189 = vxor.u32 %v3185, 2147483648
    %v3190 = vxor.u32 %v3186, 2147483648
    %v3191 = vxor.u32 %v3187, 2147483648
    %v3192 = vxor.u32 %v3188, 2147483648
    %v3193 = vmul.f32 %v3189, 1.442695
    %v3194 = vpow.pop %v3193
    %v3195 = vmul.f32 %v3190, 1.442695
    %v3196 = vpow.pop %v3195
    %v3197 = vmul.f32 %v3191, 1.442695
    %v3198 = vpow.pop %v3197
    %v3199 = vmul.f32 %v3192, 1.442695
    %v3200 = vpow.pop %v3199
    %v3201 = vadd.f32 %v3194, 1.0
    %v3202 = vadd.f32 %v3196, 1.0
    %v3203 = vadd.f32 %v3198, 1.0
    %v3204 = vadd.f32 %v3200, 1.0
    %v3205 = vrcp.pop %v3201
    %v3206 = vmul.f32 %v3201, %v3205
    %v3207 = vsub.f32 1.0, %v3206
    %v3208 = vmul.f32 %v3205, %v3207
    %v3209 = vadd.f32 %v3205, %v3208
    %vm3210 = vweird.f32 %v3201
    %vm3211 = vweird.f32 %v3205
    %vm3212 = vmor %vm3210, %vm3211
    %v3213 = vsel %vm3212, %v3205, %v3209
    %v3214 = vand.u32 2147483647, %v3201
    %vm3215 = vcmp.eq.f32.partialorder %v3214, 8.507059e+37
    %v3216 = vand.u32 %v3201, 2147483648
    %v3217 = vor.u32 1.1754944e-38, %v3216
    %v3218 = vsel %vm3215, %v3217, %v3213
    %v3219 = vmul.f32 1.0, %v3218
    %v3220 = vrcp.pop %v3202
    %v3221 = vmul.f32 %v3202, %v3220
    %v3222 = vsub.f32 1.0, %v3221
    %v3223 = vmul.f32 %v3220, %v3222
    %v3224 = vadd.f32 %v3220, %v3223
    %vm3225 = vweird.f32 %v3202
    %vm3226 = vweird.f32 %v3220
    %vm3227 = vmor %vm3225, %vm3226
    %v3228 = vsel %vm3227, %v3220, %v3224
    %v3229 = vand.u32 2147483647, %v3202
    %vm3230 = vcmp.eq.f32.partialorder %v3229, 8.507059e+37
    %v3231 = vand.u32 %v3202, 2147483648
    %v3232 = vor.u32 1.1754944e-38, %v3231
    %v3233 = vsel %vm3230, %v3232, %v3228
    %v3234 = vmul.f32 1.0, %v3233
    %v3235 = vrcp.pop %v3203
    %v3236 = vmul.f32 %v3203, %v3235
    %v3237 = vsub.f32 1.0, %v3236
    %v3238 = vmul.f32 %v3235, %v3237
    %v3239 = vadd.f32 %v3235, %v3238
    %vm3240 = vweird.f32 %v3203
    %vm3241 = vweird.f32 %v3235
    %vm3242 = vmor %vm3240, %vm3241
    %v3243 = vsel %vm3242, %v3235, %v3239
    %v3244 = vand.u32 2147483647, %v3203
    %vm3245 = vcmp.eq.f32.partialorder %v3244, 8.507059e+37
    %v3246 = vand.u32 %v3203, 2147483648
    %v3247 = vor.u32 1.1754944e-38, %v3246
    %v3248 = vsel %vm3245, %v3247, %v3243
    %v3249 = vmul.f32 1.0, %v3248
    %v3250 = vrcp.pop %v3204
    %v3251 = vmul.f32 %v3204, %v3250
    %v3252 = vsub.f32 1.0, %v3251
    %v3253 = vmul.f32 %v3250, %v3252
    %v3254 = vadd.f32 %v3250, %v3253
    %vm3255 = vweird.f32 %v3204
    %vm3256 = vweird.f32 %v3250
    %vm3257 = vmor %vm3255, %vm3256
    %v3258 = vsel %vm3257, %v3250, %v3254
    %v3259 = vand.u32 2147483647, %v3204
    %vm3260 = vcmp.eq.f32.partialorder %v3259, 8.507059e+37
    %v3261 = vand.u32 %v3204, 2147483648
    %v3262 = vor.u32 1.1754944e-38, %v3261
    %v3263 = vsel %vm3260, %v3262, %v3258
    %v3264 = vmul.f32 1.0, %v3263
    %v3265 = vadd.f32 %v3109, %v3162
    %v3266 = vadd.f32 %v3112, %v3165
    %v3267 = vadd.f32 %v3115, %v3168
    %v3268 = vadd.f32 %v3118, %v3171
    %v3269 = vxor.u32 %v3265, 2147483648
    %v3270 = vxor.u32 %v3266, 2147483648
    %v3271 = vxor.u32 %v3267, 2147483648
    %v3272 = vxor.u32 %v3268, 2147483648
    %v3273 = vmul.f32 %v3269, 1.442695
    %v3274 = vpow.pop %v3273
    %v3275 = vmul.f32 %v3270, 1.442695
    %v3276 = vpow.pop %v3275
    %v3277 = vmul.f32 %v3271, 1.442695
    %v3278 = vpow.pop %v3277
    %v3279 = vmul.f32 %v3272, 1.442695
    %v3280 = vpow.pop %v3279
    %v3281 = vadd.f32 %v3274, 1.0
    %v3282 = vadd.f32 %v3276, 1.0
    %v3283 = vadd.f32 %v3278, 1.0
    %v3284 = vadd.f32 %v3280, 1.0
    %v3285 = vrcp.pop %v3281
    %v3286 = vmul.f32 %v3281, %v3285
    %v3287 = vsub.f32 1.0, %v3286
    %v3288 = vmul.f32 %v3285, %v3287
    %v3289 = vadd.f32 %v3285, %v3288
    %vm3290 = vweird.f32 %v3281
    %vm3291 = vweird.f32 %v3285
    %vm3292 = vmor %vm3290, %vm3291
    %v3293 = vsel %vm3292, %v3285, %v3289
    %v3294 = vand.u32 2147483647, %v3281
    %vm3295 = vcmp.eq.f32.partialorder %v3294, 8.507059e+37
    %v3296 = vand.u32 %v3281, 2147483648
    %v3297 = vor.u32 1.1754944e-38, %v3296
    %v3298 = vsel %vm3295, %v3297, %v3293
    %v3299 = vmul.f32 1.0, %v3298
    %v3300 = vrcp.pop %v3282
    %v3301 = vmul.f32 %v3282, %v3300
    %v3302 = vsub.f32 1.0, %v3301
    %v3303 = vmul.f32 %v3300, %v3302
    %v3304 = vadd.f32 %v3300, %v3303
    %vm3305 = vweird.f32 %v3282
    %vm3306 = vweird.f32 %v3300
    %vm3307 = vmor %vm3305, %vm3306
    %v3308 = vsel %vm3307, %v3300, %v3304
    %v3309 = vand.u32 2147483647, %v3282
    %vm3310 = vcmp.eq.f32.partialorder %v3309, 8.507059e+37
    %v3311 = vand.u32 %v3282, 2147483648
    %v3312 = vor.u32 1.1754944e-38, %v3311
    %v3313 = vsel %vm3310, %v3312, %v3308
    %v3314 = vmul.f32 1.0, %v3313
    %v3315 = vrcp.pop %v3283
    %v3316 = vmul.f32 %v3283, %v3315
    %v3317 = vsub.f32 1.0, %v3316
    %v3318 = vmul.f32 %v3315, %v3317
    %v3319 = vadd.f32 %v3315, %v3318
    %vm3320 = vweird.f32 %v3283
    %vm3321 = vweird.f32 %v3315
    %vm3322 = vmor %vm3320, %vm3321
    %v3323 = vsel %vm3322, %v3315, %v3319
    %v3324 = vand.u32 2147483647, %v3283
    %vm3325 = vcmp.eq.f32.partialorder %v3324, 8.507059e+37
    %v3326 = vand.u32 %v3283, 2147483648
    %v3327 = vor.u32 1.1754944e-38, %v3326
    %v3328 = vsel %vm3325, %v3327, %v3323
    %v3329 = vmul.f32 1.0, %v3328
    %v3330 = vrcp.pop %v3284
    %v3331 = vmul.f32 %v3284, %v3330
    %v3332 = vsub.f32 1.0, %v3331
    %v3333 = vmul.f32 %v3330, %v3332
    %v3334 = vadd.f32 %v3330, %v3333
    %vm3335 = vweird.f32 %v3284
    %vm3336 = vweird.f32 %v3330
    %vm3337 = vmor %vm3335, %vm3336
    %v3338 = vsel %vm3337, %v3330, %v3334
    %v3339 = vand.u32 2147483647, %v3284
    %vm3340 = vcmp.eq.f32.partialorder %v3339, 8.507059e+37
    %v3341 = vand.u32 %v3284, 2147483648
    %v3342 = vor.u32 1.1754944e-38, %v3341
    %v3343 = vsel %vm3340, %v3342, %v3338
    %v3344 = vmul.f32 1.0, %v3343
    %v3345 = vadd.f32 %v3174, %v256
    %v3346 = vadd.f32 %v3177, %v261
    %v3347 = vadd.f32 %v3180, %v266
    %v3348 = vadd.f32 %v3183, %v271
    %v3349 = vmul.f32 %v3219, %v3345
    %v3350 = vmul.f32 %v3234, %v3346
    %v3351 = vmul.f32 %v3249, %v3347
    %v3352 = vmul.f32 %v3264, %v3348
    %v3353 = vadd.f32 %v3121, %v3349
    %v3354 = vadd.f32 %v3124, %v3350
    %v3355 = vadd.f32 %v3127, %v3351
    %v3356 = vadd.f32 %v3130, %v3352
    %v3357 = vtanh.pop %v3353
    %v3358 = vtanh.pop %v3354
    %v3359 = vtanh.pop %v3355
    %v3360 = vtanh.pop %v3356
    %v3361 = vsub.f32 %v2778, %v3357
    %v3362 = vsub.f32 %v2779, %v3358
    %v3363 = vsub.f32 %v2780, %v3359
    %v3364 = vsub.f32 %v2781, %v3360
    %v3365 = vmul.f32 %v3299, %v3361
    %v3366 = vmul.f32 %v3314, %v3362
    %v3367 = vmul.f32 %v3329, %v3363
    %v3368 = vmul.f32 %v3344, %v3364
    %v3369 = vadd.f32 %v3357, %v3365
    %v3370 = vadd.f32 %v3358, %v3366
    %v3371 = vadd.f32 %v3359, %v3367
    %v3372 = vadd.f32 %v3360, %v3368
    %s3373 = scalar_lea.vmem %s0, 80
    %v3374 = vld [vmem:[%s3373] sm:$0xff]
    %v3375 = vld [vmem:[%s3373 + $0x8] sm:$0xff]
    %3376 = vmatpush.msra.mxu0 0.0
    %3377 = vmatpush.msra.mxu0 0.0
    %3378 = vmatpush.msra.mxu0 0.0
    %3379 = vmatpush.msra.mxu0 0.0
    %3380 = vmatpush.msra.mxu0 0.0
    %3381 = vmatpush.msra.mxu0 0.0
    %3382 = vmatpush.msra.mxu0 0.0
    %3383 = vmatpush.msra.mxu0 0.0
    %3384 = vmatpush.msra.mxu0 0.0
    %3385 = vmatpush.msra.mxu0 0.0
    %3386 = vmatpush.msra.mxu0 0.0
    %3387 = vmatpush.msra.mxu0 0.0
    %3388 = vmatpush.msra.mxu0 0.0
    %3389 = vmatpush.msra.mxu0 0.0
    %3390 = vmatpush.msra.mxu0 %v3375
    %3391 = vmatpush.msra.mxu0 %v3374
    %3392 = vmatmul.f32.gmra.mxu0 %v277
    %v3393 = vpop.f32.mrf.mxu0
    %v3394 = vadd.f32 %v72, %v3393
    %3395 = vmatmul.f32.gmra.mxu0 %v280
    %v3396 = vpop.f32.mrf.mxu0
    %v3397 = vadd.f32 %v77, %v3396
    %3398 = vmatmul.f32.gmra.mxu0 %v283
    %v3399 = vpop.f32.mrf.mxu0
    %v3400 = vadd.f32 %v82, %v3399
    %3401 = vmatmul.f32.gmra.mxu0 %v286
    %v3402 = vpop.f32.mrf.mxu0
    %v3403 = vadd.f32 %v87, %v3402
    %3404 = vmatmul.f32.gmra.mxu0 %v289
    %v3405 = vpop.f32.mrf.mxu0
    %v3406 = vadd.f32 %v92, %v3405
    %3407 = vmatmul.f32.gmra.mxu0 %v292
    %v3408 = vpop.f32.mrf.mxu0
    %v3409 = vadd.f32 %v97, %v3408
    %3410 = vmatmul.f32.gmra.mxu0 %v295
    %v3411 = vpop.f32.mrf.mxu0
    %v3412 = vadd.f32 %v102, %v3411
    %3413 = vmatmul.f32.gmra.mxu0 %v298
    %v3414 = vpop.f32.mrf.mxu0
    %v3415 = vadd.f32 %v107, %v3414
    %3416 = vmatmul.f32.gmra.mxu0 %v301
    %v3417 = vpop.f32.mrf.mxu0
    %v3418 = vadd.f32 %v112, %v3417
    %3419 = vmatmul.f32.gmra.mxu0 %v304
    %v3420 = vpop.f32.mrf.mxu0
    %v3421 = vadd.f32 %v117, %v3420
    %3422 = vmatmul.f32.gmra.mxu0 %v307
    %v3423 = vpop.f32.mrf.mxu0
    %v3424 = vadd.f32 %v122, %v3423
    %3425 = vmatmul.f32.gmra.mxu0 %v310
    %v3426 = vpop.f32.mrf.mxu0
    %v3427 = vadd.f32 %v127, %v3426
    %3428 = vdwg.mxu0
    %3429 = vmatpush.msra.mxu0 0.0
    %3430 = vmatpush.msra.mxu0 0.0
    %3431 = vmatpush.msra.mxu0 0.0
    %3432 = vmatpush.msra.mxu0 0.0
    %3433 = vmatpush.msra.mxu0 0.0
    %3434 = vmatpush.msra.mxu0 0.0
    %3435 = vmatpush.msra.mxu0 0.0
    %3436 = vmatpush.msra.mxu0 0.0
    %3437 = vmatpush.msra.mxu0 0.0
    %3438 = vmatpush.msra.mxu0 0.0
    %3439 = vmatpush.msra.mxu0 0.0
    %3440 = vmatpush.msra.mxu0 0.0
    %3441 = vmatpush.msra.mxu0 %v3078
    %3442 = vmatpush.msra.mxu0 %v3077
    %3443 = vmatpush.msra.mxu0 %v3076
    %3444 = vmatpush.msra.mxu0 %v3075
    %3445 = vmatmul.f32.gmra.mxu0 %v367
    %v3446 = vpop.f32.mrf.mxu0
    %v3447 = vadd.f32 0.0, %v3446
    %3448 = vmatmul.f32.gmra.mxu0 %v370
    %v3449 = vpop.f32.mrf.mxu0
    %v3450 = vadd.f32 0.0, %v3449
    %3451 = vmatmul.f32.gmra.mxu0 %v373
    %v3452 = vpop.f32.mrf.mxu0
    %v3453 = vadd.f32 0.0, %v3452
    %3454 = vmatmul.f32.gmra.mxu0 %v376
    %v3455 = vpop.f32.mrf.mxu0
    %v3456 = vadd.f32 0.0, %v3455
    %3457 = vmatmul.f32.gmra.mxu0 %v379
    %v3458 = vpop.f32.mrf.mxu0
    %v3459 = vadd.f32 0.0, %v3458
    %3460 = vmatmul.f32.gmra.mxu0 %v382
    %v3461 = vpop.f32.mrf.mxu0
    %v3462 = vadd.f32 0.0, %v3461
    %3463 = vmatmul.f32.gmra.mxu0 %v385
    %v3464 = vpop.f32.mrf.mxu0
    %v3465 = vadd.f32 0.0, %v3464
    %3466 = vmatmul.f32.gmra.mxu0 %v388
    %v3467 = vpop.f32.mrf.mxu0
    %v3468 = vadd.f32 0.0, %v3467
    %3469 = vmatmul.f32.gmra.mxu0 %v391
    %v3470 = vpop.f32.mrf.mxu0
    %v3471 = vadd.f32 0.0, %v3470
    %3472 = vmatmul.f32.gmra.mxu0 %v394
    %v3473 = vpop.f32.mrf.mxu0
    %v3474 = vadd.f32 0.0, %v3473
    %3475 = vmatmul.f32.gmra.mxu0 %v397
    %v3476 = vpop.f32.mrf.mxu0
    %v3477 = vadd.f32 0.0, %v3476
    %3478 = vmatmul.f32.gmra.mxu0 %v400
    %v3479 = vpop.f32.mrf.mxu0
    %v3480 = vadd.f32 0.0, %v3479
    %3481 = vdwg.mxu0
    %v3482 = vadd.f32 %v3394, %v3447
    %v3483 = vadd.f32 %v3397, %v3450
    %v3484 = vadd.f32 %v3400, %v3453
    %v3485 = vadd.f32 %v3403, %v3456
    %v3486 = vxor.u32 %v3482, 2147483648
    %v3487 = vxor.u32 %v3483, 2147483648
    %v3488 = vxor.u32 %v3484, 2147483648
    %v3489 = vxor.u32 %v3485, 2147483648
    %v3490 = vmul.f32 %v3486, 1.442695
    %v3491 = vpow.pop %v3490
    %v3492 = vmul.f32 %v3487, 1.442695
    %v3493 = vpow.pop %v3492
    %v3494 = vmul.f32 %v3488, 1.442695
    %v3495 = vpow.pop %v3494
    %v3496 = vmul.f32 %v3489, 1.442695
    %v3497 = vpow.pop %v3496
    %v3498 = vadd.f32 %v3491, 1.0
    %v3499 = vadd.f32 %v3493, 1.0
    %v3500 = vadd.f32 %v3495, 1.0
    %v3501 = vadd.f32 %v3497, 1.0
    %v3502 = vrcp.pop %v3498
    %v3503 = vmul.f32 %v3498, %v3502
    %v3504 = vsub.f32 1.0, %v3503
    %v3505 = vmul.f32 %v3502, %v3504
    %v3506 = vadd.f32 %v3502, %v3505
    %vm3507 = vweird.f32 %v3498
    %vm3508 = vweird.f32 %v3502
    %vm3509 = vmor %vm3507, %vm3508
    %v3510 = vsel %vm3509, %v3502, %v3506
    %v3511 = vand.u32 2147483647, %v3498
    %vm3512 = vcmp.eq.f32.partialorder %v3511, 8.507059e+37
    %v3513 = vand.u32 %v3498, 2147483648
    %v3514 = vor.u32 1.1754944e-38, %v3513
    %v3515 = vsel %vm3512, %v3514, %v3510
    %v3516 = vmul.f32 1.0, %v3515
    %v3517 = vrcp.pop %v3499
    %v3518 = vmul.f32 %v3499, %v3517
    %v3519 = vsub.f32 1.0, %v3518
    %v3520 = vmul.f32 %v3517, %v3519
    %v3521 = vadd.f32 %v3517, %v3520
    %vm3522 = vweird.f32 %v3499
    %vm3523 = vweird.f32 %v3517
    %vm3524 = vmor %vm3522, %vm3523
    %v3525 = vsel %vm3524, %v3517, %v3521
    %v3526 = vand.u32 2147483647, %v3499
    %vm3527 = vcmp.eq.f32.partialorder %v3526, 8.507059e+37
    %v3528 = vand.u32 %v3499, 2147483648
    %v3529 = vor.u32 1.1754944e-38, %v3528
    %v3530 = vsel %vm3527, %v3529, %v3525
    %v3531 = vmul.f32 1.0, %v3530
    %v3532 = vrcp.pop %v3500
    %v3533 = vmul.f32 %v3500, %v3532
    %v3534 = vsub.f32 1.0, %v3533
    %v3535 = vmul.f32 %v3532, %v3534
    %v3536 = vadd.f32 %v3532, %v3535
    %vm3537 = vweird.f32 %v3500
    %vm3538 = vweird.f32 %v3532
    %vm3539 = vmor %vm3537, %vm3538
    %v3540 = vsel %vm3539, %v3532, %v3536
    %v3541 = vand.u32 2147483647, %v3500
    %vm3542 = vcmp.eq.f32.partialorder %v3541, 8.507059e+37
    %v3543 = vand.u32 %v3500, 2147483648
    %v3544 = vor.u32 1.1754944e-38, %v3543
    %v3545 = vsel %vm3542, %v3544, %v3540
    %v3546 = vmul.f32 1.0, %v3545
    %v3547 = vrcp.pop %v3501
    %v3548 = vmul.f32 %v3501, %v3547
    %v3549 = vsub.f32 1.0, %v3548
    %v3550 = vmul.f32 %v3547, %v3549
    %v3551 = vadd.f32 %v3547, %v3550
    %vm3552 = vweird.f32 %v3501
    %vm3553 = vweird.f32 %v3547
    %vm3554 = vmor %vm3552, %vm3553
    %v3555 = vsel %vm3554, %v3547, %v3551
    %v3556 = vand.u32 2147483647, %v3501
    %vm3557 = vcmp.eq.f32.partialorder %v3556, 8.507059e+37
    %v3558 = vand.u32 %v3501, 2147483648
    %v3559 = vor.u32 1.1754944e-38, %v3558
    %v3560 = vsel %vm3557, %v3559, %v3555
    %v3561 = vmul.f32 1.0, %v3560
    %v3562 = vadd.f32 %v3406, %v3459
    %v3563 = vadd.f32 %v3409, %v3462
    %v3564 = vadd.f32 %v3412, %v3465
    %v3565 = vadd.f32 %v3415, %v3468
    %v3566 = vxor.u32 %v3562, 2147483648
    %v3567 = vxor.u32 %v3563, 2147483648
    %v3568 = vxor.u32 %v3564, 2147483648
    %v3569 = vxor.u32 %v3565, 2147483648
    %v3570 = vmul.f32 %v3566, 1.442695
    %v3571 = vpow.pop %v3570
    %v3572 = vmul.f32 %v3567, 1.442695
    %v3573 = vpow.pop %v3572
    %v3574 = vmul.f32 %v3568, 1.442695
    %v3575 = vpow.pop %v3574
    %v3576 = vmul.f32 %v3569, 1.442695
    %v3577 = vpow.pop %v3576
    %v3578 = vadd.f32 %v3571, 1.0
    %v3579 = vadd.f32 %v3573, 1.0
    %v3580 = vadd.f32 %v3575, 1.0
    %v3581 = vadd.f32 %v3577, 1.0
    %v3582 = vrcp.pop %v3578
    %v3583 = vmul.f32 %v3578, %v3582
    %v3584 = vsub.f32 1.0, %v3583
    %v3585 = vmul.f32 %v3582, %v3584
    %v3586 = vadd.f32 %v3582, %v3585
    %vm3587 = vweird.f32 %v3578
    %vm3588 = vweird.f32 %v3582
    %vm3589 = vmor %vm3587, %vm3588
    %v3590 = vsel %vm3589, %v3582, %v3586
    %v3591 = vand.u32 2147483647, %v3578
    %vm3592 = vcmp.eq.f32.partialorder %v3591, 8.507059e+37
    %v3593 = vand.u32 %v3578, 2147483648
    %v3594 = vor.u32 1.1754944e-38, %v3593
    %v3595 = vsel %vm3592, %v3594, %v3590
    %v3596 = vmul.f32 1.0, %v3595
    %v3597 = vrcp.pop %v3579
    %v3598 = vmul.f32 %v3579, %v3597
    %v3599 = vsub.f32 1.0, %v3598
    %v3600 = vmul.f32 %v3597, %v3599
    %v3601 = vadd.f32 %v3597, %v3600
    %vm3602 = vweird.f32 %v3579
    %vm3603 = vweird.f32 %v3597
    %vm3604 = vmor %vm3602, %vm3603
    %v3605 = vsel %vm3604, %v3597, %v3601
    %v3606 = vand.u32 2147483647, %v3579
    %vm3607 = vcmp.eq.f32.partialorder %v3606, 8.507059e+37
    %v3608 = vand.u32 %v3579, 2147483648
    %v3609 = vor.u32 1.1754944e-38, %v3608
    %v3610 = vsel %vm3607, %v3609, %v3605
    %v3611 = vmul.f32 1.0, %v3610
    %v3612 = vrcp.pop %v3580
    %v3613 = vmul.f32 %v3580, %v3612
    %v3614 = vsub.f32 1.0, %v3613
    %v3615 = vmul.f32 %v3612, %v3614
    %v3616 = vadd.f32 %v3612, %v3615
    %vm3617 = vweird.f32 %v3580
    %vm3618 = vweird.f32 %v3612
    %vm3619 = vmor %vm3617, %vm3618
    %v3620 = vsel %vm3619, %v3612, %v3616
    %v3621 = vand.u32 2147483647, %v3580
    %vm3622 = vcmp.eq.f32.partialorder %v3621, 8.507059e+37
    %v3623 = vand.u32 %v3580, 2147483648
    %v3624 = vor.u32 1.1754944e-38, %v3623
    %v3625 = vsel %vm3622, %v3624, %v3620
    %v3626 = vmul.f32 1.0, %v3625
    %v3627 = vrcp.pop %v3581
    %v3628 = vmul.f32 %v3581, %v3627
    %v3629 = vsub.f32 1.0, %v3628
    %v3630 = vmul.f32 %v3627, %v3629
    %v3631 = vadd.f32 %v3627, %v3630
    %vm3632 = vweird.f32 %v3581
    %vm3633 = vweird.f32 %v3627
    %vm3634 = vmor %vm3632, %vm3633
    %v3635 = vsel %vm3634, %v3627, %v3631
    %v3636 = vand.u32 2147483647, %v3581
    %vm3637 = vcmp.eq.f32.partialorder %v3636, 8.507059e+37
    %v3638 = vand.u32 %v3581, 2147483648
    %v3639 = vor.u32 1.1754944e-38, %v3638
    %v3640 = vsel %vm3637, %v3639, %v3635
    %v3641 = vmul.f32 1.0, %v3640
    %v3642 = vadd.f32 %v3471, %v136
    %v3643 = vadd.f32 %v3474, %v141
    %v3644 = vadd.f32 %v3477, %v146
    %v3645 = vadd.f32 %v3480, %v151
    %v3646 = vmul.f32 %v3516, %v3642
    %v3647 = vmul.f32 %v3531, %v3643
    %v3648 = vmul.f32 %v3546, %v3644
    %v3649 = vmul.f32 %v3561, %v3645
    %v3650 = vadd.f32 %v3418, %v3646
    %v3651 = vadd.f32 %v3421, %v3647
    %v3652 = vadd.f32 %v3424, %v3648
    %v3653 = vadd.f32 %v3427, %v3649
    %v3654 = vtanh.pop %v3650
    %v3655 = vtanh.pop %v3651
    %v3656 = vtanh.pop %v3652
    %v3657 = vtanh.pop %v3653
    %v3658 = vsub.f32 %v3075, %v3654
    %v3659 = vsub.f32 %v3076, %v3655
    %v3660 = vsub.f32 %v3077, %v3656
    %v3661 = vsub.f32 %v3078, %v3657
    %v3662 = vmul.f32 %v3596, %v3658
    %v3663 = vmul.f32 %v3611, %v3659
    %v3664 = vmul.f32 %v3626, %v3660
    %v3665 = vmul.f32 %v3641, %v3661
    %v3666 = vadd.f32 %v3654, %v3662
    %v3667 = vadd.f32 %v3655, %v3663
    %v3668 = vadd.f32 %v3656, %v3664
    %v3669 = vadd.f32 %v3657, %v3665
    %3670 = vmatpush.msra.mxu0 0.0
    %3671 = vmatpush.msra.mxu0 0.0
    %3672 = vmatpush.msra.mxu0 0.0
    %3673 = vmatpush.msra.mxu0 0.0
    %3674 = vmatpush.msra.mxu0 0.0
    %3675 = vmatpush.msra.mxu0 0.0
    %3676 = vmatpush.msra.mxu0 0.0
    %3677 = vmatpush.msra.mxu0 0.0
    %3678 = vmatpush.msra.mxu0 0.0
    %3679 = vmatpush.msra.mxu0 0.0
    %3680 = vmatpush.msra.mxu0 0.0
    %3681 = vmatpush.msra.mxu0 0.0
    %3682 = vmatpush.msra.mxu0 %v3669
    %3683 = vmatpush.msra.mxu0 %v3668
    %3684 = vmatpush.msra.mxu0 %v3667
    %3685 = vmatpush.msra.mxu0 %v3666
    %3686 = vmatmul.f32.gmra.mxu0 %v644
    %v3687 = vpop.f32.mrf.mxu0
    %v3688 = vadd.f32 %v192, %v3687
    %3689 = vmatmul.f32.gmra.mxu0 %v647
    %v3690 = vpop.f32.mrf.mxu0
    %v3691 = vadd.f32 %v197, %v3690
    %3692 = vmatmul.f32.gmra.mxu0 %v650
    %v3693 = vpop.f32.mrf.mxu0
    %v3694 = vadd.f32 %v202, %v3693
    %3695 = vmatmul.f32.gmra.mxu0 %v653
    %v3696 = vpop.f32.mrf.mxu0
    %v3697 = vadd.f32 %v207, %v3696
    %3698 = vmatmul.f32.gmra.mxu0 %v656
    %v3699 = vpop.f32.mrf.mxu0
    %v3700 = vadd.f32 %v212, %v3699
    %3701 = vmatmul.f32.gmra.mxu0 %v659
    %v3702 = vpop.f32.mrf.mxu0
    %v3703 = vadd.f32 %v217, %v3702
    %3704 = vmatmul.f32.gmra.mxu0 %v662
    %v3705 = vpop.f32.mrf.mxu0
    %v3706 = vadd.f32 %v222, %v3705
    %3707 = vmatmul.f32.gmra.mxu0 %v665
    %v3708 = vpop.f32.mrf.mxu0
    %v3709 = vadd.f32 %v227, %v3708
    %3710 = vmatmul.f32.gmra.mxu0 %v668
    %v3711 = vpop.f32.mrf.mxu0
    %v3712 = vadd.f32 %v232, %v3711
    %3713 = vmatmul.f32.gmra.mxu0 %v671
    %v3714 = vpop.f32.mrf.mxu0
    %v3715 = vadd.f32 %v237, %v3714
    %3716 = vmatmul.f32.gmra.mxu0 %v674
    %v3717 = vpop.f32.mrf.mxu0
    %v3718 = vadd.f32 %v242, %v3717
    %3719 = vmatmul.f32.gmra.mxu0 %v677
    %v3720 = vpop.f32.mrf.mxu0
    %v3721 = vadd.f32 %v247, %v3720
    %3722 = vdwg.mxu0
    %3723 = vmatpush.msra.mxu0 0.0
    %3724 = vmatpush.msra.mxu0 0.0
    %3725 = vmatpush.msra.mxu0 0.0
    %3726 = vmatpush.msra.mxu0 0.0
    %3727 = vmatpush.msra.mxu0 0.0
    %3728 = vmatpush.msra.mxu0 0.0
    %3729 = vmatpush.msra.mxu0 0.0
    %3730 = vmatpush.msra.mxu0 0.0
    %3731 = vmatpush.msra.mxu0 0.0
    %3732 = vmatpush.msra.mxu0 0.0
    %3733 = vmatpush.msra.mxu0 0.0
    %3734 = vmatpush.msra.mxu0 0.0
    %3735 = vmatpush.msra.mxu0 %v3372
    %3736 = vmatpush.msra.mxu0 %v3371
    %3737 = vmatpush.msra.mxu0 %v3370
    %3738 = vmatpush.msra.mxu0 %v3369
    %3739 = vmatmul.f32.gmra.mxu0 %v733
    %v3740 = vpop.f32.mrf.mxu0
    %v3741 = vadd.f32 0.0, %v3740
    %3742 = vmatmul.f32.gmra.mxu0 %v736
    %v3743 = vpop.f32.mrf.mxu0
    %v3744 = vadd.f32 0.0, %v3743
    %3745 = vmatmul.f32.gmra.mxu0 %v739
    %v3746 = vpop.f32.mrf.mxu0
    %v3747 = vadd.f32 0.0, %v3746
    %3748 = vmatmul.f32.gmra.mxu0 %v742
    %v3749 = vpop.f32.mrf.mxu0
    %v3750 = vadd.f32 0.0, %v3749
    %3751 = vmatmul.f32.gmra.mxu0 %v745
    %v3752 = vpop.f32.mrf.mxu0
    %v3753 = vadd.f32 0.0, %v3752
    %3754 = vmatmul.f32.gmra.mxu0 %v748
    %v3755 = vpop.f32.mrf.mxu0
    %v3756 = vadd.f32 0.0, %v3755
    %3757 = vmatmul.f32.gmra.mxu0 %v751
    %v3758 = vpop.f32.mrf.mxu0
    %v3759 = vadd.f32 0.0, %v3758
    %3760 = vmatmul.f32.gmra.mxu0 %v754
    %v3761 = vpop.f32.mrf.mxu0
    %v3762 = vadd.f32 0.0, %v3761
    %3763 = vmatmul.f32.gmra.mxu0 %v757
    %v3764 = vpop.f32.mrf.mxu0
    %v3765 = vadd.f32 0.0, %v3764
    %3766 = vmatmul.f32.gmra.mxu0 %v760
    %v3767 = vpop.f32.mrf.mxu0
    %v3768 = vadd.f32 0.0, %v3767
    %3769 = vmatmul.f32.gmra.mxu0 %v763
    %v3770 = vpop.f32.mrf.mxu0
    %v3771 = vadd.f32 0.0, %v3770
    %3772 = vmatmul.f32.gmra.mxu0 %v766
    %v3773 = vpop.f32.mrf.mxu0
    %v3774 = vadd.f32 0.0, %v3773
    %3775 = vdwg.mxu0
    %v3776 = vadd.f32 %v3688, %v3741
    %v3777 = vadd.f32 %v3691, %v3744
    %v3778 = vadd.f32 %v3694, %v3747
    %v3779 = vadd.f32 %v3697, %v3750
    %v3780 = vxor.u32 %v3776, 2147483648
    %v3781 = vxor.u32 %v3777, 2147483648
    %v3782 = vxor.u32 %v3778, 2147483648
    %v3783 = vxor.u32 %v3779, 2147483648
    %v3784 = vmul.f32 %v3780, 1.442695
    %v3785 = vpow.pop %v3784
    %v3786 = vmul.f32 %v3781, 1.442695
    %v3787 = vpow.pop %v3786
    %v3788 = vmul.f32 %v3782, 1.442695
    %v3789 = vpow.pop %v3788
    %v3790 = vmul.f32 %v3783, 1.442695
    %v3791 = vpow.pop %v3790
    %v3792 = vadd.f32 %v3785, 1.0
    %v3793 = vadd.f32 %v3787, 1.0
    %v3794 = vadd.f32 %v3789, 1.0
    %v3795 = vadd.f32 %v3791, 1.0
    %v3796 = vrcp.pop %v3792
    %v3797 = vmul.f32 %v3792, %v3796
    %v3798 = vsub.f32 1.0, %v3797
    %v3799 = vmul.f32 %v3796, %v3798
    %v3800 = vadd.f32 %v3796, %v3799
    %vm3801 = vweird.f32 %v3792
    %vm3802 = vweird.f32 %v3796
    %vm3803 = vmor %vm3801, %vm3802
    %v3804 = vsel %vm3803, %v3796, %v3800
    %v3805 = vand.u32 2147483647, %v3792
    %vm3806 = vcmp.eq.f32.partialorder %v3805, 8.507059e+37
    %v3807 = vand.u32 %v3792, 2147483648
    %v3808 = vor.u32 1.1754944e-38, %v3807
    %v3809 = vsel %vm3806, %v3808, %v3804
    %v3810 = vmul.f32 1.0, %v3809
    %v3811 = vrcp.pop %v3793
    %v3812 = vmul.f32 %v3793, %v3811
    %v3813 = vsub.f32 1.0, %v3812
    %v3814 = vmul.f32 %v3811, %v3813
    %v3815 = vadd.f32 %v3811, %v3814
    %vm3816 = vweird.f32 %v3793
    %vm3817 = vweird.f32 %v3811
    %vm3818 = vmor %vm3816, %vm3817
    %v3819 = vsel %vm3818, %v3811, %v3815
    %v3820 = vand.u32 2147483647, %v3793
    %vm3821 = vcmp.eq.f32.partialorder %v3820, 8.507059e+37
    %v3822 = vand.u32 %v3793, 2147483648
    %v3823 = vor.u32 1.1754944e-38, %v3822
    %v3824 = vsel %vm3821, %v3823, %v3819
    %v3825 = vmul.f32 1.0, %v3824
    %v3826 = vrcp.pop %v3794
    %v3827 = vmul.f32 %v3794, %v3826
    %v3828 = vsub.f32 1.0, %v3827
    %v3829 = vmul.f32 %v3826, %v3828
    %v3830 = vadd.f32 %v3826, %v3829
    %vm3831 = vweird.f32 %v3794
    %vm3832 = vweird.f32 %v3826
    %vm3833 = vmor %vm3831, %vm3832
    %v3834 = vsel %vm3833, %v3826, %v3830
    %v3835 = vand.u32 2147483647, %v3794
    %vm3836 = vcmp.eq.f32.partialorder %v3835, 8.507059e+37
    %v3837 = vand.u32 %v3794, 2147483648
    %v3838 = vor.u32 1.1754944e-38, %v3837
    %v3839 = vsel %vm3836, %v3838, %v3834
    %v3840 = vmul.f32 1.0, %v3839
    %v3841 = vrcp.pop %v3795
    %v3842 = vmul.f32 %v3795, %v3841
    %v3843 = vsub.f32 1.0, %v3842
    %v3844 = vmul.f32 %v3841, %v3843
    %v3845 = vadd.f32 %v3841, %v3844
    %vm3846 = vweird.f32 %v3795
    %vm3847 = vweird.f32 %v3841
    %vm3848 = vmor %vm3846, %vm3847
    %v3849 = vsel %vm3848, %v3841, %v3845
    %v3850 = vand.u32 2147483647, %v3795
    %vm3851 = vcmp.eq.f32.partialorder %v3850, 8.507059e+37
    %v3852 = vand.u32 %v3795, 2147483648
    %v3853 = vor.u32 1.1754944e-38, %v3852
    %v3854 = vsel %vm3851, %v3853, %v3849
    %v3855 = vmul.f32 1.0, %v3854
    %v3856 = vadd.f32 %v3700, %v3753
    %v3857 = vadd.f32 %v3703, %v3756
    %v3858 = vadd.f32 %v3706, %v3759
    %v3859 = vadd.f32 %v3709, %v3762
    %v3860 = vxor.u32 %v3856, 2147483648
    %v3861 = vxor.u32 %v3857, 2147483648
    %v3862 = vxor.u32 %v3858, 2147483648
    %v3863 = vxor.u32 %v3859, 2147483648
    %v3864 = vmul.f32 %v3860, 1.442695
    %v3865 = vpow.pop %v3864
    %v3866 = vmul.f32 %v3861, 1.442695
    %v3867 = vpow.pop %v3866
    %v3868 = vmul.f32 %v3862, 1.442695
    %v3869 = vpow.pop %v3868
    %v3870 = vmul.f32 %v3863, 1.442695
    %v3871 = vpow.pop %v3870
    %v3872 = vadd.f32 %v3865, 1.0
    %v3873 = vadd.f32 %v3867, 1.0
    %v3874 = vadd.f32 %v3869, 1.0
    %v3875 = vadd.f32 %v3871, 1.0
    %v3876 = vrcp.pop %v3872
    %v3877 = vmul.f32 %v3872, %v3876
    %v3878 = vsub.f32 1.0, %v3877
    %v3879 = vmul.f32 %v3876, %v3878
    %v3880 = vadd.f32 %v3876, %v3879
    %vm3881 = vweird.f32 %v3872
    %vm3882 = vweird.f32 %v3876
    %vm3883 = vmor %vm3881, %vm3882
    %v3884 = vsel %vm3883, %v3876, %v3880
    %v3885 = vand.u32 2147483647, %v3872
    %vm3886 = vcmp.eq.f32.partialorder %v3885, 8.507059e+37
    %v3887 = vand.u32 %v3872, 2147483648
    %v3888 = vor.u32 1.1754944e-38, %v3887
    %v3889 = vsel %vm3886, %v3888, %v3884
    %v3890 = vmul.f32 1.0, %v3889
    %v3891 = vrcp.pop %v3873
    %v3892 = vmul.f32 %v3873, %v3891
    %v3893 = vsub.f32 1.0, %v3892
    %v3894 = vmul.f32 %v3891, %v3893
    %v3895 = vadd.f32 %v3891, %v3894
    %vm3896 = vweird.f32 %v3873
    %vm3897 = vweird.f32 %v3891
    %vm3898 = vmor %vm3896, %vm3897
    %v3899 = vsel %vm3898, %v3891, %v3895
    %v3900 = vand.u32 2147483647, %v3873
    %vm3901 = vcmp.eq.f32.partialorder %v3900, 8.507059e+37
    %v3902 = vand.u32 %v3873, 2147483648
    %v3903 = vor.u32 1.1754944e-38, %v3902
    %v3904 = vsel %vm3901, %v3903, %v3899
    %v3905 = vmul.f32 1.0, %v3904
    %v3906 = vrcp.pop %v3874
    %v3907 = vmul.f32 %v3874, %v3906
    %v3908 = vsub.f32 1.0, %v3907
    %v3909 = vmul.f32 %v3906, %v3908
    %v3910 = vadd.f32 %v3906, %v3909
    %vm3911 = vweird.f32 %v3874
    %vm3912 = vweird.f32 %v3906
    %vm3913 = vmor %vm3911, %vm3912
    %v3914 = vsel %vm3913, %v3906, %v3910
    %v3915 = vand.u32 2147483647, %v3874
    %vm3916 = vcmp.eq.f32.partialorder %v3915, 8.507059e+37
    %v3917 = vand.u32 %v3874, 2147483648
    %v3918 = vor.u32 1.1754944e-38, %v3917
    %v3919 = vsel %vm3916, %v3918, %v3914
    %v3920 = vmul.f32 1.0, %v3919
    %v3921 = vrcp.pop %v3875
    %v3922 = vmul.f32 %v3875, %v3921
    %v3923 = vsub.f32 1.0, %v3922
    %v3924 = vmul.f32 %v3921, %v3923
    %v3925 = vadd.f32 %v3921, %v3924
    %vm3926 = vweird.f32 %v3875
    %vm3927 = vweird.f32 %v3921
    %vm3928 = vmor %vm3926, %vm3927
    %v3929 = vsel %vm3928, %v3921, %v3925
    %v3930 = vand.u32 2147483647, %v3875
    %vm3931 = vcmp.eq.f32.partialorder %v3930, 8.507059e+37
    %v3932 = vand.u32 %v3875, 2147483648
    %v3933 = vor.u32 1.1754944e-38, %v3932
    %v3934 = vsel %vm3931, %v3933, %v3929
    %v3935 = vmul.f32 1.0, %v3934
    %v3936 = vadd.f32 %v3765, %v256
    %v3937 = vadd.f32 %v3768, %v261
    %v3938 = vadd.f32 %v3771, %v266
    %v3939 = vadd.f32 %v3774, %v271
    %v3940 = vmul.f32 %v3810, %v3936
    %v3941 = vmul.f32 %v3825, %v3937
    %v3942 = vmul.f32 %v3840, %v3938
    %v3943 = vmul.f32 %v3855, %v3939
    %v3944 = vadd.f32 %v3712, %v3940
    %v3945 = vadd.f32 %v3715, %v3941
    %v3946 = vadd.f32 %v3718, %v3942
    %v3947 = vadd.f32 %v3721, %v3943
    %v3948 = vtanh.pop %v3944
    %v3949 = vtanh.pop %v3945
    %v3950 = vtanh.pop %v3946
    %v3951 = vtanh.pop %v3947
    %v3952 = vsub.f32 %v3369, %v3948
    %v3953 = vsub.f32 %v3370, %v3949
    %v3954 = vsub.f32 %v3371, %v3950
    %v3955 = vsub.f32 %v3372, %v3951
    %v3956 = vmul.f32 %v3890, %v3952
    %v3957 = vmul.f32 %v3905, %v3953
    %v3958 = vmul.f32 %v3920, %v3954
    %v3959 = vmul.f32 %v3935, %v3955
    %v3960 = vadd.f32 %v3948, %v3956
    %v3961 = vadd.f32 %v3949, %v3957
    %v3962 = vadd.f32 %v3950, %v3958
    %v3963 = vadd.f32 %v3951, %v3959
    %s3964 = scalar_lea.vmem %s0, 96
    %v3965 = vld [vmem:[%s3964] sm:$0xff]
    %v3966 = vld [vmem:[%s3964 + $0x8] sm:$0xff]
    %3967 = vmatpush.msra.mxu0 0.0
    %3968 = vmatpush.msra.mxu0 0.0
    %3969 = vmatpush.msra.mxu0 0.0
    %3970 = vmatpush.msra.mxu0 0.0
    %3971 = vmatpush.msra.mxu0 0.0
    %3972 = vmatpush.msra.mxu0 0.0
    %3973 = vmatpush.msra.mxu0 0.0
    %3974 = vmatpush.msra.mxu0 0.0
    %3975 = vmatpush.msra.mxu0 0.0
    %3976 = vmatpush.msra.mxu0 0.0
    %3977 = vmatpush.msra.mxu0 0.0
    %3978 = vmatpush.msra.mxu0 0.0
    %3979 = vmatpush.msra.mxu0 0.0
    %3980 = vmatpush.msra.mxu0 0.0
    %3981 = vmatpush.msra.mxu0 %v3966
    %3982 = vmatpush.msra.mxu0 %v3965
    %3983 = vmatmul.f32.gmra.mxu0 %v277
    %v3984 = vpop.f32.mrf.mxu0
    %v3985 = vadd.f32 %v72, %v3984
    %3986 = vmatmul.f32.gmra.mxu0 %v280
    %v3987 = vpop.f32.mrf.mxu0
    %v3988 = vadd.f32 %v77, %v3987
    %3989 = vmatmul.f32.gmra.mxu0 %v283
    %v3990 = vpop.f32.mrf.mxu0
    %v3991 = vadd.f32 %v82, %v3990
    %3992 = vmatmul.f32.gmra.mxu0 %v286
    %v3993 = vpop.f32.mrf.mxu0
    %v3994 = vadd.f32 %v87, %v3993
    %3995 = vmatmul.f32.gmra.mxu0 %v289
    %v3996 = vpop.f32.mrf.mxu0
    %v3997 = vadd.f32 %v92, %v3996
    %3998 = vmatmul.f32.gmra.mxu0 %v292
    %v3999 = vpop.f32.mrf.mxu0
    %v4000 = vadd.f32 %v97, %v3999
    %4001 = vmatmul.f32.gmra.mxu0 %v295
    %v4002 = vpop.f32.mrf.mxu0
    %v4003 = vadd.f32 %v102, %v4002
    %4004 = vmatmul.f32.gmra.mxu0 %v298
    %v4005 = vpop.f32.mrf.mxu0
    %v4006 = vadd.f32 %v107, %v4005
    %4007 = vmatmul.f32.gmra.mxu0 %v301
    %v4008 = vpop.f32.mrf.mxu0
    %v4009 = vadd.f32 %v112, %v4008
    %4010 = vmatmul.f32.gmra.mxu0 %v304
    %v4011 = vpop.f32.mrf.mxu0
    %v4012 = vadd.f32 %v117, %v4011
    %4013 = vmatmul.f32.gmra.mxu0 %v307
    %v4014 = vpop.f32.mrf.mxu0
    %v4015 = vadd.f32 %v122, %v4014
    %4016 = vmatmul.f32.gmra.mxu0 %v310
    %v4017 = vpop.f32.mrf.mxu0
    %v4018 = vadd.f32 %v127, %v4017
    %4019 = vdwg.mxu0
    %4020 = vmatpush.msra.mxu0 0.0
    %4021 = vmatpush.msra.mxu0 0.0
    %4022 = vmatpush.msra.mxu0 0.0
    %4023 = vmatpush.msra.mxu0 0.0
    %4024 = vmatpush.msra.mxu0 0.0
    %4025 = vmatpush.msra.mxu0 0.0
    %4026 = vmatpush.msra.mxu0 0.0
    %4027 = vmatpush.msra.mxu0 0.0
    %4028 = vmatpush.msra.mxu0 0.0
    %4029 = vmatpush.msra.mxu0 0.0
    %4030 = vmatpush.msra.mxu0 0.0
    %4031 = vmatpush.msra.mxu0 0.0
    %4032 = vmatpush.msra.mxu0 %v3669
    %4033 = vmatpush.msra.mxu0 %v3668
    %4034 = vmatpush.msra.mxu0 %v3667
    %4035 = vmatpush.msra.mxu0 %v3666
    %4036 = vmatmul.f32.gmra.mxu0 %v367
    %v4037 = vpop.f32.mrf.mxu0
    %v4038 = vadd.f32 0.0, %v4037
    %4039 = vmatmul.f32.gmra.mxu0 %v370
    %v4040 = vpop.f32.mrf.mxu0
    %v4041 = vadd.f32 0.0, %v4040
    %4042 = vmatmul.f32.gmra.mxu0 %v373
    %v4043 = vpop.f32.mrf.mxu0
    %v4044 = vadd.f32 0.0, %v4043
    %4045 = vmatmul.f32.gmra.mxu0 %v376
    %v4046 = vpop.f32.mrf.mxu0
    %v4047 = vadd.f32 0.0, %v4046
    %4048 = vmatmul.f32.gmra.mxu0 %v379
    %v4049 = vpop.f32.mrf.mxu0
    %v4050 = vadd.f32 0.0, %v4049
    %4051 = vmatmul.f32.gmra.mxu0 %v382
    %v4052 = vpop.f32.mrf.mxu0
    %v4053 = vadd.f32 0.0, %v4052
    %4054 = vmatmul.f32.gmra.mxu0 %v385
    %v4055 = vpop.f32.mrf.mxu0
    %v4056 = vadd.f32 0.0, %v4055
    %4057 = vmatmul.f32.gmra.mxu0 %v388
    %v4058 = vpop.f32.mrf.mxu0
    %v4059 = vadd.f32 0.0, %v4058
    %4060 = vmatmul.f32.gmra.mxu0 %v391
    %v4061 = vpop.f32.mrf.mxu0
    %v4062 = vadd.f32 0.0, %v4061
    %4063 = vmatmul.f32.gmra.mxu0 %v394
    %v4064 = vpop.f32.mrf.mxu0
    %v4065 = vadd.f32 0.0, %v4064
    %4066 = vmatmul.f32.gmra.mxu0 %v397
    %v4067 = vpop.f32.mrf.mxu0
    %v4068 = vadd.f32 0.0, %v4067
    %4069 = vmatmul.f32.gmra.mxu0 %v400
    %v4070 = vpop.f32.mrf.mxu0
    %v4071 = vadd.f32 0.0, %v4070
    %4072 = vdwg.mxu0
    %v4073 = vadd.f32 %v3985, %v4038
    %v4074 = vadd.f32 %v3988, %v4041
    %v4075 = vadd.f32 %v3991, %v4044
    %v4076 = vadd.f32 %v3994, %v4047
    %v4077 = vxor.u32 %v4073, 2147483648
    %v4078 = vxor.u32 %v4074, 2147483648
    %v4079 = vxor.u32 %v4075, 2147483648
    %v4080 = vxor.u32 %v4076, 2147483648
    %v4081 = vmul.f32 %v4077, 1.442695
    %v4082 = vpow.pop %v4081
    %v4083 = vmul.f32 %v4078, 1.442695
    %v4084 = vpow.pop %v4083
    %v4085 = vmul.f32 %v4079, 1.442695
    %v4086 = vpow.pop %v4085
    %v4087 = vmul.f32 %v4080, 1.442695
    %v4088 = vpow.pop %v4087
    %v4089 = vadd.f32 %v4082, 1.0
    %v4090 = vadd.f32 %v4084, 1.0
    %v4091 = vadd.f32 %v4086, 1.0
    %v4092 = vadd.f32 %v4088, 1.0
    %v4093 = vrcp.pop %v4089
    %v4094 = vmul.f32 %v4089, %v4093
    %v4095 = vsub.f32 1.0, %v4094
    %v4096 = vmul.f32 %v4093, %v4095
    %v4097 = vadd.f32 %v4093, %v4096
    %vm4098 = vweird.f32 %v4089
    %vm4099 = vweird.f32 %v4093
    %vm4100 = vmor %vm4098, %vm4099
    %v4101 = vsel %vm4100, %v4093, %v4097
    %v4102 = vand.u32 2147483647, %v4089
    %vm4103 = vcmp.eq.f32.partialorder %v4102, 8.507059e+37
    %v4104 = vand.u32 %v4089, 2147483648
    %v4105 = vor.u32 1.1754944e-38, %v4104
    %v4106 = vsel %vm4103, %v4105, %v4101
    %v4107 = vmul.f32 1.0, %v4106
    %v4108 = vrcp.pop %v4090
    %v4109 = vmul.f32 %v4090, %v4108
    %v4110 = vsub.f32 1.0, %v4109
    %v4111 = vmul.f32 %v4108, %v4110
    %v4112 = vadd.f32 %v4108, %v4111
    %vm4113 = vweird.f32 %v4090
    %vm4114 = vweird.f32 %v4108
    %vm4115 = vmor %vm4113, %vm4114
    %v4116 = vsel %vm4115, %v4108, %v4112
    %v4117 = vand.u32 2147483647, %v4090
    %vm4118 = vcmp.eq.f32.partialorder %v4117, 8.507059e+37
    %v4119 = vand.u32 %v4090, 2147483648
    %v4120 = vor.u32 1.1754944e-38, %v4119
    %v4121 = vsel %vm4118, %v4120, %v4116
    %v4122 = vmul.f32 1.0, %v4121
    %v4123 = vrcp.pop %v4091
    %v4124 = vmul.f32 %v4091, %v4123
    %v4125 = vsub.f32 1.0, %v4124
    %v4126 = vmul.f32 %v4123, %v4125
    %v4127 = vadd.f32 %v4123, %v4126
    %vm4128 = vweird.f32 %v4091
    %vm4129 = vweird.f32 %v4123
    %vm4130 = vmor %vm4128, %vm4129
    %v4131 = vsel %vm4130, %v4123, %v4127
    %v4132 = vand.u32 2147483647, %v4091
    %vm4133 = vcmp.eq.f32.partialorder %v4132, 8.507059e+37
    %v4134 = vand.u32 %v4091, 2147483648
    %v4135 = vor.u32 1.1754944e-38, %v4134
    %v4136 = vsel %vm4133, %v4135, %v4131
    %v4137 = vmul.f32 1.0, %v4136
    %v4138 = vrcp.pop %v4092
    %v4139 = vmul.f32 %v4092, %v4138
    %v4140 = vsub.f32 1.0, %v4139
    %v4141 = vmul.f32 %v4138, %v4140
    %v4142 = vadd.f32 %v4138, %v4141
    %vm4143 = vweird.f32 %v4092
    %vm4144 = vweird.f32 %v4138
    %vm4145 = vmor %vm4143, %vm4144
    %v4146 = vsel %vm4145, %v4138, %v4142
    %v4147 = vand.u32 2147483647, %v4092
    %vm4148 = vcmp.eq.f32.partialorder %v4147, 8.507059e+37
    %v4149 = vand.u32 %v4092, 2147483648
    %v4150 = vor.u32 1.1754944e-38, %v4149
    %v4151 = vsel %vm4148, %v4150, %v4146
    %v4152 = vmul.f32 1.0, %v4151
    %v4153 = vadd.f32 %v3997, %v4050
    %v4154 = vadd.f32 %v4000, %v4053
    %v4155 = vadd.f32 %v4003, %v4056
    %v4156 = vadd.f32 %v4006, %v4059
    %v4157 = vxor.u32 %v4153, 2147483648
    %v4158 = vxor.u32 %v4154, 2147483648
    %v4159 = vxor.u32 %v4155, 2147483648
    %v4160 = vxor.u32 %v4156, 2147483648
    %v4161 = vmul.f32 %v4157, 1.442695
    %v4162 = vpow.pop %v4161
    %v4163 = vmul.f32 %v4158, 1.442695
    %v4164 = vpow.pop %v4163
    %v4165 = vmul.f32 %v4159, 1.442695
    %v4166 = vpow.pop %v4165
    %v4167 = vmul.f32 %v4160, 1.442695
    %v4168 = vpow.pop %v4167
    %v4169 = vadd.f32 %v4162, 1.0
    %v4170 = vadd.f32 %v4164, 1.0
    %v4171 = vadd.f32 %v4166, 1.0
    %v4172 = vadd.f32 %v4168, 1.0
    %v4173 = vrcp.pop %v4169
    %v4174 = vmul.f32 %v4169, %v4173
    %v4175 = vsub.f32 1.0, %v4174
    %v4176 = vmul.f32 %v4173, %v4175
    %v4177 = vadd.f32 %v4173, %v4176
    %vm4178 = vweird.f32 %v4169
    %vm4179 = vweird.f32 %v4173
    %vm4180 = vmor %vm4178, %vm4179
    %v4181 = vsel %vm4180, %v4173, %v4177
    %v4182 = vand.u32 2147483647, %v4169
    %vm4183 = vcmp.eq.f32.partialorder %v4182, 8.507059e+37
    %v4184 = vand.u32 %v4169, 2147483648
    %v4185 = vor.u32 1.1754944e-38, %v4184
    %v4186 = vsel %vm4183, %v4185, %v4181
    %v4187 = vmul.f32 1.0, %v4186
    %v4188 = vrcp.pop %v4170
    %v4189 = vmul.f32 %v4170, %v4188
    %v4190 = vsub.f32 1.0, %v4189
    %v4191 = vmul.f32 %v4188, %v4190
    %v4192 = vadd.f32 %v4188, %v4191
    %vm4193 = vweird.f32 %v4170
    %vm4194 = vweird.f32 %v4188
    %vm4195 = vmor %vm4193, %vm4194
    %v4196 = vsel %vm4195, %v4188, %v4192
    %v4197 = vand.u32 2147483647, %v4170
    %vm4198 = vcmp.eq.f32.partialorder %v4197, 8.507059e+37
    %v4199 = vand.u32 %v4170, 2147483648
    %v4200 = vor.u32 1.1754944e-38, %v4199
    %v4201 = vsel %vm4198, %v4200, %v4196
    %v4202 = vmul.f32 1.0, %v4201
    %v4203 = vrcp.pop %v4171
    %v4204 = vmul.f32 %v4171, %v4203
    %v4205 = vsub.f32 1.0, %v4204
    %v4206 = vmul.f32 %v4203, %v4205
    %v4207 = vadd.f32 %v4203, %v4206
    %vm4208 = vweird.f32 %v4171
    %vm4209 = vweird.f32 %v4203
    %vm4210 = vmor %vm4208, %vm4209
    %v4211 = vsel %vm4210, %v4203, %v4207
    %v4212 = vand.u32 2147483647, %v4171
    %vm4213 = vcmp.eq.f32.partialorder %v4212, 8.507059e+37
    %v4214 = vand.u32 %v4171, 2147483648
    %v4215 = vor.u32 1.1754944e-38, %v4214
    %v4216 = vsel %vm4213, %v4215, %v4211
    %v4217 = vmul.f32 1.0, %v4216
    %v4218 = vrcp.pop %v4172
    %v4219 = vmul.f32 %v4172, %v4218
    %v4220 = vsub.f32 1.0, %v4219
    %v4221 = vmul.f32 %v4218, %v4220
    %v4222 = vadd.f32 %v4218, %v4221
    %vm4223 = vweird.f32 %v4172
    %vm4224 = vweird.f32 %v4218
    %vm4225 = vmor %vm4223, %vm4224
    %v4226 = vsel %vm4225, %v4218, %v4222
    %v4227 = vand.u32 2147483647, %v4172
    %vm4228 = vcmp.eq.f32.partialorder %v4227, 8.507059e+37
    %v4229 = vand.u32 %v4172, 2147483648
    %v4230 = vor.u32 1.1754944e-38, %v4229
    %v4231 = vsel %vm4228, %v4230, %v4226
    %v4232 = vmul.f32 1.0, %v4231
    %v4233 = vadd.f32 %v4062, %v136
    %v4234 = vadd.f32 %v4065, %v141
    %v4235 = vadd.f32 %v4068, %v146
    %v4236 = vadd.f32 %v4071, %v151
    %v4237 = vmul.f32 %v4107, %v4233
    %v4238 = vmul.f32 %v4122, %v4234
    %v4239 = vmul.f32 %v4137, %v4235
    %v4240 = vmul.f32 %v4152, %v4236
    %v4241 = vadd.f32 %v4009, %v4237
    %v4242 = vadd.f32 %v4012, %v4238
    %v4243 = vadd.f32 %v4015, %v4239
    %v4244 = vadd.f32 %v4018, %v4240
    %v4245 = vtanh.pop %v4241
    %v4246 = vtanh.pop %v4242
    %v4247 = vtanh.pop %v4243
    %v4248 = vtanh.pop %v4244
    %v4249 = vsub.f32 %v3666, %v4245
    %v4250 = vsub.f32 %v3667, %v4246
    %v4251 = vsub.f32 %v3668, %v4247
    %v4252 = vsub.f32 %v3669, %v4248
    %v4253 = vmul.f32 %v4187, %v4249
    %v4254 = vmul.f32 %v4202, %v4250
    %v4255 = vmul.f32 %v4217, %v4251
    %v4256 = vmul.f32 %v4232, %v4252
    %v4257 = vadd.f32 %v4245, %v4253
    %v4258 = vadd.f32 %v4246, %v4254
    %v4259 = vadd.f32 %v4247, %v4255
    %v4260 = vadd.f32 %v4248, %v4256
    %4261 = vmatpush.msra.mxu0 0.0
    %4262 = vmatpush.msra.mxu0 0.0
    %4263 = vmatpush.msra.mxu0 0.0
    %4264 = vmatpush.msra.mxu0 0.0
    %4265 = vmatpush.msra.mxu0 0.0
    %4266 = vmatpush.msra.mxu0 0.0
    %4267 = vmatpush.msra.mxu0 0.0
    %4268 = vmatpush.msra.mxu0 0.0
    %4269 = vmatpush.msra.mxu0 0.0
    %4270 = vmatpush.msra.mxu0 0.0
    %4271 = vmatpush.msra.mxu0 0.0
    %4272 = vmatpush.msra.mxu0 0.0
    %4273 = vmatpush.msra.mxu0 %v4260
    %4274 = vmatpush.msra.mxu0 %v4259
    %4275 = vmatpush.msra.mxu0 %v4258
    %4276 = vmatpush.msra.mxu0 %v4257
    %4277 = vmatmul.f32.gmra.mxu0 %v644
    %v4278 = vpop.f32.mrf.mxu0
    %v4279 = vadd.f32 %v192, %v4278
    %4280 = vmatmul.f32.gmra.mxu0 %v647
    %v4281 = vpop.f32.mrf.mxu0
    %v4282 = vadd.f32 %v197, %v4281
    %4283 = vmatmul.f32.gmra.mxu0 %v650
    %v4284 = vpop.f32.mrf.mxu0
    %v4285 = vadd.f32 %v202, %v4284
    %4286 = vmatmul.f32.gmra.mxu0 %v653
    %v4287 = vpop.f32.mrf.mxu0
    %v4288 = vadd.f32 %v207, %v4287
    %4289 = vmatmul.f32.gmra.mxu0 %v656
    %v4290 = vpop.f32.mrf.mxu0
    %v4291 = vadd.f32 %v212, %v4290
    %4292 = vmatmul.f32.gmra.mxu0 %v659
    %v4293 = vpop.f32.mrf.mxu0
    %v4294 = vadd.f32 %v217, %v4293
    %4295 = vmatmul.f32.gmra.mxu0 %v662
    %v4296 = vpop.f32.mrf.mxu0
    %v4297 = vadd.f32 %v222, %v4296
    %4298 = vmatmul.f32.gmra.mxu0 %v665
    %v4299 = vpop.f32.mrf.mxu0
    %v4300 = vadd.f32 %v227, %v4299
    %4301 = vmatmul.f32.gmra.mxu0 %v668
    %v4302 = vpop.f32.mrf.mxu0
    %v4303 = vadd.f32 %v232, %v4302
    %4304 = vmatmul.f32.gmra.mxu0 %v671
    %v4305 = vpop.f32.mrf.mxu0
    %v4306 = vadd.f32 %v237, %v4305
    %4307 = vmatmul.f32.gmra.mxu0 %v674
    %v4308 = vpop.f32.mrf.mxu0
    %v4309 = vadd.f32 %v242, %v4308
    %4310 = vmatmul.f32.gmra.mxu0 %v677
    %v4311 = vpop.f32.mrf.mxu0
    %v4312 = vadd.f32 %v247, %v4311
    %4313 = vdwg.mxu0
    %4314 = vmatpush.msra.mxu0 0.0
    %4315 = vmatpush.msra.mxu0 0.0
    %4316 = vmatpush.msra.mxu0 0.0
    %4317 = vmatpush.msra.mxu0 0.0
    %4318 = vmatpush.msra.mxu0 0.0
    %4319 = vmatpush.msra.mxu0 0.0
    %4320 = vmatpush.msra.mxu0 0.0
    %4321 = vmatpush.msra.mxu0 0.0
    %4322 = vmatpush.msra.mxu0 0.0
    %4323 = vmatpush.msra.mxu0 0.0
    %4324 = vmatpush.msra.mxu0 0.0
    %4325 = vmatpush.msra.mxu0 0.0
    %4326 = vmatpush.msra.mxu0 %v3963
    %4327 = vmatpush.msra.mxu0 %v3962
    %4328 = vmatpush.msra.mxu0 %v3961
    %4329 = vmatpush.msra.mxu0 %v3960
    %4330 = vmatmul.f32.gmra.mxu0 %v733
    %v4331 = vpop.f32.mrf.mxu0
    %v4332 = vadd.f32 0.0, %v4331
    %4333 = vmatmul.f32.gmra.mxu0 %v736
    %v4334 = vpop.f32.mrf.mxu0
    %v4335 = vadd.f32 0.0, %v4334
    %4336 = vmatmul.f32.gmra.mxu0 %v739
    %v4337 = vpop.f32.mrf.mxu0
    %v4338 = vadd.f32 0.0, %v4337
    %4339 = vmatmul.f32.gmra.mxu0 %v742
    %v4340 = vpop.f32.mrf.mxu0
    %v4341 = vadd.f32 0.0, %v4340
    %4342 = vmatmul.f32.gmra.mxu0 %v745
    %v4343 = vpop.f32.mrf.mxu0
    %v4344 = vadd.f32 0.0, %v4343
    %4345 = vmatmul.f32.gmra.mxu0 %v748
    %v4346 = vpop.f32.mrf.mxu0
    %v4347 = vadd.f32 0.0, %v4346
    %4348 = vmatmul.f32.gmra.mxu0 %v751
    %v4349 = vpop.f32.mrf.mxu0
    %v4350 = vadd.f32 0.0, %v4349
    %4351 = vmatmul.f32.gmra.mxu0 %v754
    %v4352 = vpop.f32.mrf.mxu0
    %v4353 = vadd.f32 0.0, %v4352
    %4354 = vmatmul.f32.gmra.mxu0 %v757
    %v4355 = vpop.f32.mrf.mxu0
    %v4356 = vadd.f32 0.0, %v4355
    %4357 = vmatmul.f32.gmra.mxu0 %v760
    %v4358 = vpop.f32.mrf.mxu0
    %v4359 = vadd.f32 0.0, %v4358
    %4360 = vmatmul.f32.gmra.mxu0 %v763
    %v4361 = vpop.f32.mrf.mxu0
    %v4362 = vadd.f32 0.0, %v4361
    %4363 = vmatmul.f32.gmra.mxu0 %v766
    %v4364 = vpop.f32.mrf.mxu0
    %v4365 = vadd.f32 0.0, %v4364
    %4366 = vdwg.mxu0
    %v4367 = vadd.f32 %v4279, %v4332
    %v4368 = vadd.f32 %v4282, %v4335
    %v4369 = vadd.f32 %v4285, %v4338
    %v4370 = vadd.f32 %v4288, %v4341
    %v4371 = vxor.u32 %v4367, 2147483648
    %v4372 = vxor.u32 %v4368, 2147483648
    %v4373 = vxor.u32 %v4369, 2147483648
    %v4374 = vxor.u32 %v4370, 2147483648
    %v4375 = vmul.f32 %v4371, 1.442695
    %v4376 = vpow.pop %v4375
    %v4377 = vmul.f32 %v4372, 1.442695
    %v4378 = vpow.pop %v4377
    %v4379 = vmul.f32 %v4373, 1.442695
    %v4380 = vpow.pop %v4379
    %v4381 = vmul.f32 %v4374, 1.442695
    %v4382 = vpow.pop %v4381
    %v4383 = vadd.f32 %v4376, 1.0
    %v4384 = vadd.f32 %v4378, 1.0
    %v4385 = vadd.f32 %v4380, 1.0
    %v4386 = vadd.f32 %v4382, 1.0
    %v4387 = vrcp.pop %v4383
    %v4388 = vmul.f32 %v4383, %v4387
    %v4389 = vsub.f32 1.0, %v4388
    %v4390 = vmul.f32 %v4387, %v4389
    %v4391 = vadd.f32 %v4387, %v4390
    %vm4392 = vweird.f32 %v4383
    %vm4393 = vweird.f32 %v4387
    %vm4394 = vmor %vm4392, %vm4393
    %v4395 = vsel %vm4394, %v4387, %v4391
    %v4396 = vand.u32 2147483647, %v4383
    %vm4397 = vcmp.eq.f32.partialorder %v4396, 8.507059e+37
    %v4398 = vand.u32 %v4383, 2147483648
    %v4399 = vor.u32 1.1754944e-38, %v4398
    %v4400 = vsel %vm4397, %v4399, %v4395
    %v4401 = vmul.f32 1.0, %v4400
    %v4402 = vrcp.pop %v4384
    %v4403 = vmul.f32 %v4384, %v4402
    %v4404 = vsub.f32 1.0, %v4403
    %v4405 = vmul.f32 %v4402, %v4404
    %v4406 = vadd.f32 %v4402, %v4405
    %vm4407 = vweird.f32 %v4384
    %vm4408 = vweird.f32 %v4402
    %vm4409 = vmor %vm4407, %vm4408
    %v4410 = vsel %vm4409, %v4402, %v4406
    %v4411 = vand.u32 2147483647, %v4384
    %vm4412 = vcmp.eq.f32.partialorder %v4411, 8.507059e+37
    %v4413 = vand.u32 %v4384, 2147483648
    %v4414 = vor.u32 1.1754944e-38, %v4413
    %v4415 = vsel %vm4412, %v4414, %v4410
    %v4416 = vmul.f32 1.0, %v4415
    %v4417 = vrcp.pop %v4385
    %v4418 = vmul.f32 %v4385, %v4417
    %v4419 = vsub.f32 1.0, %v4418
    %v4420 = vmul.f32 %v4417, %v4419
    %v4421 = vadd.f32 %v4417, %v4420
    %vm4422 = vweird.f32 %v4385
    %vm4423 = vweird.f32 %v4417
    %vm4424 = vmor %vm4422, %vm4423
    %v4425 = vsel %vm4424, %v4417, %v4421
    %v4426 = vand.u32 2147483647, %v4385
    %vm4427 = vcmp.eq.f32.partialorder %v4426, 8.507059e+37
    %v4428 = vand.u32 %v4385, 2147483648
    %v4429 = vor.u32 1.1754944e-38, %v4428
    %v4430 = vsel %vm4427, %v4429, %v4425
    %v4431 = vmul.f32 1.0, %v4430
    %v4432 = vrcp.pop %v4386
    %v4433 = vmul.f32 %v4386, %v4432
    %v4434 = vsub.f32 1.0, %v4433
    %v4435 = vmul.f32 %v4432, %v4434
    %v4436 = vadd.f32 %v4432, %v4435
    %vm4437 = vweird.f32 %v4386
    %vm4438 = vweird.f32 %v4432
    %vm4439 = vmor %vm4437, %vm4438
    %v4440 = vsel %vm4439, %v4432, %v4436
    %v4441 = vand.u32 2147483647, %v4386
    %vm4442 = vcmp.eq.f32.partialorder %v4441, 8.507059e+37
    %v4443 = vand.u32 %v4386, 2147483648
    %v4444 = vor.u32 1.1754944e-38, %v4443
    %v4445 = vsel %vm4442, %v4444, %v4440
    %v4446 = vmul.f32 1.0, %v4445
    %v4447 = vadd.f32 %v4291, %v4344
    %v4448 = vadd.f32 %v4294, %v4347
    %v4449 = vadd.f32 %v4297, %v4350
    %v4450 = vadd.f32 %v4300, %v4353
    %v4451 = vxor.u32 %v4447, 2147483648
    %v4452 = vxor.u32 %v4448, 2147483648
    %v4453 = vxor.u32 %v4449, 2147483648
    %v4454 = vxor.u32 %v4450, 2147483648
    %v4455 = vmul.f32 %v4451, 1.442695
    %v4456 = vpow.pop %v4455
    %v4457 = vmul.f32 %v4452, 1.442695
    %v4458 = vpow.pop %v4457
    %v4459 = vmul.f32 %v4453, 1.442695
    %v4460 = vpow.pop %v4459
    %v4461 = vmul.f32 %v4454, 1.442695
    %v4462 = vpow.pop %v4461
    %v4463 = vadd.f32 %v4456, 1.0
    %v4464 = vadd.f32 %v4458, 1.0
    %v4465 = vadd.f32 %v4460, 1.0
    %v4466 = vadd.f32 %v4462, 1.0
    %v4467 = vrcp.pop %v4463
    %v4468 = vmul.f32 %v4463, %v4467
    %v4469 = vsub.f32 1.0, %v4468
    %v4470 = vmul.f32 %v4467, %v4469
    %v4471 = vadd.f32 %v4467, %v4470
    %vm4472 = vweird.f32 %v4463
    %vm4473 = vweird.f32 %v4467
    %vm4474 = vmor %vm4472, %vm4473
    %v4475 = vsel %vm4474, %v4467, %v4471
    %v4476 = vand.u32 2147483647, %v4463
    %vm4477 = vcmp.eq.f32.partialorder %v4476, 8.507059e+37
    %v4478 = vand.u32 %v4463, 2147483648
    %v4479 = vor.u32 1.1754944e-38, %v4478
    %v4480 = vsel %vm4477, %v4479, %v4475
    %v4481 = vmul.f32 1.0, %v4480
    %v4482 = vrcp.pop %v4464
    %v4483 = vmul.f32 %v4464, %v4482
    %v4484 = vsub.f32 1.0, %v4483
    %v4485 = vmul.f32 %v4482, %v4484
    %v4486 = vadd.f32 %v4482, %v4485
    %vm4487 = vweird.f32 %v4464
    %vm4488 = vweird.f32 %v4482
    %vm4489 = vmor %vm4487, %vm4488
    %v4490 = vsel %vm4489, %v4482, %v4486
    %v4491 = vand.u32 2147483647, %v4464
    %vm4492 = vcmp.eq.f32.partialorder %v4491, 8.507059e+37
    %v4493 = vand.u32 %v4464, 2147483648
    %v4494 = vor.u32 1.1754944e-38, %v4493
    %v4495 = vsel %vm4492, %v4494, %v4490
    %v4496 = vmul.f32 1.0, %v4495
    %v4497 = vrcp.pop %v4465
    %v4498 = vmul.f32 %v4465, %v4497
    %v4499 = vsub.f32 1.0, %v4498
    %v4500 = vmul.f32 %v4497, %v4499
    %v4501 = vadd.f32 %v4497, %v4500
    %vm4502 = vweird.f32 %v4465
    %vm4503 = vweird.f32 %v4497
    %vm4504 = vmor %vm4502, %vm4503
    %v4505 = vsel %vm4504, %v4497, %v4501
    %v4506 = vand.u32 2147483647, %v4465
    %vm4507 = vcmp.eq.f32.partialorder %v4506, 8.507059e+37
    %v4508 = vand.u32 %v4465, 2147483648
    %v4509 = vor.u32 1.1754944e-38, %v4508
    %v4510 = vsel %vm4507, %v4509, %v4505
    %v4511 = vmul.f32 1.0, %v4510
    %v4512 = vrcp.pop %v4466
    %v4513 = vmul.f32 %v4466, %v4512
    %v4514 = vsub.f32 1.0, %v4513
    %v4515 = vmul.f32 %v4512, %v4514
    %v4516 = vadd.f32 %v4512, %v4515
    %vm4517 = vweird.f32 %v4466
    %vm4518 = vweird.f32 %v4512
    %vm4519 = vmor %vm4517, %vm4518
    %v4520 = vsel %vm4519, %v4512, %v4516
    %v4521 = vand.u32 2147483647, %v4466
    %vm4522 = vcmp.eq.f32.partialorder %v4521, 8.507059e+37
    %v4523 = vand.u32 %v4466, 2147483648
    %v4524 = vor.u32 1.1754944e-38, %v4523
    %v4525 = vsel %vm4522, %v4524, %v4520
    %v4526 = vmul.f32 1.0, %v4525
    %v4527 = vadd.f32 %v4356, %v256
    %v4528 = vadd.f32 %v4359, %v261
    %v4529 = vadd.f32 %v4362, %v266
    %v4530 = vadd.f32 %v4365, %v271
    %v4531 = vmul.f32 %v4401, %v4527
    %v4532 = vmul.f32 %v4416, %v4528
    %v4533 = vmul.f32 %v4431, %v4529
    %v4534 = vmul.f32 %v4446, %v4530
    %v4535 = vadd.f32 %v4303, %v4531
    %v4536 = vadd.f32 %v4306, %v4532
    %v4537 = vadd.f32 %v4309, %v4533
    %v4538 = vadd.f32 %v4312, %v4534
    %v4539 = vtanh.pop %v4535
    %v4540 = vtanh.pop %v4536
    %v4541 = vtanh.pop %v4537
    %v4542 = vtanh.pop %v4538
    %v4543 = vsub.f32 %v3960, %v4539
    %v4544 = vsub.f32 %v3961, %v4540
    %v4545 = vsub.f32 %v3962, %v4541
    %v4546 = vsub.f32 %v3963, %v4542
    %v4547 = vmul.f32 %v4481, %v4543
    %v4548 = vmul.f32 %v4496, %v4544
    %v4549 = vmul.f32 %v4511, %v4545
    %v4550 = vmul.f32 %v4526, %v4546
    %v4551 = vadd.f32 %v4539, %v4547
    %v4552 = vadd.f32 %v4540, %v4548
    %v4553 = vadd.f32 %v4541, %v4549
    %v4554 = vadd.f32 %v4542, %v4550
    %s4555 = scalar_lea.vmem %s0, 112
    %v4556 = vld [vmem:[%s4555] sm:$0xff]
    %v4557 = vld [vmem:[%s4555 + $0x8] sm:$0xff]
    %4558 = vmatpush.msra.mxu0 0.0
    %4559 = vmatpush.msra.mxu0 0.0
    %4560 = vmatpush.msra.mxu0 0.0
    %4561 = vmatpush.msra.mxu0 0.0
    %4562 = vmatpush.msra.mxu0 0.0
    %4563 = vmatpush.msra.mxu0 0.0
    %4564 = vmatpush.msra.mxu0 0.0
    %4565 = vmatpush.msra.mxu0 0.0
    %4566 = vmatpush.msra.mxu0 0.0
    %4567 = vmatpush.msra.mxu0 0.0
    %4568 = vmatpush.msra.mxu0 0.0
    %4569 = vmatpush.msra.mxu0 0.0
    %4570 = vmatpush.msra.mxu0 0.0
    %4571 = vmatpush.msra.mxu0 0.0
    %4572 = vmatpush.msra.mxu0 %v4557
    %4573 = vmatpush.msra.mxu0 %v4556
    %4574 = vmatmul.f32.gmra.mxu0 %v277
    %v4575 = vpop.f32.mrf.mxu0
    %v4576 = vadd.f32 %v72, %v4575
    %4577 = vmatmul.f32.gmra.mxu0 %v280
    %v4578 = vpop.f32.mrf.mxu0
    %v4579 = vadd.f32 %v77, %v4578
    %4580 = vmatmul.f32.gmra.mxu0 %v283
    %v4581 = vpop.f32.mrf.mxu0
    %v4582 = vadd.f32 %v82, %v4581
    %4583 = vmatmul.f32.gmra.mxu0 %v286
    %v4584 = vpop.f32.mrf.mxu0
    %v4585 = vadd.f32 %v87, %v4584
    %4586 = vmatmul.f32.gmra.mxu0 %v289
    %v4587 = vpop.f32.mrf.mxu0
    %v4588 = vadd.f32 %v92, %v4587
    %4589 = vmatmul.f32.gmra.mxu0 %v292
    %v4590 = vpop.f32.mrf.mxu0
    %v4591 = vadd.f32 %v97, %v4590
    %4592 = vmatmul.f32.gmra.mxu0 %v295
    %v4593 = vpop.f32.mrf.mxu0
    %v4594 = vadd.f32 %v102, %v4593
    %4595 = vmatmul.f32.gmra.mxu0 %v298
    %v4596 = vpop.f32.mrf.mxu0
    %v4597 = vadd.f32 %v107, %v4596
    %4598 = vmatmul.f32.gmra.mxu0 %v301
    %v4599 = vpop.f32.mrf.mxu0
    %v4600 = vadd.f32 %v112, %v4599
    %4601 = vmatmul.f32.gmra.mxu0 %v304
    %v4602 = vpop.f32.mrf.mxu0
    %v4603 = vadd.f32 %v117, %v4602
    %4604 = vmatmul.f32.gmra.mxu0 %v307
    %v4605 = vpop.f32.mrf.mxu0
    %v4606 = vadd.f32 %v122, %v4605
    %4607 = vmatmul.f32.gmra.mxu0 %v310
    %v4608 = vpop.f32.mrf.mxu0
    %v4609 = vadd.f32 %v127, %v4608
    %4610 = vdwg.mxu0
    %4611 = vmatpush.msra.mxu0 0.0
    %4612 = vmatpush.msra.mxu0 0.0
    %4613 = vmatpush.msra.mxu0 0.0
    %4614 = vmatpush.msra.mxu0 0.0
    %4615 = vmatpush.msra.mxu0 0.0
    %4616 = vmatpush.msra.mxu0 0.0
    %4617 = vmatpush.msra.mxu0 0.0
    %4618 = vmatpush.msra.mxu0 0.0
    %4619 = vmatpush.msra.mxu0 0.0
    %4620 = vmatpush.msra.mxu0 0.0
    %4621 = vmatpush.msra.mxu0 0.0
    %4622 = vmatpush.msra.mxu0 0.0
    %4623 = vmatpush.msra.mxu0 %v4260
    %4624 = vmatpush.msra.mxu0 %v4259
    %4625 = vmatpush.msra.mxu0 %v4258
    %4626 = vmatpush.msra.mxu0 %v4257
    %4627 = vmatmul.f32.gmra.mxu0 %v367
    %v4628 = vpop.f32.mrf.mxu0
    %v4629 = vadd.f32 0.0, %v4628
    %4630 = vmatmul.f32.gmra.mxu0 %v370
    %v4631 = vpop.f32.mrf.mxu0
    %v4632 = vadd.f32 0.0, %v4631
    %4633 = vmatmul.f32.gmra.mxu0 %v373
    %v4634 = vpop.f32.mrf.mxu0
    %v4635 = vadd.f32 0.0, %v4634
    %4636 = vmatmul.f32.gmra.mxu0 %v376
    %v4637 = vpop.f32.mrf.mxu0
    %v4638 = vadd.f32 0.0, %v4637
    %4639 = vmatmul.f32.gmra.mxu0 %v379
    %v4640 = vpop.f32.mrf.mxu0
    %v4641 = vadd.f32 0.0, %v4640
    %4642 = vmatmul.f32.gmra.mxu0 %v382
    %v4643 = vpop.f32.mrf.mxu0
    %v4644 = vadd.f32 0.0, %v4643
    %4645 = vmatmul.f32.gmra.mxu0 %v385
    %v4646 = vpop.f32.mrf.mxu0
    %v4647 = vadd.f32 0.0, %v4646
    %4648 = vmatmul.f32.gmra.mxu0 %v388
    %v4649 = vpop.f32.mrf.mxu0
    %v4650 = vadd.f32 0.0, %v4649
    %4651 = vmatmul.f32.gmra.mxu0 %v391
    %v4652 = vpop.f32.mrf.mxu0
    %v4653 = vadd.f32 0.0, %v4652
    %4654 = vmatmul.f32.gmra.mxu0 %v394
    %v4655 = vpop.f32.mrf.mxu0
    %v4656 = vadd.f32 0.0, %v4655
    %4657 = vmatmul.f32.gmra.mxu0 %v397
    %v4658 = vpop.f32.mrf.mxu0
    %v4659 = vadd.f32 0.0, %v4658
    %4660 = vmatmul.f32.gmra.mxu0 %v400
    %v4661 = vpop.f32.mrf.mxu0
    %v4662 = vadd.f32 0.0, %v4661
    %4663 = vdwg.mxu0
    %v4664 = vadd.f32 %v4576, %v4629
    %v4665 = vadd.f32 %v4579, %v4632
    %v4666 = vadd.f32 %v4582, %v4635
    %v4667 = vadd.f32 %v4585, %v4638
    %v4668 = vxor.u32 %v4664, 2147483648
    %v4669 = vxor.u32 %v4665, 2147483648
    %v4670 = vxor.u32 %v4666, 2147483648
    %v4671 = vxor.u32 %v4667, 2147483648
    %v4672 = vmul.f32 %v4668, 1.442695
    %v4673 = vpow.pop %v4672
    %v4674 = vmul.f32 %v4669, 1.442695
    %v4675 = vpow.pop %v4674
    %v4676 = vmul.f32 %v4670, 1.442695
    %v4677 = vpow.pop %v4676
    %v4678 = vmul.f32 %v4671, 1.442695
    %v4679 = vpow.pop %v4678
    %v4680 = vadd.f32 %v4673, 1.0
    %v4681 = vadd.f32 %v4675, 1.0
    %v4682 = vadd.f32 %v4677, 1.0
    %v4683 = vadd.f32 %v4679, 1.0
    %v4684 = vrcp.pop %v4680
    %v4685 = vmul.f32 %v4680, %v4684
    %v4686 = vsub.f32 1.0, %v4685
    %v4687 = vmul.f32 %v4684, %v4686
    %v4688 = vadd.f32 %v4684, %v4687
    %vm4689 = vweird.f32 %v4680
    %vm4690 = vweird.f32 %v4684
    %vm4691 = vmor %vm4689, %vm4690
    %v4692 = vsel %vm4691, %v4684, %v4688
    %v4693 = vand.u32 2147483647, %v4680
    %vm4694 = vcmp.eq.f32.partialorder %v4693, 8.507059e+37
    %v4695 = vand.u32 %v4680, 2147483648
    %v4696 = vor.u32 1.1754944e-38, %v4695
    %v4697 = vsel %vm4694, %v4696, %v4692
    %v4698 = vmul.f32 1.0, %v4697
    %v4699 = vrcp.pop %v4681
    %v4700 = vmul.f32 %v4681, %v4699
    %v4701 = vsub.f32 1.0, %v4700
    %v4702 = vmul.f32 %v4699, %v4701
    %v4703 = vadd.f32 %v4699, %v4702
    %vm4704 = vweird.f32 %v4681
    %vm4705 = vweird.f32 %v4699
    %vm4706 = vmor %vm4704, %vm4705
    %v4707 = vsel %vm4706, %v4699, %v4703
    %v4708 = vand.u32 2147483647, %v4681
    %vm4709 = vcmp.eq.f32.partialorder %v4708, 8.507059e+37
    %v4710 = vand.u32 %v4681, 2147483648
    %v4711 = vor.u32 1.1754944e-38, %v4710
    %v4712 = vsel %vm4709, %v4711, %v4707
    %v4713 = vmul.f32 1.0, %v4712
    %v4714 = vrcp.pop %v4682
    %v4715 = vmul.f32 %v4682, %v4714
    %v4716 = vsub.f32 1.0, %v4715
    %v4717 = vmul.f32 %v4714, %v4716
    %v4718 = vadd.f32 %v4714, %v4717
    %vm4719 = vweird.f32 %v4682
    %vm4720 = vweird.f32 %v4714
    %vm4721 = vmor %vm4719, %vm4720
    %v4722 = vsel %vm4721, %v4714, %v4718
    %v4723 = vand.u32 2147483647, %v4682
    %vm4724 = vcmp.eq.f32.partialorder %v4723, 8.507059e+37
    %v4725 = vand.u32 %v4682, 2147483648
    %v4726 = vor.u32 1.1754944e-38, %v4725
    %v4727 = vsel %vm4724, %v4726, %v4722
    %v4728 = vmul.f32 1.0, %v4727
    %v4729 = vrcp.pop %v4683
    %v4730 = vmul.f32 %v4683, %v4729
    %v4731 = vsub.f32 1.0, %v4730
    %v4732 = vmul.f32 %v4729, %v4731
    %v4733 = vadd.f32 %v4729, %v4732
    %vm4734 = vweird.f32 %v4683
    %vm4735 = vweird.f32 %v4729
    %vm4736 = vmor %vm4734, %vm4735
    %v4737 = vsel %vm4736, %v4729, %v4733
    %v4738 = vand.u32 2147483647, %v4683
    %vm4739 = vcmp.eq.f32.partialorder %v4738, 8.507059e+37
    %v4740 = vand.u32 %v4683, 2147483648
    %v4741 = vor.u32 1.1754944e-38, %v4740
    %v4742 = vsel %vm4739, %v4741, %v4737
    %v4743 = vmul.f32 1.0, %v4742
    %v4744 = vadd.f32 %v4588, %v4641
    %v4745 = vadd.f32 %v4591, %v4644
    %v4746 = vadd.f32 %v4594, %v4647
    %v4747 = vadd.f32 %v4597, %v4650
    %v4748 = vxor.u32 %v4744, 2147483648
    %v4749 = vxor.u32 %v4745, 2147483648
    %v4750 = vxor.u32 %v4746, 2147483648
    %v4751 = vxor.u32 %v4747, 2147483648
    %v4752 = vmul.f32 %v4748, 1.442695
    %v4753 = vpow.pop %v4752
    %v4754 = vmul.f32 %v4749, 1.442695
    %v4755 = vpow.pop %v4754
    %v4756 = vmul.f32 %v4750, 1.442695
    %v4757 = vpow.pop %v4756
    %v4758 = vmul.f32 %v4751, 1.442695
    %v4759 = vpow.pop %v4758
    %v4760 = vadd.f32 %v4753, 1.0
    %v4761 = vadd.f32 %v4755, 1.0
    %v4762 = vadd.f32 %v4757, 1.0
    %v4763 = vadd.f32 %v4759, 1.0
    %v4764 = vrcp.pop %v4760
    %v4765 = vmul.f32 %v4760, %v4764
    %v4766 = vsub.f32 1.0, %v4765
    %v4767 = vmul.f32 %v4764, %v4766
    %v4768 = vadd.f32 %v4764, %v4767
    %vm4769 = vweird.f32 %v4760
    %vm4770 = vweird.f32 %v4764
    %vm4771 = vmor %vm4769, %vm4770
    %v4772 = vsel %vm4771, %v4764, %v4768
    %v4773 = vand.u32 2147483647, %v4760
    %vm4774 = vcmp.eq.f32.partialorder %v4773, 8.507059e+37
    %v4775 = vand.u32 %v4760, 2147483648
    %v4776 = vor.u32 1.1754944e-38, %v4775
    %v4777 = vsel %vm4774, %v4776, %v4772
    %v4778 = vmul.f32 1.0, %v4777
    %v4779 = vrcp.pop %v4761
    %v4780 = vmul.f32 %v4761, %v4779
    %v4781 = vsub.f32 1.0, %v4780
    %v4782 = vmul.f32 %v4779, %v4781
    %v4783 = vadd.f32 %v4779, %v4782
    %vm4784 = vweird.f32 %v4761
    %vm4785 = vweird.f32 %v4779
    %vm4786 = vmor %vm4784, %vm4785
    %v4787 = vsel %vm4786, %v4779, %v4783
    %v4788 = vand.u32 2147483647, %v4761
    %vm4789 = vcmp.eq.f32.partialorder %v4788, 8.507059e+37
    %v4790 = vand.u32 %v4761, 2147483648
    %v4791 = vor.u32 1.1754944e-38, %v4790
    %v4792 = vsel %vm4789, %v4791, %v4787
    %v4793 = vmul.f32 1.0, %v4792
    %v4794 = vrcp.pop %v4762
    %v4795 = vmul.f32 %v4762, %v4794
    %v4796 = vsub.f32 1.0, %v4795
    %v4797 = vmul.f32 %v4794, %v4796
    %v4798 = vadd.f32 %v4794, %v4797
    %vm4799 = vweird.f32 %v4762
    %vm4800 = vweird.f32 %v4794
    %vm4801 = vmor %vm4799, %vm4800
    %v4802 = vsel %vm4801, %v4794, %v4798
    %v4803 = vand.u32 2147483647, %v4762
    %vm4804 = vcmp.eq.f32.partialorder %v4803, 8.507059e+37
    %v4805 = vand.u32 %v4762, 2147483648
    %v4806 = vor.u32 1.1754944e-38, %v4805
    %v4807 = vsel %vm4804, %v4806, %v4802
    %v4808 = vmul.f32 1.0, %v4807
    %v4809 = vrcp.pop %v4763
    %v4810 = vmul.f32 %v4763, %v4809
    %v4811 = vsub.f32 1.0, %v4810
    %v4812 = vmul.f32 %v4809, %v4811
    %v4813 = vadd.f32 %v4809, %v4812
    %vm4814 = vweird.f32 %v4763
    %vm4815 = vweird.f32 %v4809
    %vm4816 = vmor %vm4814, %vm4815
    %v4817 = vsel %vm4816, %v4809, %v4813
    %v4818 = vand.u32 2147483647, %v4763
    %vm4819 = vcmp.eq.f32.partialorder %v4818, 8.507059e+37
    %v4820 = vand.u32 %v4763, 2147483648
    %v4821 = vor.u32 1.1754944e-38, %v4820
    %v4822 = vsel %vm4819, %v4821, %v4817
    %v4823 = vmul.f32 1.0, %v4822
    %v4824 = vadd.f32 %v4653, %v136
    %v4825 = vadd.f32 %v4656, %v141
    %v4826 = vadd.f32 %v4659, %v146
    %v4827 = vadd.f32 %v4662, %v151
    %v4828 = vmul.f32 %v4698, %v4824
    %v4829 = vmul.f32 %v4713, %v4825
    %v4830 = vmul.f32 %v4728, %v4826
    %v4831 = vmul.f32 %v4743, %v4827
    %v4832 = vadd.f32 %v4600, %v4828
    %v4833 = vadd.f32 %v4603, %v4829
    %v4834 = vadd.f32 %v4606, %v4830
    %v4835 = vadd.f32 %v4609, %v4831
    %v4836 = vtanh.pop %v4832
    %v4837 = vtanh.pop %v4833
    %v4838 = vtanh.pop %v4834
    %v4839 = vtanh.pop %v4835
    %v4840 = vsub.f32 %v4257, %v4836
    %v4841 = vsub.f32 %v4258, %v4837
    %v4842 = vsub.f32 %v4259, %v4838
    %v4843 = vsub.f32 %v4260, %v4839
    %v4844 = vmul.f32 %v4778, %v4840
    %v4845 = vmul.f32 %v4793, %v4841
    %v4846 = vmul.f32 %v4808, %v4842
    %v4847 = vmul.f32 %v4823, %v4843
    %v4848 = vadd.f32 %v4836, %v4844
    %v4849 = vadd.f32 %v4837, %v4845
    %v4850 = vadd.f32 %v4838, %v4846
    %v4851 = vadd.f32 %v4839, %v4847
    %4852 = vmatpush.msra.mxu0 0.0
    %4853 = vmatpush.msra.mxu0 0.0
    %4854 = vmatpush.msra.mxu0 0.0
    %4855 = vmatpush.msra.mxu0 0.0
    %4856 = vmatpush.msra.mxu0 0.0
    %4857 = vmatpush.msra.mxu0 0.0
    %4858 = vmatpush.msra.mxu0 0.0
    %4859 = vmatpush.msra.mxu0 0.0
    %4860 = vmatpush.msra.mxu0 0.0
    %4861 = vmatpush.msra.mxu0 0.0
    %4862 = vmatpush.msra.mxu0 0.0
    %4863 = vmatpush.msra.mxu0 0.0
    %4864 = vmatpush.msra.mxu0 %v4851
    %4865 = vmatpush.msra.mxu0 %v4850
    %4866 = vmatpush.msra.mxu0 %v4849
    %4867 = vmatpush.msra.mxu0 %v4848
    %4868 = vmatmul.f32.gmra.mxu0 %v644
    %v4869 = vpop.f32.mrf.mxu0
    %v4870 = vadd.f32 %v192, %v4869
    %4871 = vmatmul.f32.gmra.mxu0 %v647
    %v4872 = vpop.f32.mrf.mxu0
    %v4873 = vadd.f32 %v197, %v4872
    %4874 = vmatmul.f32.gmra.mxu0 %v650
    %v4875 = vpop.f32.mrf.mxu0
    %v4876 = vadd.f32 %v202, %v4875
    %4877 = vmatmul.f32.gmra.mxu0 %v653
    %v4878 = vpop.f32.mrf.mxu0
    %v4879 = vadd.f32 %v207, %v4878
    %4880 = vmatmul.f32.gmra.mxu0 %v656
    %v4881 = vpop.f32.mrf.mxu0
    %v4882 = vadd.f32 %v212, %v4881
    %4883 = vmatmul.f32.gmra.mxu0 %v659
    %v4884 = vpop.f32.mrf.mxu0
    %v4885 = vadd.f32 %v217, %v4884
    %4886 = vmatmul.f32.gmra.mxu0 %v662
    %v4887 = vpop.f32.mrf.mxu0
    %v4888 = vadd.f32 %v222, %v4887
    %4889 = vmatmul.f32.gmra.mxu0 %v665
    %v4890 = vpop.f32.mrf.mxu0
    %v4891 = vadd.f32 %v227, %v4890
    %4892 = vmatmul.f32.gmra.mxu0 %v668
    %v4893 = vpop.f32.mrf.mxu0
    %v4894 = vadd.f32 %v232, %v4893
    %4895 = vmatmul.f32.gmra.mxu0 %v671
    %v4896 = vpop.f32.mrf.mxu0
    %v4897 = vadd.f32 %v237, %v4896
    %4898 = vmatmul.f32.gmra.mxu0 %v674
    %v4899 = vpop.f32.mrf.mxu0
    %v4900 = vadd.f32 %v242, %v4899
    %4901 = vmatmul.f32.gmra.mxu0 %v677
    %v4902 = vpop.f32.mrf.mxu0
    %v4903 = vadd.f32 %v247, %v4902
    %4904 = vdwg.mxu0
    %4905 = vmatpush.msra.mxu0 0.0
    %4906 = vmatpush.msra.mxu0 0.0
    %4907 = vmatpush.msra.mxu0 0.0
    %4908 = vmatpush.msra.mxu0 0.0
    %4909 = vmatpush.msra.mxu0 0.0
    %4910 = vmatpush.msra.mxu0 0.0
    %4911 = vmatpush.msra.mxu0 0.0
    %4912 = vmatpush.msra.mxu0 0.0
    %4913 = vmatpush.msra.mxu0 0.0
    %4914 = vmatpush.msra.mxu0 0.0
    %4915 = vmatpush.msra.mxu0 0.0
    %4916 = vmatpush.msra.mxu0 0.0
    %4917 = vmatpush.msra.mxu0 %v4554
    %4918 = vmatpush.msra.mxu0 %v4553
    %4919 = vmatpush.msra.mxu0 %v4552
    %4920 = vmatpush.msra.mxu0 %v4551
    %4921 = vmatmul.f32.gmra.mxu0 %v733
    %v4922 = vpop.f32.mrf.mxu0
    %v4923 = vadd.f32 0.0, %v4922
    %4924 = vmatmul.f32.gmra.mxu0 %v736
    %v4925 = vpop.f32.mrf.mxu0
    %v4926 = vadd.f32 0.0, %v4925
    %4927 = vmatmul.f32.gmra.mxu0 %v739
    %v4928 = vpop.f32.mrf.mxu0
    %v4929 = vadd.f32 0.0, %v4928
    %4930 = vmatmul.f32.gmra.mxu0 %v742
    %v4931 = vpop.f32.mrf.mxu0
    %v4932 = vadd.f32 0.0, %v4931
    %4933 = vmatmul.f32.gmra.mxu0 %v745
    %v4934 = vpop.f32.mrf.mxu0
    %v4935 = vadd.f32 0.0, %v4934
    %4936 = vmatmul.f32.gmra.mxu0 %v748
    %v4937 = vpop.f32.mrf.mxu0
    %v4938 = vadd.f32 0.0, %v4937
    %4939 = vmatmul.f32.gmra.mxu0 %v751
    %v4940 = vpop.f32.mrf.mxu0
    %v4941 = vadd.f32 0.0, %v4940
    %4942 = vmatmul.f32.gmra.mxu0 %v754
    %v4943 = vpop.f32.mrf.mxu0
    %v4944 = vadd.f32 0.0, %v4943
    %4945 = vmatmul.f32.gmra.mxu0 %v757
    %v4946 = vpop.f32.mrf.mxu0
    %v4947 = vadd.f32 0.0, %v4946
    %4948 = vmatmul.f32.gmra.mxu0 %v760
    %v4949 = vpop.f32.mrf.mxu0
    %v4950 = vadd.f32 0.0, %v4949
    %4951 = vmatmul.f32.gmra.mxu0 %v763
    %v4952 = vpop.f32.mrf.mxu0
    %v4953 = vadd.f32 0.0, %v4952
    %4954 = vmatmul.f32.gmra.mxu0 %v766
    %v4955 = vpop.f32.mrf.mxu0
    %v4956 = vadd.f32 0.0, %v4955
    %4957 = vdwg.mxu0
    %v4958 = vadd.f32 %v4870, %v4923
    %v4959 = vadd.f32 %v4873, %v4926
    %v4960 = vadd.f32 %v4876, %v4929
    %v4961 = vadd.f32 %v4879, %v4932
    %v4962 = vxor.u32 %v4958, 2147483648
    %v4963 = vxor.u32 %v4959, 2147483648
    %v4964 = vxor.u32 %v4960, 2147483648
    %v4965 = vxor.u32 %v4961, 2147483648
    %v4966 = vmul.f32 %v4962, 1.442695
    %v4967 = vpow.pop %v4966
    %v4968 = vmul.f32 %v4963, 1.442695
    %v4969 = vpow.pop %v4968
    %v4970 = vmul.f32 %v4964, 1.442695
    %v4971 = vpow.pop %v4970
    %v4972 = vmul.f32 %v4965, 1.442695
    %v4973 = vpow.pop %v4972
    %v4974 = vadd.f32 %v4967, 1.0
    %v4975 = vadd.f32 %v4969, 1.0
    %v4976 = vadd.f32 %v4971, 1.0
    %v4977 = vadd.f32 %v4973, 1.0
    %v4978 = vrcp.pop %v4974
    %v4979 = vmul.f32 %v4974, %v4978
    %v4980 = vsub.f32 1.0, %v4979
    %v4981 = vmul.f32 %v4978, %v4980
    %v4982 = vadd.f32 %v4978, %v4981
    %vm4983 = vweird.f32 %v4974
    %vm4984 = vweird.f32 %v4978
    %vm4985 = vmor %vm4983, %vm4984
    %v4986 = vsel %vm4985, %v4978, %v4982
    %v4987 = vand.u32 2147483647, %v4974
    %vm4988 = vcmp.eq.f32.partialorder %v4987, 8.507059e+37
    %v4989 = vand.u32 %v4974, 2147483648
    %v4990 = vor.u32 1.1754944e-38, %v4989
    %v4991 = vsel %vm4988, %v4990, %v4986
    %v4992 = vmul.f32 1.0, %v4991
    %v4993 = vrcp.pop %v4975
    %v4994 = vmul.f32 %v4975, %v4993
    %v4995 = vsub.f32 1.0, %v4994
    %v4996 = vmul.f32 %v4993, %v4995
    %v4997 = vadd.f32 %v4993, %v4996
    %vm4998 = vweird.f32 %v4975
    %vm4999 = vweird.f32 %v4993
    %vm5000 = vmor %vm4998, %vm4999
    %v5001 = vsel %vm5000, %v4993, %v4997
    %v5002 = vand.u32 2147483647, %v4975
    %vm5003 = vcmp.eq.f32.partialorder %v5002, 8.507059e+37
    %v5004 = vand.u32 %v4975, 2147483648
    %v5005 = vor.u32 1.1754944e-38, %v5004
    %v5006 = vsel %vm5003, %v5005, %v5001
    %v5007 = vmul.f32 1.0, %v5006
    %v5008 = vrcp.pop %v4976
    %v5009 = vmul.f32 %v4976, %v5008
    %v5010 = vsub.f32 1.0, %v5009
    %v5011 = vmul.f32 %v5008, %v5010
    %v5012 = vadd.f32 %v5008, %v5011
    %vm5013 = vweird.f32 %v4976
    %vm5014 = vweird.f32 %v5008
    %vm5015 = vmor %vm5013, %vm5014
    %v5016 = vsel %vm5015, %v5008, %v5012
    %v5017 = vand.u32 2147483647, %v4976
    %vm5018 = vcmp.eq.f32.partialorder %v5017, 8.507059e+37
    %v5019 = vand.u32 %v4976, 2147483648
    %v5020 = vor.u32 1.1754944e-38, %v5019
    %v5021 = vsel %vm5018, %v5020, %v5016
    %v5022 = vmul.f32 1.0, %v5021
    %v5023 = vrcp.pop %v4977
    %v5024 = vmul.f32 %v4977, %v5023
    %v5025 = vsub.f32 1.0, %v5024
    %v5026 = vmul.f32 %v5023, %v5025
    %v5027 = vadd.f32 %v5023, %v5026
    %vm5028 = vweird.f32 %v4977
    %vm5029 = vweird.f32 %v5023
    %vm5030 = vmor %vm5028, %vm5029
    %v5031 = vsel %vm5030, %v5023, %v5027
    %v5032 = vand.u32 2147483647, %v4977
    %vm5033 = vcmp.eq.f32.partialorder %v5032, 8.507059e+37
    %v5034 = vand.u32 %v4977, 2147483648
    %v5035 = vor.u32 1.1754944e-38, %v5034
    %v5036 = vsel %vm5033, %v5035, %v5031
    %v5037 = vmul.f32 1.0, %v5036
    %v5038 = vadd.f32 %v4882, %v4935
    %v5039 = vadd.f32 %v4885, %v4938
    %v5040 = vadd.f32 %v4888, %v4941
    %v5041 = vadd.f32 %v4891, %v4944
    %v5042 = vxor.u32 %v5038, 2147483648
    %v5043 = vxor.u32 %v5039, 2147483648
    %v5044 = vxor.u32 %v5040, 2147483648
    %v5045 = vxor.u32 %v5041, 2147483648
    %v5046 = vmul.f32 %v5042, 1.442695
    %v5047 = vpow.pop %v5046
    %v5048 = vmul.f32 %v5043, 1.442695
    %v5049 = vpow.pop %v5048
    %v5050 = vmul.f32 %v5044, 1.442695
    %v5051 = vpow.pop %v5050
    %v5052 = vmul.f32 %v5045, 1.442695
    %v5053 = vpow.pop %v5052
    %v5054 = vadd.f32 %v5047, 1.0
    %v5055 = vadd.f32 %v5049, 1.0
    %v5056 = vadd.f32 %v5051, 1.0
    %v5057 = vadd.f32 %v5053, 1.0
    %v5058 = vrcp.pop %v5054
    %v5059 = vmul.f32 %v5054, %v5058
    %v5060 = vsub.f32 1.0, %v5059
    %v5061 = vmul.f32 %v5058, %v5060
    %v5062 = vadd.f32 %v5058, %v5061
    %vm5063 = vweird.f32 %v5054
    %vm5064 = vweird.f32 %v5058
    %vm5065 = vmor %vm5063, %vm5064
    %v5066 = vsel %vm5065, %v5058, %v5062
    %v5067 = vand.u32 2147483647, %v5054
    %vm5068 = vcmp.eq.f32.partialorder %v5067, 8.507059e+37
    %v5069 = vand.u32 %v5054, 2147483648
    %v5070 = vor.u32 1.1754944e-38, %v5069
    %v5071 = vsel %vm5068, %v5070, %v5066
    %v5072 = vmul.f32 1.0, %v5071
    %v5073 = vrcp.pop %v5055
    %v5074 = vmul.f32 %v5055, %v5073
    %v5075 = vsub.f32 1.0, %v5074
    %v5076 = vmul.f32 %v5073, %v5075
    %v5077 = vadd.f32 %v5073, %v5076
    %vm5078 = vweird.f32 %v5055
    %vm5079 = vweird.f32 %v5073
    %vm5080 = vmor %vm5078, %vm5079
    %v5081 = vsel %vm5080, %v5073, %v5077
    %v5082 = vand.u32 2147483647, %v5055
    %vm5083 = vcmp.eq.f32.partialorder %v5082, 8.507059e+37
    %v5084 = vand.u32 %v5055, 2147483648
    %v5085 = vor.u32 1.1754944e-38, %v5084
    %v5086 = vsel %vm5083, %v5085, %v5081
    %v5087 = vmul.f32 1.0, %v5086
    %v5088 = vrcp.pop %v5056
    %v5089 = vmul.f32 %v5056, %v5088
    %v5090 = vsub.f32 1.0, %v5089
    %v5091 = vmul.f32 %v5088, %v5090
    %v5092 = vadd.f32 %v5088, %v5091
    %vm5093 = vweird.f32 %v5056
    %vm5094 = vweird.f32 %v5088
    %vm5095 = vmor %vm5093, %vm5094
    %v5096 = vsel %vm5095, %v5088, %v5092
    %v5097 = vand.u32 2147483647, %v5056
    %vm5098 = vcmp.eq.f32.partialorder %v5097, 8.507059e+37
    %v5099 = vand.u32 %v5056, 2147483648
    %v5100 = vor.u32 1.1754944e-38, %v5099
    %v5101 = vsel %vm5098, %v5100, %v5096
    %v5102 = vmul.f32 1.0, %v5101
    %v5103 = vrcp.pop %v5057
    %v5104 = vmul.f32 %v5057, %v5103
    %v5105 = vsub.f32 1.0, %v5104
    %v5106 = vmul.f32 %v5103, %v5105
    %v5107 = vadd.f32 %v5103, %v5106
    %vm5108 = vweird.f32 %v5057
    %vm5109 = vweird.f32 %v5103
    %vm5110 = vmor %vm5108, %vm5109
    %v5111 = vsel %vm5110, %v5103, %v5107
    %v5112 = vand.u32 2147483647, %v5057
    %vm5113 = vcmp.eq.f32.partialorder %v5112, 8.507059e+37
    %v5114 = vand.u32 %v5057, 2147483648
    %v5115 = vor.u32 1.1754944e-38, %v5114
    %v5116 = vsel %vm5113, %v5115, %v5111
    %v5117 = vmul.f32 1.0, %v5116
    %v5118 = vadd.f32 %v4947, %v256
    %v5119 = vadd.f32 %v4950, %v261
    %v5120 = vadd.f32 %v4953, %v266
    %v5121 = vadd.f32 %v4956, %v271
    %v5122 = vmul.f32 %v4992, %v5118
    %v5123 = vmul.f32 %v5007, %v5119
    %v5124 = vmul.f32 %v5022, %v5120
    %v5125 = vmul.f32 %v5037, %v5121
    %v5126 = vadd.f32 %v4894, %v5122
    %v5127 = vadd.f32 %v4897, %v5123
    %v5128 = vadd.f32 %v4900, %v5124
    %v5129 = vadd.f32 %v4903, %v5125
    %v5130 = vtanh.pop %v5126
    %v5131 = vtanh.pop %v5127
    %v5132 = vtanh.pop %v5128
    %v5133 = vtanh.pop %v5129
    %v5134 = vsub.f32 %v4551, %v5130
    %v5135 = vsub.f32 %v4552, %v5131
    %v5136 = vsub.f32 %v4553, %v5132
    %v5137 = vsub.f32 %v4554, %v5133
    %v5138 = vmul.f32 %v5072, %v5134
    %v5139 = vmul.f32 %v5087, %v5135
    %v5140 = vmul.f32 %v5102, %v5136
    %v5141 = vmul.f32 %v5117, %v5137
    %v5142 = vadd.f32 %v5130, %v5138
    %v5143 = vadd.f32 %v5131, %v5139
    %v5144 = vadd.f32 %v5132, %v5140
    %v5145 = vadd.f32 %v5133, %v5141
    %5146 = vst [vmem:[#allocation2] sm:$0xff] %v5142
    %5147 = vst [vmem:[#allocation2 + $0x8] sm:$0xff] %v5143
    %5148 = vst [vmem:[#allocation2 + $0x10] sm:$0xff] %v5144
    %5149 = vst [vmem:[#allocation2 + $0x18] sm:$0xff] %v5145
    // Predicated region
    $region38: #{tpu_custom_call.1} parent=1 // pred_check
      _
    $region39: #{tpu_custom_call.1} parent=1 // pred_check_branch
      %5151 = sbr.rel (0) target = $region41
    $region40: #{tpu_custom_call.1} parent=1 // pred_region
      %5153 = vsyncadd [#allocation3], 0
      %s5154 = sshll.u32 [#allocation2], 4
      %s5155 = int_to_ptr.vmem [resolvable:$true] %s5154
      %s5156 = sshll.u32 %s9, 4
      %s5157 = int_to_ptr.hbm [resolvable:$true] %s5156
      %5162 = dma.vmem_to_hbm [thread:$0]  %s5155, 512, %s5157, [#allocation3], 128, 128, 8
    $region41: #{tpu_custom_call.1} parent=1 // pred_fallthru
      _
    // Predicated region
    $region42: #{tpu_custom_call.1} parent=1 // pred_check
      _
    $region43: #{tpu_custom_call.1} parent=1 // pred_check_branch
      %5164 = sbr.rel (0) target = $region45
    $region44: #{tpu_custom_call.1} parent=1 // pred_region
      %5166 = dma.done [#allocation3], 512
    $region45: #{tpu_custom_call.1} parent=1 // pred_fallthru
      _
    %5167 = vsyncpa [#allocation3], 1

</llo_original>
